<compile_context>
chip_gen: v7x
topology: tpu7x:2x2x1
jax: 0.10.0
libtpu: 0.0.40
codegen_flags: <defaults>
</compile_context>

<pallas_src>
import math

import jax
import jax.numpy as jnp
from jax.experimental import pallas as pl
from jax.experimental.pallas import tpu as pltpu

# ---------------- problem sizes (small, consistent with the module) ----------
B = 2          # batch
S = 8          # sequence length
D_MODEL = 32   # layer.size / d_model
N_HEADS = 4
D_K = D_MODEL // N_HEADS
D_FF = 64
N_LAYERS = 2
EPS = 1e-6

VEC_W = 128            # lane width of the packed 1-D parameter slab
ROWS_PER_LAYER = 8     # ln0a, ln0b, bqkv, bo, ln1a, ln1b, b1, b2
# vec row layout: [0]=af, [1]=bf, then 8 rows per layer starting at 2+8*l


# =============================== Pallas kernel ===============================
def encoder_kernel(x_ref, maskb_ref, bigw_ref, w1_ref, w2_ref, vec_ref, o_ref):
    x = x_ref[...]              # (B*S, D)  all tokens, flattened
    mask_bias = maskb_ref[...]  # (B, 1, S) additive mask: 0 keep / -1e9 masked

    def row(r, w):              # one packed 1-D param: row r, first w lanes
        return vec_ref[r][:w]

    def layernorm(y, a, b):
        mean = jnp.mean(y, axis=-1, keepdims=True)
        # torch .std() default is unbiased (ddof=1); module divides by (std+eps)
        var = jnp.sum((y - mean) ** 2, axis=-1, keepdims=True) * (1.0 / (D_MODEL - 1))
        # one EXACT reciprocal per row (approx would be borderline vs 1e-4 tol)
        inv = pl.reciprocal(jnp.sqrt(var) + EPS, approx=False)
        return a * ((y - mean) * inv) + b

    for l in range(N_LAYERS):
        base = 2 + ROWS_PER_LAYER * l
        ln0a = row(base + 0, D_MODEL)
        ln0b = row(base + 1, D_MODEL)
        bqkv = row(base + 2, 3 * D_MODEL)
        bo   = row(base + 3, D_MODEL)
        ln1a = row(base + 4, D_MODEL)
        ln1b = row(base + 5, D_MODEL)
        b1   = row(base + 6, D_FF)
        b2   = row(base + 7, D_MODEL)

        w_all = bigw_ref[l]                       # (D, 4D): [Wq*s | Wk | Wv | Wo]
        wqkv = w_all[:, :3 * D_MODEL]             # (D, 3D)
        wo = w_all[:, 3 * D_MODEL:]               # (D, D)

        # ---------------- self-attention sublayer ----------------
        xn = layernorm(x, ln0a, ln0b)
        # fused QKV projection: (B*S, D) @ (D, 3D) -> (B*S, 3D)
        qkv = jnp.dot(xn, wqkv, preferred_element_type=jnp.float32) + bqkv
        q = qkv[:, 0:D_MODEL]                     # already pre-scaled by 1/sqrt(D_K)
        k = qkv[:, D_MODEL:2 * D_MODEL]
        v = qkv[:, 2 * D_MODEL:3 * D_MODEL]

        attn = jnp.zeros((B * S, D_MODEL), jnp.float32)
        for h in range(N_HEADS):                  # short static unroll over heads
            sl = slice(h * D_K, (h + 1) * D_K)
            qh = q[:, sl].reshape(B, S, D_K)
            kh = k[:, sl].reshape(B, S, D_K)
            vh = v[:, sl].reshape(B, S, D_K)
            # batched over B (single batch dim -> one dot_general issue)
            s = jnp.einsum('bqd,bkd->bqk', qh, kh,
                           preferred_element_type=jnp.float32)
            s = s + mask_bias                     # (B,1,S) bcast -> (B,S,S), one add
            p = jax.nn.softmax(s, axis=-1)
            oh = jnp.einsum('bqk,bkd->bqd', p, vh,
                            preferred_element_type=jnp.float32)
            # fold the head-concat into the output projection: no lane concat
            attn = attn + jnp.dot(oh.reshape(B * S, D_K), wo[sl, :],
                                  preferred_element_type=jnp.float32)
        x = x + attn + bo

        # ---------------- feed-forward sublayer ----------------
        xn = layernorm(x, ln1a, ln1b)
        h1 = jnp.maximum(
            jnp.dot(xn, w1_ref[l], preferred_element_type=jnp.float32) + b1, 0.0)
        ff = jnp.dot(h1, w2_ref[l], preferred_element_type=jnp.float32) + b2
        x = x + ff

    # final LayerNorm of the Encoder (the spec's LayerNorm module)
    o_ref[...] = layernorm(x, row(0, D_MODEL), row(1, D_MODEL))


def _pad_row(v):
    return jnp.pad(v, (0, VEC_W - v.shape[0]))


@jax.jit
def encoder_pallas(x, mask, params):
    (ln0a, ln0b, wq, bq, wk, bk, wv, bv, wo, bo,
     ln1a, ln1b, w1, b1, w2, b2, af, bf) = params

    # Host-side fusion: fold the 1/sqrt(d_k) score scale into Wq/bq, then pack
    # Q/K/V/O projections into ONE (L, D, 4D) weight slab (lane-dense: 128).
    scale = 1.0 / math.sqrt(D_K)
    wqkv = jnp.concatenate([wq * scale, wk, wv], axis=-1)        # (L, D, 3D)
    bqkv = jnp.concatenate([bq * scale, bk, bv], axis=-1)        # (L, 3D)
    bigw = jnp.concatenate([wqkv, wo], axis=-1)                  # (L, D, 4D)

    # Pack every 1-D parameter into one (18, 128) slab (row per param).
    rows = [_pad_row(af[0]), _pad_row(bf[0])]
    for l in range(N_LAYERS):
        rows += [_pad_row(ln0a[l]), _pad_row(ln0b[l]), _pad_row(bqkv[l]),
                 _pad_row(bo[l]), _pad_row(ln1a[l]), _pad_row(ln1b[l]),
                 _pad_row(b1[l]), _pad_row(b2[l])]
    vec = jnp.stack(rows, axis=0)                                # (18, 128)

    # Additive mask precomputed once host-side (exactly where(mask==0,-1e9,0)).
    mask_bias = jnp.where(mask == 0.0, -1e9, 0.0).astype(jnp.float32)  # (B,1,S)

    x2 = x.reshape(B * S, D_MODEL)                               # (16, 32), free

    kernel_inputs = (x2, mask_bias, bigw, w1, w2, vec)           # 6 operands

    def full_spec(a):
        nd = a.ndim
        return pl.BlockSpec(a.shape, lambda i, _nd=nd: (0,) * _nd)

    in_specs = [full_spec(a) for a in kernel_inputs]
    out_specs = pl.BlockSpec((B * S, D_MODEL), lambda i: (0, 0))

    # Advisory cost estimate so XLA can schedule/overlap this latency-bound call.
    flops = N_LAYERS * (
        2 * (B * S) * D_MODEL * (3 * D_MODEL)        # fused QKV projection
        + 4 * B * N_HEADS * S * S * D_K              # scores + p@v
        + 2 * (B * S) * D_MODEL * D_MODEL            # output projection
        + 2 * (B * S) * D_MODEL * D_FF               # FF up
        + 2 * (B * S) * D_FF * D_MODEL)              # FF down
    transcendentals = (N_LAYERS * B * N_HEADS * S * S            # softmax exps
                       + (2 * N_LAYERS + 1) * (B * S))           # LN rsqrt-ish
    bytes_accessed = 4 * (sum(a.size for a in kernel_inputs) + B * S * D_MODEL)

    out = pl.pallas_call(
        encoder_kernel,
        out_shape=jax.ShapeDtypeStruct((B * S, D_MODEL), jnp.float32),
        grid_spec=pltpu.PrefetchScalarGridSpec(
            num_scalar_prefetch=0,
            grid=(1,),                      # single grid step: no pipeline churn
            in_specs=in_specs,
            out_specs=out_specs,
        ),
        compiler_params=pltpu.CompilerParams(
            dimension_semantics=("arbitrary",),
            vmem_limit_bytes=32 * 1024 * 1024),
        cost_estimate=pl.CostEstimate(
            flops=flops,
            transcendentals=transcendentals,
            bytes_accessed=bytes_accessed),
        # x2 is a jit-internal intermediate -> safe to alias with the output,
        # saving an HBM output allocation.
        input_output_aliases={0: 0},
    )(*kernel_inputs)

    return out.reshape(B, S, D_MODEL)


# ========================= pure-JAX reference (check) ========================
def encoder_ref(x, mask, params):
    (ln0a, ln0b, wq, bq, wk, bk, wv, bv, wo, bo,
     ln1a, ln1b, w1, b1, w2, b2, af, bf) = params

    def layernorm(y, a, b):
        mean = jnp.mean(y, axis=-1, keepdims=True)
        var = jnp.sum((y - mean) ** 2, axis=-1, keepdims=True) / (D_MODEL - 1)
        std = jnp.sqrt(var)
        return a * (y - mean) / (std + EPS) + b

    for l in range(N_LAYERS):
        xn = layernorm(x, ln0a[l], ln0b[l])
        q = xn @ wq[l] + bq[l]
        k = xn @ wk[l] + bk[l]
        v = xn @ wv[l] + bv[l]
        qh = q.reshape(B, S, N_HEADS, D_K).transpose(0, 2, 1, 3)
        kh = k.reshape(B, S, N_HEADS, D_K).transpose(0, 2, 1, 3)
        vh = v.reshape(B, S, N_HEADS, D_K).transpose(0, 2, 1, 3)
        scores = jnp.einsum("bhqd,bhkd->bhqk", qh, kh) / math.sqrt(D_K)
        m = mask[:, :, None, :]                     # (B,1,1,S)
        scores = jnp.where(m == 0.0, -1e9, scores)
        p = jax.nn.softmax(scores, axis=-1)
        attn = jnp.einsum("bhqk,bhkd->bhqd", p, vh)
        attn = attn.transpose(0, 2, 1, 3).reshape(B, S, D_MODEL)
        x = x + (attn @ wo[l] + bo[l])

        xn = layernorm(x, ln1a[l], ln1b[l])
        ff = jnp.maximum(xn @ w1[l] + b1[l], 0.0) @ w2[l] + b2[l]
        x = x + ff

    return layernorm(x, af[0], bf[0])


# ================================== main =====================================
def make_params(key):
    ks = jax.random.split(key, 16)
    g = lambda k, shape, s=0.1: (s * jax.random.normal(k, shape)).astype(jnp.float32)
    ln0a = jnp.ones((N_LAYERS, D_MODEL), jnp.float32)
    ln0b = jnp.zeros((N_LAYERS, D_MODEL), jnp.float32)
    ln1a = jnp.ones((N_LAYERS, D_MODEL), jnp.float32)
    ln1b = jnp.zeros((N_LAYERS, D_MODEL), jnp.float32)
    wq = g(ks[0], (N_LAYERS, D_MODEL, D_MODEL)); bq = g(ks[1], (N_LAYERS, D_MODEL))
    wk = g(ks[2], (N_LAYERS, D_MODEL, D_MODEL)); bk = g(ks[3], (N_LAYERS, D_MODEL))
    wv = g(ks[4], (N_LAYERS, D_MODEL, D_MODEL)); bv = g(ks[5], (N_LAYERS, D_MODEL))
    wo = g(ks[6], (N_LAYERS, D_MODEL, D_MODEL)); bo = g(ks[7], (N_LAYERS, D_MODEL))
    w1 = g(ks[8], (N_LAYERS, D_MODEL, D_FF));    b1 = g(ks[9], (N_LAYERS, D_FF))
    w2 = g(ks[10], (N_LAYERS, D_FF, D_MODEL));   b2 = g(ks[11], (N_LAYERS, D_MODEL))
    af = jnp.ones((1, D_MODEL), jnp.float32)
    bf = jnp.zeros((1, D_MODEL), jnp.float32)
    return (ln0a, ln0b, wq, bq, wk, bk, wv, bv, wo, bo,
            ln1a, ln1b, w1, b1, w2, b2, af, bf)


if __name__ == "__main__":
    key = jax.random.PRNGKey(0)
    kx, kp = jax.random.split(key)

    x = jax.random.normal(kx, (B, S, D_MODEL), jnp.float32)
    # mask: (B, 1, S); mask out the last two positions of the second example
    mask = jnp.ones((B, 1, S), jnp.float32)
    mask = mask.at[1, 0, S - 2:].set(0.0)

    params = make_params(kp)

    out = encoder_pallas(x, mask, params)
    out = jax.block_until_ready(out)

    ref = jax.block_until_ready(encoder_ref(x, mask, params))
    assert out.shape == (B, S, D_MODEL)
    assert jnp.allclose(out, ref, atol=1e-4, rtol=1e-4), (
        float(jnp.max(jnp.abs(out - ref))))

    print("KERNEL_OK")
</pallas_src>

<mosaic_0001>
module attributes {stable_mosaic.version = 11 : i64} {
  func.func @encoder_kernel(%arg0: i32, %arg1: memref<16x32xf32, #tpu.memory_space<vmem>>, %arg2: memref<2x1x8xf32, #tpu.memory_space<vmem>>, %arg3: memref<2x32x128xf32, #tpu.memory_space<vmem>>, %arg4: memref<2x32x64xf32, #tpu.memory_space<vmem>>, %arg5: memref<2x64x32xf32, #tpu.memory_space<vmem>>, %arg6: memref<18x128xf32, #tpu.memory_space<vmem>>, %arg7: memref<16x32xf32, #tpu.memory_space<vmem>>) attributes {dimension_semantics = [#tpu.dimension_semantics<arbitrary>], iteration_bounds = array<i64: 1>, scalar_prefetch = 0 : i64, scratch_operands = 0 : i64, tpu.core_type = #tpu.core_type<tc>, window_params = [{pipeline_mode = #tpu.pipeline_mode<synchronous>, transform_indices = @transform_0, window_bounds = array<i64: 16, 32>}, {pipeline_mode = #tpu.pipeline_mode<synchronous>, transform_indices = @transform_1, window_bounds = array<i64: 2, 1, 8>}, {pipeline_mode = #tpu.pipeline_mode<synchronous>, transform_indices = @transform_2, window_bounds = array<i64: 2, 32, 128>}, {pipeline_mode = #tpu.pipeline_mode<synchronous>, transform_indices = @transform_3, window_bounds = array<i64: 2, 32, 64>}, {pipeline_mode = #tpu.pipeline_mode<synchronous>, transform_indices = @transform_4, window_bounds = array<i64: 2, 64, 32>}, {pipeline_mode = #tpu.pipeline_mode<synchronous>, transform_indices = @transform_5, window_bounds = array<i64: 18, 128>}, {pipeline_mode = #tpu.pipeline_mode<synchronous>, transform_indices = @transform_6, window_bounds = array<i64: 16, 32>}]} {
    %c0 = arith.constant 0 : index
    %c0_0 = arith.constant 0 : index
    %0 = vector.load %arg1[%c0, %c0_0] : memref<16x32xf32, #tpu.memory_space<vmem>>, vector<16x32xf32>
    %c0_1 = arith.constant 0 : index
    %c0_2 = arith.constant 0 : index
    %c0_3 = arith.constant 0 : index
    %1 = vector.load %arg2[%c0_1, %c0_2, %c0_3] : memref<2x1x8xf32, #tpu.memory_space<vmem>>, vector<2x1x8xf32>
    %c2 = arith.constant 2 : index
    %c0_4 = arith.constant 0 : index
    %2 = vector.load %arg6[%c2, %c0_4] : memref<18x128xf32, #tpu.memory_space<vmem>>, vector<1x128xf32>
    %3 = vector.shape_cast %2 : vector<1x128xf32> to vector<128xf32>
    %4 = vector.extract_strided_slice %3 {offsets = [0], sizes = [32], strides = [1]} : vector<128xf32> to vector<32xf32>
    %c3 = arith.constant 3 : index
    %c0_5 = arith.constant 0 : index
    %5 = vector.load %arg6[%c3, %c0_5] : memref<18x128xf32, #tpu.memory_space<vmem>>, vector<1x128xf32>
    %6 = vector.shape_cast %5 : vector<1x128xf32> to vector<128xf32>
    %7 = vector.extract_strided_slice %6 {offsets = [0], sizes = [32], strides = [1]} : vector<128xf32> to vector<32xf32>
    %c4 = arith.constant 4 : index
    %c0_6 = arith.constant 0 : index
    %8 = vector.load %arg6[%c4, %c0_6] : memref<18x128xf32, #tpu.memory_space<vmem>>, vector<1x128xf32>
    %9 = vector.shape_cast %8 : vector<1x128xf32> to vector<128xf32>
    %10 = vector.extract_strided_slice %9 {offsets = [0], sizes = [96], strides = [1]} : vector<128xf32> to vector<96xf32>
    %c5 = arith.constant 5 : index
    %c0_7 = arith.constant 0 : index
    %11 = vector.load %arg6[%c5, %c0_7] : memref<18x128xf32, #tpu.memory_space<vmem>>, vector<1x128xf32>
    %12 = vector.shape_cast %11 : vector<1x128xf32> to vector<128xf32>
    %13 = vector.extract_strided_slice %12 {offsets = [0], sizes = [32], strides = [1]} : vector<128xf32> to vector<32xf32>
    %c6 = arith.constant 6 : index
    %c0_8 = arith.constant 0 : index
    %14 = vector.load %arg6[%c6, %c0_8] : memref<18x128xf32, #tpu.memory_space<vmem>>, vector<1x128xf32>
    %15 = vector.shape_cast %14 : vector<1x128xf32> to vector<128xf32>
    %16 = vector.extract_strided_slice %15 {offsets = [0], sizes = [32], strides = [1]} : vector<128xf32> to vector<32xf32>
    %c7 = arith.constant 7 : index
    %c0_9 = arith.constant 0 : index
    %17 = vector.load %arg6[%c7, %c0_9] : memref<18x128xf32, #tpu.memory_space<vmem>>, vector<1x128xf32>
    %18 = vector.shape_cast %17 : vector<1x128xf32> to vector<128xf32>
    %19 = vector.extract_strided_slice %18 {offsets = [0], sizes = [32], strides = [1]} : vector<128xf32> to vector<32xf32>
    %c8 = arith.constant 8 : index
    %c0_10 = arith.constant 0 : index
    %20 = vector.load %arg6[%c8, %c0_10] : memref<18x128xf32, #tpu.memory_space<vmem>>, vector<1x128xf32>
    %21 = vector.shape_cast %20 : vector<1x128xf32> to vector<128xf32>
    %22 = vector.extract_strided_slice %21 {offsets = [0], sizes = [64], strides = [1]} : vector<128xf32> to vector<64xf32>
    %c9 = arith.constant 9 : index
    %c0_11 = arith.constant 0 : index
    %23 = vector.load %arg6[%c9, %c0_11] : memref<18x128xf32, #tpu.memory_space<vmem>>, vector<1x128xf32>
    %24 = vector.shape_cast %23 : vector<1x128xf32> to vector<128xf32>
    %25 = vector.extract_strided_slice %24 {offsets = [0], sizes = [32], strides = [1]} : vector<128xf32> to vector<32xf32>
    %c0_12 = arith.constant 0 : index
    %c0_13 = arith.constant 0 : index
    %c0_14 = arith.constant 0 : index
    %26 = vector.load %arg3[%c0_12, %c0_13, %c0_14] : memref<2x32x128xf32, #tpu.memory_space<vmem>>, vector<1x32x128xf32>
    %27 = vector.shape_cast %26 : vector<1x32x128xf32> to vector<32x128xf32>
    %28 = vector.extract_strided_slice %27 {offsets = [0, 0], sizes = [32, 96], strides = [1, 1]} : vector<32x128xf32> to vector<32x96xf32>
    %29 = vector.extract_strided_slice %27 {offsets = [0, 96], sizes = [32, 32], strides = [1, 1]} : vector<32x128xf32> to vector<32x32xf32>
    %cst = arith.constant dense<0.000000e+00> : vector<16xf32>
    %30 = vector.multi_reduction <add>, %0, %cst [1] : vector<16x32xf32> to vector<16xf32>
    %31 = vector.shape_cast %30 : vector<16xf32> to vector<16x1xf32>
    %cst_15 = arith.constant 3.200000e+01 : f32
    %32 = vector.broadcast %cst_15 : f32 to vector<16x1xf32>
    %33 = arith.divf %31, %32 : vector<16x1xf32>
    %34 = vector.broadcast %33 : vector<16x1xf32> to vector<16x32xf32>
    %35 = arith.subf %0, %34 : vector<16x32xf32>
    %36 = arith.mulf %35, %35 : vector<16x32xf32>
    %cst_16 = arith.constant dense<0.000000e+00> : vector<16xf32>
    %37 = vector.multi_reduction <add>, %36, %cst_16 [1] : vector<16x32xf32> to vector<16xf32>
    %38 = vector.shape_cast %37 : vector<16xf32> to vector<16x1xf32>
    %cst_17 = arith.constant 0.0322580636 : f32
    %39 = vector.broadcast %cst_17 : f32 to vector<16x1xf32>
    %40 = arith.mulf %38, %39 : vector<16x1xf32>
    %41 = math.sqrt %40 : vector<16x1xf32>
    %cst_18 = arith.constant 9.99999997E-7 : f32
    %42 = vector.broadcast %cst_18 : f32 to vector<16x1xf32>
    %43 = arith.addf %41, %42 : vector<16x1xf32>
    %44 = tpu.reciprocal %43 : vector<16x1xf32> -> vector<16x1xf32>
    %45 = vector.broadcast %33 : vector<16x1xf32> to vector<16x32xf32>
    %46 = arith.subf %0, %45 : vector<16x32xf32>
    %47 = vector.broadcast %44 : vector<16x1xf32> to vector<16x32xf32>
    %48 = arith.mulf %46, %47 : vector<16x32xf32>
    %49 = vector.shape_cast %4 : vector<32xf32> to vector<1x32xf32>
    %50 = vector.broadcast %49 : vector<1x32xf32> to vector<16x32xf32>
    %51 = arith.mulf %50, %48 : vector<16x32xf32>
    %52 = vector.shape_cast %7 : vector<32xf32> to vector<1x32xf32>
    %53 = vector.broadcast %52 : vector<1x32xf32> to vector<16x32xf32>
    %54 = arith.addf %51, %53 : vector<16x32xf32>
    %cst_19 = arith.constant dense<0.000000e+00> : vector<16x96xf32>
    %55 = tpu.matmul %54, %28, %cst_19 {dimension_numbers = #tpu.dot_dimension_numbers<[1], [0], [0], [1], [0, 0, 1, 1], [], []>} : vector<16x32xf32>, vector<32x96xf32>, vector<16x96xf32> -> vector<16x96xf32>
    %56 = vector.shape_cast %10 : vector<96xf32> to vector<1x96xf32>
    %57 = vector.broadcast %56 : vector<1x96xf32> to vector<16x96xf32>
    %58 = arith.addf %55, %57 : vector<16x96xf32>
    %59 = vector.extract_strided_slice %58 {offsets = [0, 0], sizes = [16, 32], strides = [1, 1]} : vector<16x96xf32> to vector<16x32xf32>
    %60 = vector.extract_strided_slice %58 {offsets = [0, 32], sizes = [16, 32], strides = [1, 1]} : vector<16x96xf32> to vector<16x32xf32>
    %61 = vector.extract_strided_slice %58 {offsets = [0, 64], sizes = [16, 32], strides = [1, 1]} : vector<16x96xf32> to vector<16x32xf32>
    %cst_20 = arith.constant 0.000000e+00 : f32
    %62 = vector.broadcast %cst_20 : f32 to vector<16x32xf32>
    %63 = vector.extract_strided_slice %59 {offsets = [0, 0], sizes = [16, 8], strides = [1, 1]} : vector<16x32xf32> to vector<16x8xf32>
    %64 = vector.shape_cast %63 : vector<16x8xf32> to vector<2x8x8xf32>
    %65 = vector.extract_strided_slice %60 {offsets = [0, 0], sizes = [16, 8], strides = [1, 1]} : vector<16x32xf32> to vector<16x8xf32>
    %66 = vector.shape_cast %65 : vector<16x8xf32> to vector<2x8x8xf32>
    %67 = vector.extract_strided_slice %61 {offsets = [0, 0], sizes = [16, 8], strides = [1, 1]} : vector<16x32xf32> to vector<16x8xf32>
    %68 = vector.shape_cast %67 : vector<16x8xf32> to vector<2x8x8xf32>
    "tpu.trace_start"() <{level = 10 : i32, message = "bqd,bkd->bqk"}> : () -> ()
    %cst_21 = arith.constant dense<0.000000e+00> : vector<2x8x8xf32>
    %69 = tpu.matmul %64, %66, %cst_21 {dimension_numbers = #tpu.dot_dimension_numbers<[2], [2], [1], [1], [0, 0, 0, 1, 1, 1], [0], [0]>} : vector<2x8x8xf32>, vector<2x8x8xf32>, vector<2x8x8xf32> -> vector<2x8x8xf32>
    "tpu.trace_stop"() : () -> ()
    %70 = vector.broadcast %1 : vector<2x1x8xf32> to vector<2x8x8xf32>
    %71 = arith.addf %69, %70 : vector<2x8x8xf32>
    %cst_22 = arith.constant dense<0xFF800000> : vector<2x8xf32>
    %72 = vector.multi_reduction <maximumf>, %71, %cst_22 [2] : vector<2x8x8xf32> to vector<2x8xf32>
    %cst_23 = arith.constant 0xFF800000 : f32
    %73 = vector.broadcast %cst_23 : f32 to vector<2x8xf32>
    %74 = arith.maximumf %73, %72 : vector<2x8xf32>
    %75 = vector.shape_cast %74 : vector<2x8xf32> to vector<2x8x1xf32>
    %76 = vector.broadcast %75 : vector<2x8x1xf32> to vector<2x8x8xf32>
    %77 = arith.subf %71, %76 : vector<2x8x8xf32>
    %78 = math.exp %77 : vector<2x8x8xf32>
    %cst_24 = arith.constant dense<0.000000e+00> : vector<2x8xf32>
    %79 = vector.multi_reduction <add>, %78, %cst_24 [2] : vector<2x8x8xf32> to vector<2x8xf32>
    %80 = vector.shape_cast %79 : vector<2x8xf32> to vector<2x8x1xf32>
    %81 = vector.broadcast %80 : vector<2x8x1xf32> to vector<2x8x8xf32>
    %82 = arith.divf %78, %81 : vector<2x8x8xf32>
    "tpu.trace_start"() <{level = 10 : i32, message = "bqk,bkd->bqd"}> : () -> ()
    %cst_25 = arith.constant dense<0.000000e+00> : vector<2x8x8xf32>
    %83 = tpu.matmul %82, %68, %cst_25 {dimension_numbers = #tpu.dot_dimension_numbers<[2], [1], [1], [2], [0, 0, 0, 1, 1, 2], [0], [0]>} : vector<2x8x8xf32>, vector<2x8x8xf32>, vector<2x8x8xf32> -> vector<2x8x8xf32>
    "tpu.trace_stop"() : () -> ()
    %84 = vector.shape_cast %83 : vector<2x8x8xf32> to vector<16x8xf32>
    %85 = vector.extract_strided_slice %29 {offsets = [0, 0], sizes = [8, 32], strides = [1, 1]} : vector<32x32xf32> to vector<8x32xf32>
    %cst_26 = arith.constant dense<0.000000e+00> : vector<16x32xf32>
    %86 = tpu.matmul %84, %85, %cst_26 {dimension_numbers = #tpu.dot_dimension_numbers<[1], [0], [0], [1], [0, 0, 1, 1], [], []>} : vector<16x8xf32>, vector<8x32xf32>, vector<16x32xf32> -> vector<16x32xf32>
    %87 = arith.addf %62, %86 : vector<16x32xf32>
    %88 = vector.extract_strided_slice %59 {offsets = [0, 8], sizes = [16, 8], strides = [1, 1]} : vector<16x32xf32> to vector<16x8xf32>
    %89 = vector.shape_cast %88 : vector<16x8xf32> to vector<2x8x8xf32>
    %90 = vector.extract_strided_slice %60 {offsets = [0, 8], sizes = [16, 8], strides = [1, 1]} : vector<16x32xf32> to vector<16x8xf32>
    %91 = vector.shape_cast %90 : vector<16x8xf32> to vector<2x8x8xf32>
    %92 = vector.extract_strided_slice %61 {offsets = [0, 8], sizes = [16, 8], strides = [1, 1]} : vector<16x32xf32> to vector<16x8xf32>
    %93 = vector.shape_cast %92 : vector<16x8xf32> to vector<2x8x8xf32>
    "tpu.trace_start"() <{level = 10 : i32, message = "bqd,bkd->bqk"}> : () -> ()
    %cst_27 = arith.constant dense<0.000000e+00> : vector<2x8x8xf32>
    %94 = tpu.matmul %89, %91, %cst_27 {dimension_numbers = #tpu.dot_dimension_numbers<[2], [2], [1], [1], [0, 0, 0, 1, 1, 1], [0], [0]>} : vector<2x8x8xf32>, vector<2x8x8xf32>, vector<2x8x8xf32> -> vector<2x8x8xf32>
    "tpu.trace_stop"() : () -> ()
    %95 = vector.broadcast %1 : vector<2x1x8xf32> to vector<2x8x8xf32>
    %96 = arith.addf %94, %95 : vector<2x8x8xf32>
    %cst_28 = arith.constant dense<0xFF800000> : vector<2x8xf32>
    %97 = vector.multi_reduction <maximumf>, %96, %cst_28 [2] : vector<2x8x8xf32> to vector<2x8xf32>
    %cst_29 = arith.constant 0xFF800000 : f32
    %98 = vector.broadcast %cst_29 : f32 to vector<2x8xf32>
    %99 = arith.maximumf %98, %97 : vector<2x8xf32>
    %100 = vector.shape_cast %99 : vector<2x8xf32> to vector<2x8x1xf32>
    %101 = vector.broadcast %100 : vector<2x8x1xf32> to vector<2x8x8xf32>
    %102 = arith.subf %96, %101 : vector<2x8x8xf32>
    %103 = math.exp %102 : vector<2x8x8xf32>
    %cst_30 = arith.constant dense<0.000000e+00> : vector<2x8xf32>
    %104 = vector.multi_reduction <add>, %103, %cst_30 [2] : vector<2x8x8xf32> to vector<2x8xf32>
    %105 = vector.shape_cast %104 : vector<2x8xf32> to vector<2x8x1xf32>
    %106 = vector.broadcast %105 : vector<2x8x1xf32> to vector<2x8x8xf32>
    %107 = arith.divf %103, %106 : vector<2x8x8xf32>
    "tpu.trace_start"() <{level = 10 : i32, message = "bqk,bkd->bqd"}> : () -> ()
    %cst_31 = arith.constant dense<0.000000e+00> : vector<2x8x8xf32>
    %108 = tpu.matmul %107, %93, %cst_31 {dimension_numbers = #tpu.dot_dimension_numbers<[2], [1], [1], [2], [0, 0, 0, 1, 1, 2], [0], [0]>} : vector<2x8x8xf32>, vector<2x8x8xf32>, vector<2x8x8xf32> -> vector<2x8x8xf32>
    "tpu.trace_stop"() : () -> ()
    %109 = vector.shape_cast %108 : vector<2x8x8xf32> to vector<16x8xf32>
    %110 = vector.extract_strided_slice %29 {offsets = [8, 0], sizes = [8, 32], strides = [1, 1]} : vector<32x32xf32> to vector<8x32xf32>
    %cst_32 = arith.constant dense<0.000000e+00> : vector<16x32xf32>
    %111 = tpu.matmul %109, %110, %cst_32 {dimension_numbers = #tpu.dot_dimension_numbers<[1], [0], [0], [1], [0, 0, 1, 1], [], []>} : vector<16x8xf32>, vector<8x32xf32>, vector<16x32xf32> -> vector<16x32xf32>
    %112 = arith.addf %87, %111 : vector<16x32xf32>
    %113 = vector.extract_strided_slice %59 {offsets = [0, 16], sizes = [16, 8], strides = [1, 1]} : vector<16x32xf32> to vector<16x8xf32>
    %114 = vector.shape_cast %113 : vector<16x8xf32> to vector<2x8x8xf32>
    %115 = vector.extract_strided_slice %60 {offsets = [0, 16], sizes = [16, 8], strides = [1, 1]} : vector<16x32xf32> to vector<16x8xf32>
    %116 = vector.shape_cast %115 : vector<16x8xf32> to vector<2x8x8xf32>
    %117 = vector.extract_strided_slice %61 {offsets = [0, 16], sizes = [16, 8], strides = [1, 1]} : vector<16x32xf32> to vector<16x8xf32>
    %118 = vector.shape_cast %117 : vector<16x8xf32> to vector<2x8x8xf32>
    "tpu.trace_start"() <{level = 10 : i32, message = "bqd,bkd->bqk"}> : () -> ()
    %cst_33 = arith.constant dense<0.000000e+00> : vector<2x8x8xf32>
    %119 = tpu.matmul %114, %116, %cst_33 {dimension_numbers = #tpu.dot_dimension_numbers<[2], [2], [1], [1], [0, 0, 0, 1, 1, 1], [0], [0]>} : vector<2x8x8xf32>, vector<2x8x8xf32>, vector<2x8x8xf32> -> vector<2x8x8xf32>
    "tpu.trace_stop"() : () -> ()
    %120 = vector.broadcast %1 : vector<2x1x8xf32> to vector<2x8x8xf32>
    %121 = arith.addf %119, %120 : vector<2x8x8xf32>
    %cst_34 = arith.constant dense<0xFF800000> : vector<2x8xf32>
    %122 = vector.multi_reduction <maximumf>, %121, %cst_34 [2] : vector<2x8x8xf32> to vector<2x8xf32>
    %cst_35 = arith.constant 0xFF800000 : f32
    %123 = vector.broadcast %cst_35 : f32 to vector<2x8xf32>
    %124 = arith.maximumf %123, %122 : vector<2x8xf32>
    %125 = vector.shape_cast %124 : vector<2x8xf32> to vector<2x8x1xf32>
    %126 = vector.broadcast %125 : vector<2x8x1xf32> to vector<2x8x8xf32>
    %127 = arith.subf %121, %126 : vector<2x8x8xf32>
    %128 = math.exp %127 : vector<2x8x8xf32>
    %cst_36 = arith.constant dense<0.000000e+00> : vector<2x8xf32>
    %129 = vector.multi_reduction <add>, %128, %cst_36 [2] : vector<2x8x8xf32> to vector<2x8xf32>
    %130 = vector.shape_cast %129 : vector<2x8xf32> to vector<2x8x1xf32>
    %131 = vector.broadcast %130 : vector<2x8x1xf32> to vector<2x8x8xf32>
    %132 = arith.divf %128, %131 : vector<2x8x8xf32>
    "tpu.trace_start"() <{level = 10 : i32, message = "bqk,bkd->bqd"}> : () -> ()
    %cst_37 = arith.constant dense<0.000000e+00> : vector<2x8x8xf32>
    %133 = tpu.matmul %132, %118, %cst_37 {dimension_numbers = #tpu.dot_dimension_numbers<[2], [1], [1], [2], [0, 0, 0, 1, 1, 2], [0], [0]>} : vector<2x8x8xf32>, vector<2x8x8xf32>, vector<2x8x8xf32> -> vector<2x8x8xf32>
    "tpu.trace_stop"() : () -> ()
    %134 = vector.shape_cast %133 : vector<2x8x8xf32> to vector<16x8xf32>
    %135 = vector.extract_strided_slice %29 {offsets = [16, 0], sizes = [8, 32], strides = [1, 1]} : vector<32x32xf32> to vector<8x32xf32>
    %cst_38 = arith.constant dense<0.000000e+00> : vector<16x32xf32>
    %136 = tpu.matmul %134, %135, %cst_38 {dimension_numbers = #tpu.dot_dimension_numbers<[1], [0], [0], [1], [0, 0, 1, 1], [], []>} : vector<16x8xf32>, vector<8x32xf32>, vector<16x32xf32> -> vector<16x32xf32>
    %137 = arith.addf %112, %136 : vector<16x32xf32>
    %138 = vector.extract_strided_slice %59 {offsets = [0, 24], sizes = [16, 8], strides = [1, 1]} : vector<16x32xf32> to vector<16x8xf32>
    %139 = vector.shape_cast %138 : vector<16x8xf32> to vector<2x8x8xf32>
    %140 = vector.extract_strided_slice %60 {offsets = [0, 24], sizes = [16, 8], strides = [1, 1]} : vector<16x32xf32> to vector<16x8xf32>
    %141 = vector.shape_cast %140 : vector<16x8xf32> to vector<2x8x8xf32>
    %142 = vector.extract_strided_slice %61 {offsets = [0, 24], sizes = [16, 8], strides = [1, 1]} : vector<16x32xf32> to vector<16x8xf32>
    %143 = vector.shape_cast %142 : vector<16x8xf32> to vector<2x8x8xf32>
    "tpu.trace_start"() <{level = 10 : i32, message = "bqd,bkd->bqk"}> : () -> ()
    %cst_39 = arith.constant dense<0.000000e+00> : vector<2x8x8xf32>
    %144 = tpu.matmul %139, %141, %cst_39 {dimension_numbers = #tpu.dot_dimension_numbers<[2], [2], [1], [1], [0, 0, 0, 1, 1, 1], [0], [0]>} : vector<2x8x8xf32>, vector<2x8x8xf32>, vector<2x8x8xf32> -> vector<2x8x8xf32>
    "tpu.trace_stop"() : () -> ()
    %145 = vector.broadcast %1 : vector<2x1x8xf32> to vector<2x8x8xf32>
    %146 = arith.addf %144, %145 : vector<2x8x8xf32>
    %cst_40 = arith.constant dense<0xFF800000> : vector<2x8xf32>
    %147 = vector.multi_reduction <maximumf>, %146, %cst_40 [2] : vector<2x8x8xf32> to vector<2x8xf32>
    %cst_41 = arith.constant 0xFF800000 : f32
    %148 = vector.broadcast %cst_41 : f32 to vector<2x8xf32>
    %149 = arith.maximumf %148, %147 : vector<2x8xf32>
    %150 = vector.shape_cast %149 : vector<2x8xf32> to vector<2x8x1xf32>
    %151 = vector.broadcast %150 : vector<2x8x1xf32> to vector<2x8x8xf32>
    %152 = arith.subf %146, %151 : vector<2x8x8xf32>
    %153 = math.exp %152 : vector<2x8x8xf32>
    %cst_42 = arith.constant dense<0.000000e+00> : vector<2x8xf32>
    %154 = vector.multi_reduction <add>, %153, %cst_42 [2] : vector<2x8x8xf32> to vector<2x8xf32>
    %155 = vector.shape_cast %154 : vector<2x8xf32> to vector<2x8x1xf32>
    %156 = vector.broadcast %155 : vector<2x8x1xf32> to vector<2x8x8xf32>
    %157 = arith.divf %153, %156 : vector<2x8x8xf32>
    "tpu.trace_start"() <{level = 10 : i32, message = "bqk,bkd->bqd"}> : () -> ()
    %cst_43 = arith.constant dense<0.000000e+00> : vector<2x8x8xf32>
    %158 = tpu.matmul %157, %143, %cst_43 {dimension_numbers = #tpu.dot_dimension_numbers<[2], [1], [1], [2], [0, 0, 0, 1, 1, 2], [0], [0]>} : vector<2x8x8xf32>, vector<2x8x8xf32>, vector<2x8x8xf32> -> vector<2x8x8xf32>
    "tpu.trace_stop"() : () -> ()
    %159 = vector.shape_cast %158 : vector<2x8x8xf32> to vector<16x8xf32>
    %160 = vector.extract_strided_slice %29 {offsets = [24, 0], sizes = [8, 32], strides = [1, 1]} : vector<32x32xf32> to vector<8x32xf32>
    %cst_44 = arith.constant dense<0.000000e+00> : vector<16x32xf32>
    %161 = tpu.matmul %159, %160, %cst_44 {dimension_numbers = #tpu.dot_dimension_numbers<[1], [0], [0], [1], [0, 0, 1, 1], [], []>} : vector<16x8xf32>, vector<8x32xf32>, vector<16x32xf32> -> vector<16x32xf32>
    %162 = arith.addf %137, %161 : vector<16x32xf32>
    %163 = arith.addf %0, %162 : vector<16x32xf32>
    %164 = vector.shape_cast %13 : vector<32xf32> to vector<1x32xf32>
    %165 = vector.broadcast %164 : vector<1x32xf32> to vector<16x32xf32>
    %166 = arith.addf %163, %165 : vector<16x32xf32>
    %cst_45 = arith.constant dense<0.000000e+00> : vector<16xf32>
    %167 = vector.multi_reduction <add>, %166, %cst_45 [1] : vector<16x32xf32> to vector<16xf32>
    %168 = vector.shape_cast %167 : vector<16xf32> to vector<16x1xf32>
    %cst_46 = arith.constant 3.200000e+01 : f32
    %169 = vector.broadcast %cst_46 : f32 to vector<16x1xf32>
    %170 = arith.divf %168, %169 : vector<16x1xf32>
    %171 = vector.broadcast %170 : vector<16x1xf32> to vector<16x32xf32>
    %172 = arith.subf %166, %171 : vector<16x32xf32>
    %173 = arith.mulf %172, %172 : vector<16x32xf32>
    %cst_47 = arith.constant dense<0.000000e+00> : vector<16xf32>
    %174 = vector.multi_reduction <add>, %173, %cst_47 [1] : vector<16x32xf32> to vector<16xf32>
    %175 = vector.shape_cast %174 : vector<16xf32> to vector<16x1xf32>
    %cst_48 = arith.constant 0.0322580636 : f32
    %176 = vector.broadcast %cst_48 : f32 to vector<16x1xf32>
    %177 = arith.mulf %175, %176 : vector<16x1xf32>
    %178 = math.sqrt %177 : vector<16x1xf32>
    %cst_49 = arith.constant 9.99999997E-7 : f32
    %179 = vector.broadcast %cst_49 : f32 to vector<16x1xf32>
    %180 = arith.addf %178, %179 : vector<16x1xf32>
    %181 = tpu.reciprocal %180 : vector<16x1xf32> -> vector<16x1xf32>
    %182 = vector.broadcast %170 : vector<16x1xf32> to vector<16x32xf32>
    %183 = arith.subf %166, %182 : vector<16x32xf32>
    %184 = vector.broadcast %181 : vector<16x1xf32> to vector<16x32xf32>
    %185 = arith.mulf %183, %184 : vector<16x32xf32>
    %186 = vector.shape_cast %16 : vector<32xf32> to vector<1x32xf32>
    %187 = vector.broadcast %186 : vector<1x32xf32> to vector<16x32xf32>
    %188 = arith.mulf %187, %185 : vector<16x32xf32>
    %189 = vector.shape_cast %19 : vector<32xf32> to vector<1x32xf32>
    %190 = vector.broadcast %189 : vector<1x32xf32> to vector<16x32xf32>
    %191 = arith.addf %188, %190 : vector<16x32xf32>
    %c0_50 = arith.constant 0 : index
    %c0_51 = arith.constant 0 : index
    %c0_52 = arith.constant 0 : index
    %192 = vector.load %arg4[%c0_50, %c0_51, %c0_52] : memref<2x32x64xf32, #tpu.memory_space<vmem>>, vector<1x32x64xf32>
    %193 = vector.shape_cast %192 : vector<1x32x64xf32> to vector<32x64xf32>
    %cst_53 = arith.constant dense<0.000000e+00> : vector<16x64xf32>
    %194 = tpu.matmul %191, %193, %cst_53 {dimension_numbers = #tpu.dot_dimension_numbers<[1], [0], [0], [1], [0, 0, 1, 1], [], []>} : vector<16x32xf32>, vector<32x64xf32>, vector<16x64xf32> -> vector<16x64xf32>
    %195 = vector.shape_cast %22 : vector<64xf32> to vector<1x64xf32>
    %196 = vector.broadcast %195 : vector<1x64xf32> to vector<16x64xf32>
    %197 = arith.addf %194, %196 : vector<16x64xf32>
    %cst_54 = arith.constant 0.000000e+00 : f32
    %198 = vector.broadcast %cst_54 : f32 to vector<16x64xf32>
    %199 = arith.maximumf %197, %198 : vector<16x64xf32>
    %c0_55 = arith.constant 0 : index
    %c0_56 = arith.constant 0 : index
    %c0_57 = arith.constant 0 : index
    %200 = vector.load %arg5[%c0_55, %c0_56, %c0_57] : memref<2x64x32xf32, #tpu.memory_space<vmem>>, vector<1x64x32xf32>
    %201 = vector.shape_cast %200 : vector<1x64x32xf32> to vector<64x32xf32>
    %cst_58 = arith.constant dense<0.000000e+00> : vector<16x32xf32>
    %202 = tpu.matmul %199, %201, %cst_58 {dimension_numbers = #tpu.dot_dimension_numbers<[1], [0], [0], [1], [0, 0, 1, 1], [], []>} : vector<16x64xf32>, vector<64x32xf32>, vector<16x32xf32> -> vector<16x32xf32>
    %203 = vector.shape_cast %25 : vector<32xf32> to vector<1x32xf32>
    %204 = vector.broadcast %203 : vector<1x32xf32> to vector<16x32xf32>
    %205 = arith.addf %202, %204 : vector<16x32xf32>
    %206 = arith.addf %166, %205 : vector<16x32xf32>
    %c10 = arith.constant 10 : index
    %c0_59 = arith.constant 0 : index
    %207 = vector.load %arg6[%c10, %c0_59] : memref<18x128xf32, #tpu.memory_space<vmem>>, vector<1x128xf32>
    %208 = vector.shape_cast %207 : vector<1x128xf32> to vector<128xf32>
    %209 = vector.extract_strided_slice %208 {offsets = [0], sizes = [32], strides = [1]} : vector<128xf32> to vector<32xf32>
    %c11 = arith.constant 11 : index
    %c0_60 = arith.constant 0 : index
    %210 = vector.load %arg6[%c11, %c0_60] : memref<18x128xf32, #tpu.memory_space<vmem>>, vector<1x128xf32>
    %211 = vector.shape_cast %210 : vector<1x128xf32> to vector<128xf32>
    %212 = vector.extract_strided_slice %211 {offsets = [0], sizes = [32], strides = [1]} : vector<128xf32> to vector<32xf32>
    %c12 = arith.constant 12 : index
    %c0_61 = arith.constant 0 : index
    %213 = vector.load %arg6[%c12, %c0_61] : memref<18x128xf32, #tpu.memory_space<vmem>>, vector<1x128xf32>
    %214 = vector.shape_cast %213 : vector<1x128xf32> to vector<128xf32>
    %215 = vector.extract_strided_slice %214 {offsets = [0], sizes = [96], strides = [1]} : vector<128xf32> to vector<96xf32>
    %c13 = arith.constant 13 : index
    %c0_62 = arith.constant 0 : index
    %216 = vector.load %arg6[%c13, %c0_62] : memref<18x128xf32, #tpu.memory_space<vmem>>, vector<1x128xf32>
    %217 = vector.shape_cast %216 : vector<1x128xf32> to vector<128xf32>
    %218 = vector.extract_strided_slice %217 {offsets = [0], sizes = [32], strides = [1]} : vector<128xf32> to vector<32xf32>
    %c14 = arith.constant 14 : index
    %c0_63 = arith.constant 0 : index
    %219 = vector.load %arg6[%c14, %c0_63] : memref<18x128xf32, #tpu.memory_space<vmem>>, vector<1x128xf32>
    %220 = vector.shape_cast %219 : vector<1x128xf32> to vector<128xf32>
    %221 = vector.extract_strided_slice %220 {offsets = [0], sizes = [32], strides = [1]} : vector<128xf32> to vector<32xf32>
    %c15 = arith.constant 15 : index
    %c0_64 = arith.constant 0 : index
    %222 = vector.load %arg6[%c15, %c0_64] : memref<18x128xf32, #tpu.memory_space<vmem>>, vector<1x128xf32>
    %223 = vector.shape_cast %222 : vector<1x128xf32> to vector<128xf32>
    %224 = vector.extract_strided_slice %223 {offsets = [0], sizes = [32], strides = [1]} : vector<128xf32> to vector<32xf32>
    %c16 = arith.constant 16 : index
    %c0_65 = arith.constant 0 : index
    %225 = vector.load %arg6[%c16, %c0_65] : memref<18x128xf32, #tpu.memory_space<vmem>>, vector<1x128xf32>
    %226 = vector.shape_cast %225 : vector<1x128xf32> to vector<128xf32>
    %227 = vector.extract_strided_slice %226 {offsets = [0], sizes = [64], strides = [1]} : vector<128xf32> to vector<64xf32>
    %c17 = arith.constant 17 : index
    %c0_66 = arith.constant 0 : index
    %228 = vector.load %arg6[%c17, %c0_66] : memref<18x128xf32, #tpu.memory_space<vmem>>, vector<1x128xf32>
    %229 = vector.shape_cast %228 : vector<1x128xf32> to vector<128xf32>
    %230 = vector.extract_strided_slice %229 {offsets = [0], sizes = [32], strides = [1]} : vector<128xf32> to vector<32xf32>
    %c1 = arith.constant 1 : index
    %c0_67 = arith.constant 0 : index
    %c0_68 = arith.constant 0 : index
    %231 = vector.load %arg3[%c1, %c0_67, %c0_68] : memref<2x32x128xf32, #tpu.memory_space<vmem>>, vector<1x32x128xf32>
    %232 = vector.shape_cast %231 : vector<1x32x128xf32> to vector<32x128xf32>
    %233 = vector.extract_strided_slice %232 {offsets = [0, 0], sizes = [32, 96], strides = [1, 1]} : vector<32x128xf32> to vector<32x96xf32>
    %234 = vector.extract_strided_slice %232 {offsets = [0, 96], sizes = [32, 32], strides = [1, 1]} : vector<32x128xf32> to vector<32x32xf32>
    %cst_69 = arith.constant dense<0.000000e+00> : vector<16xf32>
    %235 = vector.multi_reduction <add>, %206, %cst_69 [1] : vector<16x32xf32> to vector<16xf32>
    %236 = vector.shape_cast %235 : vector<16xf32> to vector<16x1xf32>
    %cst_70 = arith.constant 3.200000e+01 : f32
    %237 = vector.broadcast %cst_70 : f32 to vector<16x1xf32>
    %238 = arith.divf %236, %237 : vector<16x1xf32>
    %239 = vector.broadcast %238 : vector<16x1xf32> to vector<16x32xf32>
    %240 = arith.subf %206, %239 : vector<16x32xf32>
    %241 = arith.mulf %240, %240 : vector<16x32xf32>
    %cst_71 = arith.constant dense<0.000000e+00> : vector<16xf32>
    %242 = vector.multi_reduction <add>, %241, %cst_71 [1] : vector<16x32xf32> to vector<16xf32>
    %243 = vector.shape_cast %242 : vector<16xf32> to vector<16x1xf32>
    %cst_72 = arith.constant 0.0322580636 : f32
    %244 = vector.broadcast %cst_72 : f32 to vector<16x1xf32>
    %245 = arith.mulf %243, %244 : vector<16x1xf32>
    %246 = math.sqrt %245 : vector<16x1xf32>
    %cst_73 = arith.constant 9.99999997E-7 : f32
    %247 = vector.broadcast %cst_73 : f32 to vector<16x1xf32>
    %248 = arith.addf %246, %247 : vector<16x1xf32>
    %249 = tpu.reciprocal %248 : vector<16x1xf32> -> vector<16x1xf32>
    %250 = vector.broadcast %238 : vector<16x1xf32> to vector<16x32xf32>
    %251 = arith.subf %206, %250 : vector<16x32xf32>
    %252 = vector.broadcast %249 : vector<16x1xf32> to vector<16x32xf32>
    %253 = arith.mulf %251, %252 : vector<16x32xf32>
    %254 = vector.shape_cast %209 : vector<32xf32> to vector<1x32xf32>
    %255 = vector.broadcast %254 : vector<1x32xf32> to vector<16x32xf32>
    %256 = arith.mulf %255, %253 : vector<16x32xf32>
    %257 = vector.shape_cast %212 : vector<32xf32> to vector<1x32xf32>
    %258 = vector.broadcast %257 : vector<1x32xf32> to vector<16x32xf32>
    %259 = arith.addf %256, %258 : vector<16x32xf32>
    %cst_74 = arith.constant dense<0.000000e+00> : vector<16x96xf32>
    %260 = tpu.matmul %259, %233, %cst_74 {dimension_numbers = #tpu.dot_dimension_numbers<[1], [0], [0], [1], [0, 0, 1, 1], [], []>} : vector<16x32xf32>, vector<32x96xf32>, vector<16x96xf32> -> vector<16x96xf32>
    %261 = vector.shape_cast %215 : vector<96xf32> to vector<1x96xf32>
    %262 = vector.broadcast %261 : vector<1x96xf32> to vector<16x96xf32>
    %263 = arith.addf %260, %262 : vector<16x96xf32>
    %264 = vector.extract_strided_slice %263 {offsets = [0, 0], sizes = [16, 32], strides = [1, 1]} : vector<16x96xf32> to vector<16x32xf32>
    %265 = vector.extract_strided_slice %263 {offsets = [0, 32], sizes = [16, 32], strides = [1, 1]} : vector<16x96xf32> to vector<16x32xf32>
    %266 = vector.extract_strided_slice %263 {offsets = [0, 64], sizes = [16, 32], strides = [1, 1]} : vector<16x96xf32> to vector<16x32xf32>
    %cst_75 = arith.constant 0.000000e+00 : f32
    %267 = vector.broadcast %cst_75 : f32 to vector<16x32xf32>
    %268 = vector.extract_strided_slice %264 {offsets = [0, 0], sizes = [16, 8], strides = [1, 1]} : vector<16x32xf32> to vector<16x8xf32>
    %269 = vector.shape_cast %268 : vector<16x8xf32> to vector<2x8x8xf32>
    %270 = vector.extract_strided_slice %265 {offsets = [0, 0], sizes = [16, 8], strides = [1, 1]} : vector<16x32xf32> to vector<16x8xf32>
    %271 = vector.shape_cast %270 : vector<16x8xf32> to vector<2x8x8xf32>
    %272 = vector.extract_strided_slice %266 {offsets = [0, 0], sizes = [16, 8], strides = [1, 1]} : vector<16x32xf32> to vector<16x8xf32>
    %273 = vector.shape_cast %272 : vector<16x8xf32> to vector<2x8x8xf32>
    "tpu.trace_start"() <{level = 10 : i32, message = "bqd,bkd->bqk"}> : () -> ()
    %cst_76 = arith.constant dense<0.000000e+00> : vector<2x8x8xf32>
    %274 = tpu.matmul %269, %271, %cst_76 {dimension_numbers = #tpu.dot_dimension_numbers<[2], [2], [1], [1], [0, 0, 0, 1, 1, 1], [0], [0]>} : vector<2x8x8xf32>, vector<2x8x8xf32>, vector<2x8x8xf32> -> vector<2x8x8xf32>
    "tpu.trace_stop"() : () -> ()
    %275 = vector.broadcast %1 : vector<2x1x8xf32> to vector<2x8x8xf32>
    %276 = arith.addf %274, %275 : vector<2x8x8xf32>
    %cst_77 = arith.constant dense<0xFF800000> : vector<2x8xf32>
    %277 = vector.multi_reduction <maximumf>, %276, %cst_77 [2] : vector<2x8x8xf32> to vector<2x8xf32>
    %cst_78 = arith.constant 0xFF800000 : f32
    %278 = vector.broadcast %cst_78 : f32 to vector<2x8xf32>
    %279 = arith.maximumf %278, %277 : vector<2x8xf32>
    %280 = vector.shape_cast %279 : vector<2x8xf32> to vector<2x8x1xf32>
    %281 = vector.broadcast %280 : vector<2x8x1xf32> to vector<2x8x8xf32>
    %282 = arith.subf %276, %281 : vector<2x8x8xf32>
    %283 = math.exp %282 : vector<2x8x8xf32>
    %cst_79 = arith.constant dense<0.000000e+00> : vector<2x8xf32>
    %284 = vector.multi_reduction <add>, %283, %cst_79 [2] : vector<2x8x8xf32> to vector<2x8xf32>
    %285 = vector.shape_cast %284 : vector<2x8xf32> to vector<2x8x1xf32>
    %286 = vector.broadcast %285 : vector<2x8x1xf32> to vector<2x8x8xf32>
    %287 = arith.divf %283, %286 : vector<2x8x8xf32>
    "tpu.trace_start"() <{level = 10 : i32, message = "bqk,bkd->bqd"}> : () -> ()
    %cst_80 = arith.constant dense<0.000000e+00> : vector<2x8x8xf32>
    %288 = tpu.matmul %287, %273, %cst_80 {dimension_numbers = #tpu.dot_dimension_numbers<[2], [1], [1], [2], [0, 0, 0, 1, 1, 2], [0], [0]>} : vector<2x8x8xf32>, vector<2x8x8xf32>, vector<2x8x8xf32> -> vector<2x8x8xf32>
    "tpu.trace_stop"() : () -> ()
    %289 = vector.shape_cast %288 : vector<2x8x8xf32> to vector<16x8xf32>
    %290 = vector.extract_strided_slice %234 {offsets = [0, 0], sizes = [8, 32], strides = [1, 1]} : vector<32x32xf32> to vector<8x32xf32>
    %cst_81 = arith.constant dense<0.000000e+00> : vector<16x32xf32>
    %291 = tpu.matmul %289, %290, %cst_81 {dimension_numbers = #tpu.dot_dimension_numbers<[1], [0], [0], [1], [0, 0, 1, 1], [], []>} : vector<16x8xf32>, vector<8x32xf32>, vector<16x32xf32> -> vector<16x32xf32>
    %292 = arith.addf %267, %291 : vector<16x32xf32>
    %293 = vector.extract_strided_slice %264 {offsets = [0, 8], sizes = [16, 8], strides = [1, 1]} : vector<16x32xf32> to vector<16x8xf32>
    %294 = vector.shape_cast %293 : vector<16x8xf32> to vector<2x8x8xf32>
    %295 = vector.extract_strided_slice %265 {offsets = [0, 8], sizes = [16, 8], strides = [1, 1]} : vector<16x32xf32> to vector<16x8xf32>
    %296 = vector.shape_cast %295 : vector<16x8xf32> to vector<2x8x8xf32>
    %297 = vector.extract_strided_slice %266 {offsets = [0, 8], sizes = [16, 8], strides = [1, 1]} : vector<16x32xf32> to vector<16x8xf32>
    %298 = vector.shape_cast %297 : vector<16x8xf32> to vector<2x8x8xf32>
    "tpu.trace_start"() <{level = 10 : i32, message = "bqd,bkd->bqk"}> : () -> ()
    %cst_82 = arith.constant dense<0.000000e+00> : vector<2x8x8xf32>
    %299 = tpu.matmul %294, %296, %cst_82 {dimension_numbers = #tpu.dot_dimension_numbers<[2], [2], [1], [1], [0, 0, 0, 1, 1, 1], [0], [0]>} : vector<2x8x8xf32>, vector<2x8x8xf32>, vector<2x8x8xf32> -> vector<2x8x8xf32>
    "tpu.trace_stop"() : () -> ()
    %300 = vector.broadcast %1 : vector<2x1x8xf32> to vector<2x8x8xf32>
    %301 = arith.addf %299, %300 : vector<2x8x8xf32>
    %cst_83 = arith.constant dense<0xFF800000> : vector<2x8xf32>
    %302 = vector.multi_reduction <maximumf>, %301, %cst_83 [2] : vector<2x8x8xf32> to vector<2x8xf32>
    %cst_84 = arith.constant 0xFF800000 : f32
    %303 = vector.broadcast %cst_84 : f32 to vector<2x8xf32>
    %304 = arith.maximumf %303, %302 : vector<2x8xf32>
    %305 = vector.shape_cast %304 : vector<2x8xf32> to vector<2x8x1xf32>
    %306 = vector.broadcast %305 : vector<2x8x1xf32> to vector<2x8x8xf32>
    %307 = arith.subf %301, %306 : vector<2x8x8xf32>
    %308 = math.exp %307 : vector<2x8x8xf32>
    %cst_85 = arith.constant dense<0.000000e+00> : vector<2x8xf32>
    %309 = vector.multi_reduction <add>, %308, %cst_85 [2] : vector<2x8x8xf32> to vector<2x8xf32>
    %310 = vector.shape_cast %309 : vector<2x8xf32> to vector<2x8x1xf32>
    %311 = vector.broadcast %310 : vector<2x8x1xf32> to vector<2x8x8xf32>
    %312 = arith.divf %308, %311 : vector<2x8x8xf32>
    "tpu.trace_start"() <{level = 10 : i32, message = "bqk,bkd->bqd"}> : () -> ()
    %cst_86 = arith.constant dense<0.000000e+00> : vector<2x8x8xf32>
    %313 = tpu.matmul %312, %298, %cst_86 {dimension_numbers = #tpu.dot_dimension_numbers<[2], [1], [1], [2], [0, 0, 0, 1, 1, 2], [0], [0]>} : vector<2x8x8xf32>, vector<2x8x8xf32>, vector<2x8x8xf32> -> vector<2x8x8xf32>
    "tpu.trace_stop"() : () -> ()
    %314 = vector.shape_cast %313 : vector<2x8x8xf32> to vector<16x8xf32>
    %315 = vector.extract_strided_slice %234 {offsets = [8, 0], sizes = [8, 32], strides = [1, 1]} : vector<32x32xf32> to vector<8x32xf32>
    %cst_87 = arith.constant dense<0.000000e+00> : vector<16x32xf32>
    %316 = tpu.matmul %314, %315, %cst_87 {dimension_numbers = #tpu.dot_dimension_numbers<[1], [0], [0], [1], [0, 0, 1, 1], [], []>} : vector<16x8xf32>, vector<8x32xf32>, vector<16x32xf32> -> vector<16x32xf32>
    %317 = arith.addf %292, %316 : vector<16x32xf32>
    %318 = vector.extract_strided_slice %264 {offsets = [0, 16], sizes = [16, 8], strides = [1, 1]} : vector<16x32xf32> to vector<16x8xf32>
    %319 = vector.shape_cast %318 : vector<16x8xf32> to vector<2x8x8xf32>
    %320 = vector.extract_strided_slice %265 {offsets = [0, 16], sizes = [16, 8], strides = [1, 1]} : vector<16x32xf32> to vector<16x8xf32>
    %321 = vector.shape_cast %320 : vector<16x8xf32> to vector<2x8x8xf32>
    %322 = vector.extract_strided_slice %266 {offsets = [0, 16], sizes = [16, 8], strides = [1, 1]} : vector<16x32xf32> to vector<16x8xf32>
    %323 = vector.shape_cast %322 : vector<16x8xf32> to vector<2x8x8xf32>
    "tpu.trace_start"() <{level = 10 : i32, message = "bqd,bkd->bqk"}> : () -> ()
    %cst_88 = arith.constant dense<0.000000e+00> : vector<2x8x8xf32>
    %324 = tpu.matmul %319, %321, %cst_88 {dimension_numbers = #tpu.dot_dimension_numbers<[2], [2], [1], [1], [0, 0, 0, 1, 1, 1], [0], [0]>} : vector<2x8x8xf32>, vector<2x8x8xf32>, vector<2x8x8xf32> -> vector<2x8x8xf32>
    "tpu.trace_stop"() : () -> ()
    %325 = vector.broadcast %1 : vector<2x1x8xf32> to vector<2x8x8xf32>
    %326 = arith.addf %324, %325 : vector<2x8x8xf32>
    %cst_89 = arith.constant dense<0xFF800000> : vector<2x8xf32>
    %327 = vector.multi_reduction <maximumf>, %326, %cst_89 [2] : vector<2x8x8xf32> to vector<2x8xf32>
    %cst_90 = arith.constant 0xFF800000 : f32
    %328 = vector.broadcast %cst_90 : f32 to vector<2x8xf32>
    %329 = arith.maximumf %328, %327 : vector<2x8xf32>
    %330 = vector.shape_cast %329 : vector<2x8xf32> to vector<2x8x1xf32>
    %331 = vector.broadcast %330 : vector<2x8x1xf32> to vector<2x8x8xf32>
    %332 = arith.subf %326, %331 : vector<2x8x8xf32>
    %333 = math.exp %332 : vector<2x8x8xf32>
    %cst_91 = arith.constant dense<0.000000e+00> : vector<2x8xf32>
    %334 = vector.multi_reduction <add>, %333, %cst_91 [2] : vector<2x8x8xf32> to vector<2x8xf32>
    %335 = vector.shape_cast %334 : vector<2x8xf32> to vector<2x8x1xf32>
    %336 = vector.broadcast %335 : vector<2x8x1xf32> to vector<2x8x8xf32>
    %337 = arith.divf %333, %336 : vector<2x8x8xf32>
    "tpu.trace_start"() <{level = 10 : i32, message = "bqk,bkd->bqd"}> : () -> ()
    %cst_92 = arith.constant dense<0.000000e+00> : vector<2x8x8xf32>
    %338 = tpu.matmul %337, %323, %cst_92 {dimension_numbers = #tpu.dot_dimension_numbers<[2], [1], [1], [2], [0, 0, 0, 1, 1, 2], [0], [0]>} : vector<2x8x8xf32>, vector<2x8x8xf32>, vector<2x8x8xf32> -> vector<2x8x8xf32>
    "tpu.trace_stop"() : () -> ()
    %339 = vector.shape_cast %338 : vector<2x8x8xf32> to vector<16x8xf32>
    %340 = vector.extract_strided_slice %234 {offsets = [16, 0], sizes = [8, 32], strides = [1, 1]} : vector<32x32xf32> to vector<8x32xf32>
    %cst_93 = arith.constant dense<0.000000e+00> : vector<16x32xf32>
    %341 = tpu.matmul %339, %340, %cst_93 {dimension_numbers = #tpu.dot_dimension_numbers<[1], [0], [0], [1], [0, 0, 1, 1], [], []>} : vector<16x8xf32>, vector<8x32xf32>, vector<16x32xf32> -> vector<16x32xf32>
    %342 = arith.addf %317, %341 : vector<16x32xf32>
    %343 = vector.extract_strided_slice %264 {offsets = [0, 24], sizes = [16, 8], strides = [1, 1]} : vector<16x32xf32> to vector<16x8xf32>
    %344 = vector.shape_cast %343 : vector<16x8xf32> to vector<2x8x8xf32>
    %345 = vector.extract_strided_slice %265 {offsets = [0, 24], sizes = [16, 8], strides = [1, 1]} : vector<16x32xf32> to vector<16x8xf32>
    %346 = vector.shape_cast %345 : vector<16x8xf32> to vector<2x8x8xf32>
    %347 = vector.extract_strided_slice %266 {offsets = [0, 24], sizes = [16, 8], strides = [1, 1]} : vector<16x32xf32> to vector<16x8xf32>
    %348 = vector.shape_cast %347 : vector<16x8xf32> to vector<2x8x8xf32>
    "tpu.trace_start"() <{level = 10 : i32, message = "bqd,bkd->bqk"}> : () -> ()
    %cst_94 = arith.constant dense<0.000000e+00> : vector<2x8x8xf32>
    %349 = tpu.matmul %344, %346, %cst_94 {dimension_numbers = #tpu.dot_dimension_numbers<[2], [2], [1], [1], [0, 0, 0, 1, 1, 1], [0], [0]>} : vector<2x8x8xf32>, vector<2x8x8xf32>, vector<2x8x8xf32> -> vector<2x8x8xf32>
    "tpu.trace_stop"() : () -> ()
    %350 = vector.broadcast %1 : vector<2x1x8xf32> to vector<2x8x8xf32>
    %351 = arith.addf %349, %350 : vector<2x8x8xf32>
    %cst_95 = arith.constant dense<0xFF800000> : vector<2x8xf32>
    %352 = vector.multi_reduction <maximumf>, %351, %cst_95 [2] : vector<2x8x8xf32> to vector<2x8xf32>
    %cst_96 = arith.constant 0xFF800000 : f32
    %353 = vector.broadcast %cst_96 : f32 to vector<2x8xf32>
    %354 = arith.maximumf %353, %352 : vector<2x8xf32>
    %355 = vector.shape_cast %354 : vector<2x8xf32> to vector<2x8x1xf32>
    %356 = vector.broadcast %355 : vector<2x8x1xf32> to vector<2x8x8xf32>
    %357 = arith.subf %351, %356 : vector<2x8x8xf32>
    %358 = math.exp %357 : vector<2x8x8xf32>
    %cst_97 = arith.constant dense<0.000000e+00> : vector<2x8xf32>
    %359 = vector.multi_reduction <add>, %358, %cst_97 [2] : vector<2x8x8xf32> to vector<2x8xf32>
    %360 = vector.shape_cast %359 : vector<2x8xf32> to vector<2x8x1xf32>
    %361 = vector.broadcast %360 : vector<2x8x1xf32> to vector<2x8x8xf32>
    %362 = arith.divf %358, %361 : vector<2x8x8xf32>
    "tpu.trace_start"() <{level = 10 : i32, message = "bqk,bkd->bqd"}> : () -> ()
    %cst_98 = arith.constant dense<0.000000e+00> : vector<2x8x8xf32>
    %363 = tpu.matmul %362, %348, %cst_98 {dimension_numbers = #tpu.dot_dimension_numbers<[2], [1], [1], [2], [0, 0, 0, 1, 1, 2], [0], [0]>} : vector<2x8x8xf32>, vector<2x8x8xf32>, vector<2x8x8xf32> -> vector<2x8x8xf32>
    "tpu.trace_stop"() : () -> ()
    %364 = vector.shape_cast %363 : vector<2x8x8xf32> to vector<16x8xf32>
    %365 = vector.extract_strided_slice %234 {offsets = [24, 0], sizes = [8, 32], strides = [1, 1]} : vector<32x32xf32> to vector<8x32xf32>
    %cst_99 = arith.constant dense<0.000000e+00> : vector<16x32xf32>
    %366 = tpu.matmul %364, %365, %cst_99 {dimension_numbers = #tpu.dot_dimension_numbers<[1], [0], [0], [1], [0, 0, 1, 1], [], []>} : vector<16x8xf32>, vector<8x32xf32>, vector<16x32xf32> -> vector<16x32xf32>
    %367 = arith.addf %342, %366 : vector<16x32xf32>
    %368 = arith.addf %206, %367 : vector<16x32xf32>
    %369 = vector.shape_cast %218 : vector<32xf32> to vector<1x32xf32>
    %370 = vector.broadcast %369 : vector<1x32xf32> to vector<16x32xf32>
    %371 = arith.addf %368, %370 : vector<16x32xf32>
    %cst_100 = arith.constant dense<0.000000e+00> : vector<16xf32>
    %372 = vector.multi_reduction <add>, %371, %cst_100 [1] : vector<16x32xf32> to vector<16xf32>
    %373 = vector.shape_cast %372 : vector<16xf32> to vector<16x1xf32>
    %cst_101 = arith.constant 3.200000e+01 : f32
    %374 = vector.broadcast %cst_101 : f32 to vector<16x1xf32>
    %375 = arith.divf %373, %374 : vector<16x1xf32>
    %376 = vector.broadcast %375 : vector<16x1xf32> to vector<16x32xf32>
    %377 = arith.subf %371, %376 : vector<16x32xf32>
    %378 = arith.mulf %377, %377 : vector<16x32xf32>
    %cst_102 = arith.constant dense<0.000000e+00> : vector<16xf32>
    %379 = vector.multi_reduction <add>, %378, %cst_102 [1] : vector<16x32xf32> to vector<16xf32>
    %380 = vector.shape_cast %379 : vector<16xf32> to vector<16x1xf32>
    %cst_103 = arith.constant 0.0322580636 : f32
    %381 = vector.broadcast %cst_103 : f32 to vector<16x1xf32>
    %382 = arith.mulf %380, %381 : vector<16x1xf32>
    %383 = math.sqrt %382 : vector<16x1xf32>
    %cst_104 = arith.constant 9.99999997E-7 : f32
    %384 = vector.broadcast %cst_104 : f32 to vector<16x1xf32>
    %385 = arith.addf %383, %384 : vector<16x1xf32>
    %386 = tpu.reciprocal %385 : vector<16x1xf32> -> vector<16x1xf32>
    %387 = vector.broadcast %375 : vector<16x1xf32> to vector<16x32xf32>
    %388 = arith.subf %371, %387 : vector<16x32xf32>
    %389 = vector.broadcast %386 : vector<16x1xf32> to vector<16x32xf32>
    %390 = arith.mulf %388, %389 : vector<16x32xf32>
    %391 = vector.shape_cast %221 : vector<32xf32> to vector<1x32xf32>
    %392 = vector.broadcast %391 : vector<1x32xf32> to vector<16x32xf32>
    %393 = arith.mulf %392, %390 : vector<16x32xf32>
    %394 = vector.shape_cast %224 : vector<32xf32> to vector<1x32xf32>
    %395 = vector.broadcast %394 : vector<1x32xf32> to vector<16x32xf32>
    %396 = arith.addf %393, %395 : vector<16x32xf32>
    %c1_105 = arith.constant 1 : index
    %c0_106 = arith.constant 0 : index
    %c0_107 = arith.constant 0 : index
    %397 = vector.load %arg4[%c1_105, %c0_106, %c0_107] : memref<2x32x64xf32, #tpu.memory_space<vmem>>, vector<1x32x64xf32>
    %398 = vector.shape_cast %397 : vector<1x32x64xf32> to vector<32x64xf32>
    %cst_108 = arith.constant dense<0.000000e+00> : vector<16x64xf32>
    %399 = tpu.matmul %396, %398, %cst_108 {dimension_numbers = #tpu.dot_dimension_numbers<[1], [0], [0], [1], [0, 0, 1, 1], [], []>} : vector<16x32xf32>, vector<32x64xf32>, vector<16x64xf32> -> vector<16x64xf32>
    %400 = vector.shape_cast %227 : vector<64xf32> to vector<1x64xf32>
    %401 = vector.broadcast %400 : vector<1x64xf32> to vector<16x64xf32>
    %402 = arith.addf %399, %401 : vector<16x64xf32>
    %cst_109 = arith.constant 0.000000e+00 : f32
    %403 = vector.broadcast %cst_109 : f32 to vector<16x64xf32>
    %404 = arith.maximumf %402, %403 : vector<16x64xf32>
    %c1_110 = arith.constant 1 : index
    %c0_111 = arith.constant 0 : index
    %c0_112 = arith.constant 0 : index
    %405 = vector.load %arg5[%c1_110, %c0_111, %c0_112] : memref<2x64x32xf32, #tpu.memory_space<vmem>>, vector<1x64x32xf32>
    %406 = vector.shape_cast %405 : vector<1x64x32xf32> to vector<64x32xf32>
    %cst_113 = arith.constant dense<0.000000e+00> : vector<16x32xf32>
    %407 = tpu.matmul %404, %406, %cst_113 {dimension_numbers = #tpu.dot_dimension_numbers<[1], [0], [0], [1], [0, 0, 1, 1], [], []>} : vector<16x64xf32>, vector<64x32xf32>, vector<16x32xf32> -> vector<16x32xf32>
    %408 = vector.shape_cast %230 : vector<32xf32> to vector<1x32xf32>
    %409 = vector.broadcast %408 : vector<1x32xf32> to vector<16x32xf32>
    %410 = arith.addf %407, %409 : vector<16x32xf32>
    %411 = arith.addf %371, %410 : vector<16x32xf32>
    %c0_114 = arith.constant 0 : index
    %c0_115 = arith.constant 0 : index
    %412 = vector.load %arg6[%c0_114, %c0_115] : memref<18x128xf32, #tpu.memory_space<vmem>>, vector<1x128xf32>
    %413 = vector.shape_cast %412 : vector<1x128xf32> to vector<128xf32>
    %414 = vector.extract_strided_slice %413 {offsets = [0], sizes = [32], strides = [1]} : vector<128xf32> to vector<32xf32>
    %c1_116 = arith.constant 1 : index
    %c0_117 = arith.constant 0 : index
    %415 = vector.load %arg6[%c1_116, %c0_117] : memref<18x128xf32, #tpu.memory_space<vmem>>, vector<1x128xf32>
    %416 = vector.shape_cast %415 : vector<1x128xf32> to vector<128xf32>
    %417 = vector.extract_strided_slice %416 {offsets = [0], sizes = [32], strides = [1]} : vector<128xf32> to vector<32xf32>
    %cst_118 = arith.constant dense<0.000000e+00> : vector<16xf32>
    %418 = vector.multi_reduction <add>, %411, %cst_118 [1] : vector<16x32xf32> to vector<16xf32>
    %419 = vector.shape_cast %418 : vector<16xf32> to vector<16x1xf32>
    %cst_119 = arith.constant 3.200000e+01 : f32
    %420 = vector.broadcast %cst_119 : f32 to vector<16x1xf32>
    %421 = arith.divf %419, %420 : vector<16x1xf32>
    %422 = vector.broadcast %421 : vector<16x1xf32> to vector<16x32xf32>
    %423 = arith.subf %411, %422 : vector<16x32xf32>
    %424 = arith.mulf %423, %423 : vector<16x32xf32>
    %cst_120 = arith.constant dense<0.000000e+00> : vector<16xf32>
    %425 = vector.multi_reduction <add>, %424, %cst_120 [1] : vector<16x32xf32> to vector<16xf32>
    %426 = vector.shape_cast %425 : vector<16xf32> to vector<16x1xf32>
    %cst_121 = arith.constant 0.0322580636 : f32
    %427 = vector.broadcast %cst_121 : f32 to vector<16x1xf32>
    %428 = arith.mulf %426, %427 : vector<16x1xf32>
    %429 = math.sqrt %428 : vector<16x1xf32>
    %cst_122 = arith.constant 9.99999997E-7 : f32
    %430 = vector.broadcast %cst_122 : f32 to vector<16x1xf32>
    %431 = arith.addf %429, %430 : vector<16x1xf32>
    %432 = tpu.reciprocal %431 : vector<16x1xf32> -> vector<16x1xf32>
    %433 = vector.broadcast %421 : vector<16x1xf32> to vector<16x32xf32>
    %434 = arith.subf %411, %433 : vector<16x32xf32>
    %435 = vector.broadcast %432 : vector<16x1xf32> to vector<16x32xf32>
    %436 = arith.mulf %434, %435 : vector<16x32xf32>
    %437 = vector.shape_cast %414 : vector<32xf32> to vector<1x32xf32>
    %438 = vector.broadcast %437 : vector<1x32xf32> to vector<16x32xf32>
    %439 = arith.mulf %438, %436 : vector<16x32xf32>
    %440 = vector.shape_cast %417 : vector<32xf32> to vector<1x32xf32>
    %441 = vector.broadcast %440 : vector<1x32xf32> to vector<16x32xf32>
    %442 = arith.addf %439, %441 : vector<16x32xf32>
    %c0_123 = arith.constant 0 : index
    %c0_124 = arith.constant 0 : index
    %443 = vector.load %arg7[%c0_123, %c0_124] : memref<16x32xf32, #tpu.memory_space<vmem>>, vector<16x32xf32>
    tpu.vector_store %arg7[%c0_123, %c0_124], %442 {strides = array<i32>} : memref<16x32xf32, #tpu.memory_space<vmem>>, vector<16x32xf32>,
    return
  }
  func.func @transform_0(%arg0: i32) -> (i32, i32) {
    %c0_i32 = arith.constant 0 : i32
    %c0_i32_0 = arith.constant 0 : i32
    %c0_i32_1 = arith.constant 0 : i32
    return %c0_i32, %c0_i32_0 : i32, i32
  }
  func.func @transform_1(%arg0: i32) -> (i32, i32, i32) {
    %c0_i32 = arith.constant 0 : i32
    %c0_i32_0 = arith.constant 0 : i32
    %c0_i32_1 = arith.constant 0 : i32
    %c0_i32_2 = arith.constant 0 : i32
    return %c0_i32, %c0_i32_0, %c0_i32_1 : i32, i32, i32
  }
  func.func @transform_2(%arg0: i32) -> (i32, i32, i32) {
    %c0_i32 = arith.constant 0 : i32
    %c0_i32_0 = arith.constant 0 : i32
    %c0_i32_1 = arith.constant 0 : i32
    %c0_i32_2 = arith.constant 0 : i32
    return %c0_i32, %c0_i32_0, %c0_i32_1 : i32, i32, i32
  }
  func.func @transform_3(%arg0: i32) -> (i32, i32, i32) {
    %c0_i32 = arith.constant 0 : i32
    %c0_i32_0 = arith.constant 0 : i32
    %c0_i32_1 = arith.constant 0 : i32
    %c0_i32_2 = arith.constant 0 : i32
    return %c0_i32, %c0_i32_0, %c0_i32_1 : i32, i32, i32
  }
  func.func @transform_4(%arg0: i32) -> (i32, i32, i32) {
    %c0_i32 = arith.constant 0 : i32
    %c0_i32_0 = arith.constant 0 : i32
    %c0_i32_1 = arith.constant 0 : i32
    %c0_i32_2 = arith.constant 0 : i32
    return %c0_i32, %c0_i32_0, %c0_i32_1 : i32, i32, i32
  }
  func.func @transform_5(%arg0: i32) -> (i32, i32) {
    %c0_i32 = arith.constant 0 : i32
    %c0_i32_0 = arith.constant 0 : i32
    %c0_i32_1 = arith.constant 0 : i32
    return %c0_i32, %c0_i32_0 : i32, i32
  }
  func.func @transform_6(%arg0: i32) -> (i32, i32) {
    %c0_i32 = arith.constant 0 : i32
    %c0_i32_0 = arith.constant 0 : i32
    %c0_i32_1 = arith.constant 0 : i32
    return %c0_i32, %c0_i32_0 : i32, i32
  }
}

</mosaic_0001>

<llo_original>
// kernel: encoder_pallas.1
$region0: #{encoder_pallas.1}
  #allocation0 [shape = 'u32[]', space=smem, size = 0x4, offset = 0x4, fixed_abs, tag = 'smem constant byte address 0x4 - core index']
  #allocation1 [shape = 'u32[144,128]{1,0:T(1,128)}', space=vmem, size = 0x12000, scoped, tag = 'internal scratch']
  %s0 = inlined_call_operand.vmem [shape: f32[16,32], index: 0, kind: input, shape index: {}, may-alias: {0,6}]
  %s1 = inlined_call_operand.vmem [shape: f32[2,1,8], index: 1, kind: input, shape index: {}]
  %s2 = inlined_call_operand.vmem [shape: f32[2,32,128], index: 2, kind: input, shape index: {}]
  %s3 = inlined_call_operand.vmem [shape: f32[2,32,64], index: 3, kind: input, shape index: {}]
  %s4 = inlined_call_operand.vmem [shape: f32[2,64,32], index: 4, kind: input, shape index: {}]
  %s5 = inlined_call_operand.vmem [shape: f32[18,128], index: 5, kind: input, shape index: {}]
  %s6 = inlined_call_operand.vmem [shape: f32[16,32], index: 6, kind: output, shape index: {}, may-alias: {0,6}]
  %s7 = sld [smem:[#allocation0]]
  $region34: #{encoder_pallas.1} parent=0
    _
  %s9 = ssub.s32 1, %s7
  %s10 = scalar_select 0, %s9, %s7
  // Predicated region
  $region2: #{encoder_pallas.1} parent=0 // pred_check
    _
  $region3: #{encoder_pallas.1} parent=0 // pred_check_branch
    %12 = sbr.rel (0) target = $region5
  $region4: #{encoder_pallas.1} parent=0 // pred_region
    _
  $region5: #{encoder_pallas.1} parent=0 // pred_fallthru
    _
  // Predicated region
  $region6: #{encoder_pallas.1} parent=0 // pred_check
    _
  $region7: #{encoder_pallas.1} parent=0 // pred_check_branch
    %14 = sbr.rel (0) target = $region9
  $region8: #{encoder_pallas.1} parent=0 // pred_region
    _
  $region9: #{encoder_pallas.1} parent=0 // pred_fallthru
    _
  // Predicated region
  $region10: #{encoder_pallas.1} parent=0 // pred_check
    _
  $region11: #{encoder_pallas.1} parent=0 // pred_check_branch
    %16 = sbr.rel (0) target = $region13
  $region12: #{encoder_pallas.1} parent=0 // pred_region
    _
  $region13: #{encoder_pallas.1} parent=0 // pred_fallthru
    _
  // Predicated region
  $region14: #{encoder_pallas.1} parent=0 // pred_check
    _
  $region15: #{encoder_pallas.1} parent=0 // pred_check_branch
    %18 = sbr.rel (0) target = $region17
  $region16: #{encoder_pallas.1} parent=0 // pred_region
    _
  $region17: #{encoder_pallas.1} parent=0 // pred_fallthru
    _
  // Predicated region
  $region18: #{encoder_pallas.1} parent=0 // pred_check
    _
  $region19: #{encoder_pallas.1} parent=0 // pred_check_branch
    %20 = sbr.rel (0) target = $region21
  $region20: #{encoder_pallas.1} parent=0 // pred_region
    _
  $region21: #{encoder_pallas.1} parent=0 // pred_fallthru
    _
  // Predicated region
  $region22: #{encoder_pallas.1} parent=0 // pred_check
    _
  $region23: #{encoder_pallas.1} parent=0 // pred_check_branch
    %22 = sbr.rel (0) target = $region25
  $region24: #{encoder_pallas.1} parent=0 // pred_region
    _
  $region25: #{encoder_pallas.1} parent=0 // pred_fallthru
    _
  %v23 = vld [vmem:[%s0] sm:$0xff]
  %v24 = vld [vmem:[%s0 + $0x8] sm:$0xff]
  %v25 = vld [vmem:[%s1] sm:$0x1]
  %v26 = vld [vmem:[%s1 + $0x1] sm:$0x1]
  %v27 = vld [vmem:[%s5 + $0x2] sm:$0x1]
  %v28 = vld [vmem:[%s5 + $0x3] sm:$0x1]
  %v29 = vld [vmem:[%s5 + $0x4] sm:$0x1]
  %v30 = vld [vmem:[%s5 + $0x5] sm:$0x1]
  %v31 = vld [vmem:[%s5 + $0x6] sm:$0x1]
  %v32 = vld [vmem:[%s5 + $0x7] sm:$0x1]
  %v33 = vld [vmem:[%s5 + $0x8] sm:$0x1]
  %v34 = vld [vmem:[%s5 + $0x9] sm:$0x1]
  %v35 = vld [vmem:[%s2] sm:$0xff]
  %v36 = vld [vmem:[%s2 + $0x8] sm:$0xff]
  %v37 = vld [vmem:[%s2 + $0x10] sm:$0xff]
  %v38 = vld [vmem:[%s2 + $0x18] sm:$0xff]
  %vm39 = vcmask 261120
  %v40 = vsel %vm39, %v23, 0.0
  %41 = vadd.xlane.f32.xlu0 %v40
  %v42 = vpop.xlane.xlu0 %41
  %v43 = vsel %vm39, %v24, 0.0
  %44 = vadd.xlane.f32.xlu0 %v43
  %v45 = vpop.xlane.xlu0 %44
  %v46 = vrcp.pop 32.0
  %v47 = vmul.f32 %v42, %v46
  %v48 = vmul.f32 %v45, %v46
  %v49 = vsub.f32 %v23, %v47
  %v50 = vsub.f32 %v24, %v48
  %v51 = vmul.f32 %v49, %v49
  %v52 = vmul.f32 %v50, %v50
  %v53 = vsel %vm39, %v51, 0.0
  %54 = vadd.xlane.f32.xlu0 %v53
  %v55 = vpop.xlane.xlu0 %54
  %v56 = vsel %vm39, %v52, 0.0
  %57 = vadd.xlane.f32.xlu0 %v56
  %v58 = vpop.xlane.xlu0 %57
  %v59 = vmul.f32 %v55, 0.032258064
  %v60 = vmul.f32 %v58, 0.032258064
  %v61 = vrsqrt.pop %v59
  %v62 = vmul.f32 %v59, %v61
  %vm63 = vcmp.eq.f32.partialorder %v59, inf
  %v64 = vsel %vm63, %v59, %v62
  %vm65 = vcmp.eq.f32.partialorder %v59, 0.0
  %v66 = vand.u32 %v59, 2147483648
  %v67 = vsel %vm65, %v66, %v64
  %v68 = vrsqrt.pop %v60
  %v69 = vmul.f32 %v60, %v68
  %vm70 = vcmp.eq.f32.partialorder %v60, inf
  %v71 = vsel %vm70, %v60, %v69
  %vm72 = vcmp.eq.f32.partialorder %v60, 0.0
  %v73 = vand.u32 %v60, 2147483648
  %v74 = vsel %vm72, %v73, %v71
  %v75 = vadd.f32 %v67, 1e-06
  %v76 = vadd.f32 %v74, 1e-06
  %v77 = vrcp.pop %v75
  %v78 = vrcp.pop %v76
  %v79 = vmul.f32 %v49, %v77
  %v80 = vmul.f32 %v50, %v78
  %v81 = vlaneseq
  %v82 = vshrl.u32 %v81, 7
  %v83 = vsub.s32 0, %v82
  %v84 = vrot.slane %v27, %v83
  %v85 = vmul.f32 %v84, %v79
  %v86 = vmul.f32 %v84, %v80
  %v87 = vlaneseq
  %v88 = vshrl.u32 %v87, 7
  %v89 = vsub.s32 0, %v88
  %v90 = vrot.slane %v28, %v89
  %v91 = vadd.f32 %v85, %v90
  %v92 = vadd.f32 %v86, %v90
  %v93 = vlaneseq
  %v94 = vshrl.u32 %v93, 7
  %v95 = vsub.s32 0, %v94
  %v96 = vrot.slane %v29, %v95
  %v98 = vsel %vm39, %v91, 0
  %v101 = vsel %vm39, %v92, 0
  %103 = vmatprep.subr.mxu0 0.0
  %104 = vmatpush1.msra.mxu0 %v35
  %105 = vmatprep.subr.mxu0 0.0
  %106 = vmatpush1.msra.mxu0 %v36
  %107 = vmatprep.subr.mxu0 0.0
  %108 = vmatpush1.msra.mxu0 %v37
  %109 = vmatprep.subr.mxu0 0.0
  %110 = vmatpush1.msra.mxu0 %v38
  %111 = vmatprep.subr.mxu0 0.0
  %112 = vmatpush1.msra.mxu0 0.0
  %113 = vmatprep.subr.mxu0 0.0
  %114 = vmatpush1.msra.mxu0 0.0
  %115 = vmatprep.subr.mxu0 0.0
  %116 = vmatpush1.msra.mxu0 0.0
  %117 = vmatprep.subr.mxu0 0.0
  %118 = vmatpush1.msra.mxu0 0.0
  %119 = vmatprep.subr.mxu0 0.0
  %120 = vmatpush1.msra.mxu0 0.0
  %121 = vmatprep.subr.mxu0 0.0
  %122 = vmatpush1.msra.mxu0 0.0
  %123 = vmatprep.subr.mxu0 0.0
  %124 = vmatpush1.msra.mxu0 0.0
  %125 = vmatprep.subr.mxu0 0.0
  %126 = vmatpush1.msra.mxu0 0.0
  %127 = vmatprep.subr.mxu0 0.0
  %128 = vmatpush1.msra.mxu0 0.0
  %129 = vmatprep.subr.mxu0 0.0
  %130 = vmatpush1.msra.mxu0 0.0
  %131 = vmatprep.subr.mxu0 0.0
  %132 = vmatpush1.msra.mxu0 0.0
  %133 = vmatprep.subr.mxu0 0.0
  %134 = vmatpush1.msra.mxu0 0.0
  %135 = vmatprep.subr.mxu0 0.0
  %136 = vmatpush1.msra.mxu0 0.0
  %137 = vmatprep.subr.mxu0 0.0
  %138 = vmatpush1.msra.mxu0 0.0
  %139 = vmatprep.subr.mxu0 0.0
  %140 = vmatpush1.msra.mxu0 0.0
  %141 = vmatprep.subr.mxu0 0.0
  %142 = vmatpush1.msra.mxu0 0.0
  %143 = vmatprep.subr.mxu0 0.0
  %144 = vmatpush1.msra.mxu0 0.0
  %145 = vmatprep.subr.mxu0 0.0
  %146 = vmatpush1.msra.mxu0 0.0
  %147 = vmatprep.subr.mxu0 0.0
  %148 = vmatpush1.msra.mxu0 0.0
  %149 = vmatprep.subr.mxu0 0.0
  %150 = vmatpush1.msra.mxu0 0.0
  %151 = vmatprep.subr.mxu0 0.0
  %152 = vmatpush1.msra.mxu0 0.0
  %153 = vmatprep.subr.mxu0 0.0
  %154 = vmatpush1.msra.mxu0 0.0
  %155 = vmatprep.subr.mxu0 0.0
  %156 = vmatpush1.msra.mxu0 0.0
  %157 = vmatprep.subr.mxu0 0.0
  %158 = vmatpush1.msra.mxu0 0.0
  %159 = vmatprep.subr.mxu0 0.0
  %160 = vmatpush1.msra.mxu0 0.0
  %161 = vmatprep.subr.mxu0 0.0
  %162 = vmatpush1.msra.mxu0 0.0
  %163 = vmatprep.subr.mxu0 0.0
  %164 = vmatpush1.msra.mxu0 0.0
  %165 = vmatprep.subr.mxu0 0.0
  %166 = vmatpush1.msra.mxu0 0.0
  %167 = vmatprep.mubr.f32.mxu0 0.0
  %168 = vmatmul.mubr.f32.gmra.mrb[0].mxu0 %v98
  %v169 = vpop.f32.mrb[0].mxu0
  %v170 = vadd.f32 %v96, %v169
  %v171 = vpop.f32.mrb[0].mxu0
  %172 = vmatprep.mubr.f32.mxu0 0.0
  %173 = vmatmul.mubr.f32.gmra.mrb[0].mxu0 %v101
  %v174 = vpop.f32.mrb[0].mxu0
  %v175 = vadd.f32 %v96, %v174
  %v176 = vpop.f32.mrb[0].mxu0
  %177 = vdwg.mxu0
  %v180 = vlaneseq
  %v181 = vshrl.u32 %v180, 7
  %v182 = vsub.s32 0, %v181
  %v183 = vrot.slane %v25, %v182
  %v184 = vlaneseq
  %v185 = vshrl.u32 %v184, 7
  %v186 = vsub.s32 0, %v185
  %v187 = vrot.slane %v26, %v186
  %191 = vrot.lane.b32.xlu0 %v170, 96
  %v192 = vpop.permute.xlu0 %191
  %vm193 = vcmask 64512
  %v194 = vsel %vm193, %v170, 0
  %v196 = vsel %vm193, %v192, 0
  %198 = vmatprep.subr.mxu0 0.0
  %199 = vmatpush1.xpose.msra.mxu0 %v196
  %200 = vmatprep.subr.mxu0 0.0
  %201 = vmatpush1.xpose.msra.mxu0 0.0
  %202 = vmatprep.subr.mxu0 0.0
  %203 = vmatpush1.xpose.msra.mxu0 0.0
  %204 = vmatprep.subr.mxu0 0.0
  %205 = vmatpush1.xpose.msra.mxu0 0.0
  %206 = vmatprep.subr.mxu0 0.0
  %207 = vmatpush1.xpose.msra.mxu0 0.0
  %208 = vmatprep.subr.mxu0 0.0
  %209 = vmatpush1.xpose.msra.mxu0 0.0
  %210 = vmatprep.subr.mxu0 0.0
  %211 = vmatpush1.xpose.msra.mxu0 0.0
  %212 = vmatprep.subr.mxu0 0.0
  %213 = vmatpush1.xpose.msra.mxu0 0.0
  %214 = vmatprep.subr.mxu0 0.0
  %215 = vmatpush1.xpose.msra.mxu0 0.0
  %216 = vmatprep.subr.mxu0 0.0
  %217 = vmatpush1.xpose.msra.mxu0 0.0
  %218 = vmatprep.subr.mxu0 0.0
  %219 = vmatpush1.xpose.msra.mxu0 0.0
  %220 = vmatprep.subr.mxu0 0.0
  %221 = vmatpush1.xpose.msra.mxu0 0.0
  %222 = vmatprep.subr.mxu0 0.0
  %223 = vmatpush1.xpose.msra.mxu0 0.0
  %224 = vmatprep.subr.mxu0 0.0
  %225 = vmatpush1.xpose.msra.mxu0 0.0
  %226 = vmatprep.subr.mxu0 0.0
  %227 = vmatpush1.xpose.msra.mxu0 0.0
  %228 = vmatprep.subr.mxu0 0.0
  %229 = vmatpush1.xpose.msra.mxu0 0.0
  %230 = vmatprep.subr.mxu0 0.0
  %231 = vmatpush1.xpose.msra.mxu0 0.0
  %232 = vmatprep.subr.mxu0 0.0
  %233 = vmatpush1.xpose.msra.mxu0 0.0
  %234 = vmatprep.subr.mxu0 0.0
  %235 = vmatpush1.xpose.msra.mxu0 0.0
  %236 = vmatprep.subr.mxu0 0.0
  %237 = vmatpush1.xpose.msra.mxu0 0.0
  %238 = vmatprep.subr.mxu0 0.0
  %239 = vmatpush1.xpose.msra.mxu0 0.0
  %240 = vmatprep.subr.mxu0 0.0
  %241 = vmatpush1.xpose.msra.mxu0 0.0
  %242 = vmatprep.subr.mxu0 0.0
  %243 = vmatpush1.xpose.msra.mxu0 0.0
  %244 = vmatprep.subr.mxu0 0.0
  %245 = vmatpush1.xpose.msra.mxu0 0.0
  %246 = vmatprep.subr.mxu0 0.0
  %247 = vmatpush1.xpose.msra.mxu0 0.0
  %248 = vmatprep.subr.mxu0 0.0
  %249 = vmatpush1.xpose.msra.mxu0 0.0
  %250 = vmatprep.subr.mxu0 0.0
  %251 = vmatpush1.xpose.msra.mxu0 0.0
  %252 = vmatprep.subr.mxu0 0.0
  %253 = vmatpush1.xpose.msra.mxu0 0.0
  %254 = vmatprep.subr.mxu0 0.0
  %255 = vmatpush1.xpose.msra.mxu0 0.0
  %256 = vmatprep.subr.mxu0 0.0
  %257 = vmatpush1.xpose.msra.mxu0 0.0
  %258 = vmatprep.subr.mxu0 0.0
  %259 = vmatpush1.xpose.msra.mxu0 0.0
  %260 = vmatprep.subr.mxu0 0.0
  %261 = vmatpush1.xpose.msra.mxu0 0.0
  %262 = vmatprep.mubr.f32.mxu0 0.0
  %263 = vmatmul.mubr.f32.gmra.mrb[0].mxu0 %v194
  %v264 = vpop.f32.mrb[0].mxu0
  %v265 = vadd.f32 %v183, %v264
  %v266 = vpop.f32.mrb[0].mxu0
  %267 = vdwg.mxu0
  %269 = vrot.lane.b32.xlu0 %v175, 96
  %v270 = vpop.permute.xlu0 %269
  %v271 = vsel %vm193, %v175, 0
  %v273 = vsel %vm193, %v270, 0
  %275 = vmatprep.subr.mxu0 0.0
  %276 = vmatpush1.xpose.msra.mxu0 %v273
  %277 = vmatprep.subr.mxu0 0.0
  %278 = vmatpush1.xpose.msra.mxu0 0.0
  %279 = vmatprep.subr.mxu0 0.0
  %280 = vmatpush1.xpose.msra.mxu0 0.0
  %281 = vmatprep.subr.mxu0 0.0
  %282 = vmatpush1.xpose.msra.mxu0 0.0
  %283 = vmatprep.subr.mxu0 0.0
  %284 = vmatpush1.xpose.msra.mxu0 0.0
  %285 = vmatprep.subr.mxu0 0.0
  %286 = vmatpush1.xpose.msra.mxu0 0.0
  %287 = vmatprep.subr.mxu0 0.0
  %288 = vmatpush1.xpose.msra.mxu0 0.0
  %289 = vmatprep.subr.mxu0 0.0
  %290 = vmatpush1.xpose.msra.mxu0 0.0
  %291 = vmatprep.subr.mxu0 0.0
  %292 = vmatpush1.xpose.msra.mxu0 0.0
  %293 = vmatprep.subr.mxu0 0.0
  %294 = vmatpush1.xpose.msra.mxu0 0.0
  %295 = vmatprep.subr.mxu0 0.0
  %296 = vmatpush1.xpose.msra.mxu0 0.0
  %297 = vmatprep.subr.mxu0 0.0
  %298 = vmatpush1.xpose.msra.mxu0 0.0
  %299 = vmatprep.subr.mxu0 0.0
  %300 = vmatpush1.xpose.msra.mxu0 0.0
  %301 = vmatprep.subr.mxu0 0.0
  %302 = vmatpush1.xpose.msra.mxu0 0.0
  %303 = vmatprep.subr.mxu0 0.0
  %304 = vmatpush1.xpose.msra.mxu0 0.0
  %305 = vmatprep.subr.mxu0 0.0
  %306 = vmatpush1.xpose.msra.mxu0 0.0
  %307 = vmatprep.subr.mxu0 0.0
  %308 = vmatpush1.xpose.msra.mxu0 0.0
  %309 = vmatprep.subr.mxu0 0.0
  %310 = vmatpush1.xpose.msra.mxu0 0.0
  %311 = vmatprep.subr.mxu0 0.0
  %312 = vmatpush1.xpose.msra.mxu0 0.0
  %313 = vmatprep.subr.mxu0 0.0
  %314 = vmatpush1.xpose.msra.mxu0 0.0
  %315 = vmatprep.subr.mxu0 0.0
  %316 = vmatpush1.xpose.msra.mxu0 0.0
  %317 = vmatprep.subr.mxu0 0.0
  %318 = vmatpush1.xpose.msra.mxu0 0.0
  %319 = vmatprep.subr.mxu0 0.0
  %320 = vmatpush1.xpose.msra.mxu0 0.0
  %321 = vmatprep.subr.mxu0 0.0
  %322 = vmatpush1.xpose.msra.mxu0 0.0
  %323 = vmatprep.subr.mxu0 0.0
  %324 = vmatpush1.xpose.msra.mxu0 0.0
  %325 = vmatprep.subr.mxu0 0.0
  %326 = vmatpush1.xpose.msra.mxu0 0.0
  %327 = vmatprep.subr.mxu0 0.0
  %328 = vmatpush1.xpose.msra.mxu0 0.0
  %329 = vmatprep.subr.mxu0 0.0
  %330 = vmatpush1.xpose.msra.mxu0 0.0
  %331 = vmatprep.subr.mxu0 0.0
  %332 = vmatpush1.xpose.msra.mxu0 0.0
  %333 = vmatprep.subr.mxu0 0.0
  %334 = vmatpush1.xpose.msra.mxu0 0.0
  %335 = vmatprep.subr.mxu0 0.0
  %336 = vmatpush1.xpose.msra.mxu0 0.0
  %337 = vmatprep.subr.mxu0 0.0
  %338 = vmatpush1.xpose.msra.mxu0 0.0
  %339 = vmatprep.mubr.f32.mxu0 0.0
  %340 = vmatmul.mubr.f32.gmra.mrb[0].mxu0 %v271
  %v341 = vpop.f32.mrb[0].mxu0
  %v342 = vadd.f32 %v187, %v341
  %v343 = vpop.f32.mrb[0].mxu0
  %344 = vdwg.mxu0
  %v345 = vsel %vm193, %v265, -inf
  %346 = vmax.xlane.f32.xlu0 %v345
  %v347 = vpop.xlane.xlu0 %346
  %v348 = vsel %vm193, %v342, -inf
  %349 = vmax.xlane.f32.xlu0 %v348
  %v350 = vpop.xlane.xlu0 %349
  %v351 = vsub.f32 %v265, %v347
  %v352 = vsub.f32 %v342, %v350
  %v353 = vmul.f32 %v351, 1.442695
  %v354 = vpow.pop %v353
  %v355 = vmul.f32 %v352, 1.442695
  %v356 = vpow.pop %v355
  %v357 = vsel %vm193, %v354, 0.0
  %358 = vadd.xlane.f32.xlu0 %v357
  %v359 = vpop.xlane.xlu0 %358
  %v360 = vsel %vm193, %v356, 0.0
  %361 = vadd.xlane.f32.xlu0 %v360
  %v362 = vpop.xlane.xlu0 %361
  %v363 = vrcp.pop %v359
  %v364 = vmul.f32 %v354, %v363
  %v365 = vrcp.pop %v362
  %v366 = vmul.f32 %v356, %v365
  %367 = vrot.lane.b32.xlu0 %v170, 64
  %v368 = vpop.permute.xlu0 %367
  %v371 = vsel %vm193, %v364, 0
  %373 = vmatprep.subr.mxu0 0.0
  %374 = vmatpush1.msra.mxu0 %v368
  %375 = vmatprep.subr.mxu0 0.0
  %376 = vmatpush1.msra.mxu0 0.0
  %377 = vmatprep.subr.mxu0 0.0
  %378 = vmatpush1.msra.mxu0 0.0
  %379 = vmatprep.subr.mxu0 0.0
  %380 = vmatpush1.msra.mxu0 0.0
  %381 = vmatprep.subr.mxu0 0.0
  %382 = vmatpush1.msra.mxu0 0.0
  %383 = vmatprep.subr.mxu0 0.0
  %384 = vmatpush1.msra.mxu0 0.0
  %385 = vmatprep.subr.mxu0 0.0
  %386 = vmatpush1.msra.mxu0 0.0
  %387 = vmatprep.subr.mxu0 0.0
  %388 = vmatpush1.msra.mxu0 0.0
  %389 = vmatprep.subr.mxu0 0.0
  %390 = vmatpush1.msra.mxu0 0.0
  %391 = vmatprep.subr.mxu0 0.0
  %392 = vmatpush1.msra.mxu0 0.0
  %393 = vmatprep.subr.mxu0 0.0
  %394 = vmatpush1.msra.mxu0 0.0
  %395 = vmatprep.subr.mxu0 0.0
  %396 = vmatpush1.msra.mxu0 0.0
  %397 = vmatprep.subr.mxu0 0.0
  %398 = vmatpush1.msra.mxu0 0.0
  %399 = vmatprep.subr.mxu0 0.0
  %400 = vmatpush1.msra.mxu0 0.0
  %401 = vmatprep.subr.mxu0 0.0
  %402 = vmatpush1.msra.mxu0 0.0
  %403 = vmatprep.subr.mxu0 0.0
  %404 = vmatpush1.msra.mxu0 0.0
  %405 = vmatprep.subr.mxu0 0.0
  %406 = vmatpush1.msra.mxu0 0.0
  %407 = vmatprep.subr.mxu0 0.0
  %408 = vmatpush1.msra.mxu0 0.0
  %409 = vmatprep.subr.mxu0 0.0
  %410 = vmatpush1.msra.mxu0 0.0
  %411 = vmatprep.subr.mxu0 0.0
  %412 = vmatpush1.msra.mxu0 0.0
  %413 = vmatprep.subr.mxu0 0.0
  %414 = vmatpush1.msra.mxu0 0.0
  %415 = vmatprep.subr.mxu0 0.0
  %416 = vmatpush1.msra.mxu0 0.0
  %417 = vmatprep.subr.mxu0 0.0
  %418 = vmatpush1.msra.mxu0 0.0
  %419 = vmatprep.subr.mxu0 0.0
  %420 = vmatpush1.msra.mxu0 0.0
  %421 = vmatprep.subr.mxu0 0.0
  %422 = vmatpush1.msra.mxu0 0.0
  %423 = vmatprep.subr.mxu0 0.0
  %424 = vmatpush1.msra.mxu0 0.0
  %425 = vmatprep.subr.mxu0 0.0
  %426 = vmatpush1.msra.mxu0 0.0
  %427 = vmatprep.subr.mxu0 0.0
  %428 = vmatpush1.msra.mxu0 0.0
  %429 = vmatprep.subr.mxu0 0.0
  %430 = vmatpush1.msra.mxu0 0.0
  %431 = vmatprep.subr.mxu0 0.0
  %432 = vmatpush1.msra.mxu0 0.0
  %433 = vmatprep.subr.mxu0 0.0
  %434 = vmatpush1.msra.mxu0 0.0
  %435 = vmatprep.subr.mxu0 0.0
  %436 = vmatpush1.msra.mxu0 0.0
  %437 = vmatprep.mubr.f32.mxu0 0.0
  %438 = vmatmul.mubr.f32.gmra.mrb[0].mxu0 %v371
  %v439 = vpop.f32.mrb[0].mxu0
  %v440 = vadd.f32 0.0, %v439
  %v441 = vpop.f32.mrb[0].mxu0
  %442 = vdwg.mxu0
  %443 = vrot.lane.b32.xlu0 %v175, 64
  %v444 = vpop.permute.xlu0 %443
  %v447 = vsel %vm193, %v366, 0
  %449 = vmatprep.subr.mxu0 0.0
  %450 = vmatpush1.msra.mxu0 %v444
  %451 = vmatprep.subr.mxu0 0.0
  %452 = vmatpush1.msra.mxu0 0.0
  %453 = vmatprep.subr.mxu0 0.0
  %454 = vmatpush1.msra.mxu0 0.0
  %455 = vmatprep.subr.mxu0 0.0
  %456 = vmatpush1.msra.mxu0 0.0
  %457 = vmatprep.subr.mxu0 0.0
  %458 = vmatpush1.msra.mxu0 0.0
  %459 = vmatprep.subr.mxu0 0.0
  %460 = vmatpush1.msra.mxu0 0.0
  %461 = vmatprep.subr.mxu0 0.0
  %462 = vmatpush1.msra.mxu0 0.0
  %463 = vmatprep.subr.mxu0 0.0
  %464 = vmatpush1.msra.mxu0 0.0
  %465 = vmatprep.subr.mxu0 0.0
  %466 = vmatpush1.msra.mxu0 0.0
  %467 = vmatprep.subr.mxu0 0.0
  %468 = vmatpush1.msra.mxu0 0.0
  %469 = vmatprep.subr.mxu0 0.0
  %470 = vmatpush1.msra.mxu0 0.0
  %471 = vmatprep.subr.mxu0 0.0
  %472 = vmatpush1.msra.mxu0 0.0
  %473 = vmatprep.subr.mxu0 0.0
  %474 = vmatpush1.msra.mxu0 0.0
  %475 = vmatprep.subr.mxu0 0.0
  %476 = vmatpush1.msra.mxu0 0.0
  %477 = vmatprep.subr.mxu0 0.0
  %478 = vmatpush1.msra.mxu0 0.0
  %479 = vmatprep.subr.mxu0 0.0
  %480 = vmatpush1.msra.mxu0 0.0
  %481 = vmatprep.subr.mxu0 0.0
  %482 = vmatpush1.msra.mxu0 0.0
  %483 = vmatprep.subr.mxu0 0.0
  %484 = vmatpush1.msra.mxu0 0.0
  %485 = vmatprep.subr.mxu0 0.0
  %486 = vmatpush1.msra.mxu0 0.0
  %487 = vmatprep.subr.mxu0 0.0
  %488 = vmatpush1.msra.mxu0 0.0
  %489 = vmatprep.subr.mxu0 0.0
  %490 = vmatpush1.msra.mxu0 0.0
  %491 = vmatprep.subr.mxu0 0.0
  %492 = vmatpush1.msra.mxu0 0.0
  %493 = vmatprep.subr.mxu0 0.0
  %494 = vmatpush1.msra.mxu0 0.0
  %495 = vmatprep.subr.mxu0 0.0
  %496 = vmatpush1.msra.mxu0 0.0
  %497 = vmatprep.subr.mxu0 0.0
  %498 = vmatpush1.msra.mxu0 0.0
  %499 = vmatprep.subr.mxu0 0.0
  %500 = vmatpush1.msra.mxu0 0.0
  %501 = vmatprep.subr.mxu0 0.0
  %502 = vmatpush1.msra.mxu0 0.0
  %503 = vmatprep.subr.mxu0 0.0
  %504 = vmatpush1.msra.mxu0 0.0
  %505 = vmatprep.subr.mxu0 0.0
  %506 = vmatpush1.msra.mxu0 0.0
  %507 = vmatprep.subr.mxu0 0.0
  %508 = vmatpush1.msra.mxu0 0.0
  %509 = vmatprep.subr.mxu0 0.0
  %510 = vmatpush1.msra.mxu0 0.0
  %511 = vmatprep.subr.mxu0 0.0
  %512 = vmatpush1.msra.mxu0 0.0
  %513 = vmatprep.mubr.f32.mxu0 0.0
  %514 = vmatmul.mubr.f32.gmra.mrb[0].mxu0 %v447
  %v515 = vpop.f32.mrb[0].mxu0
  %v516 = vadd.f32 0.0, %v515
  %v517 = vpop.f32.mrb[0].mxu0
  %518 = vdwg.mxu0
  %519 = vrot.lane.b32.xlu0 %v170, 120
  %v520 = vpop.permute.xlu0 %519
  %521 = vrot.lane.b32.xlu0 %v170, 88
  %v522 = vpop.permute.xlu0 %521
  %v523 = vsel %vm193, %v520, 0
  %v525 = vsel %vm193, %v522, 0
  %527 = vmatprep.subr.mxu0 0.0
  %528 = vmatpush1.xpose.msra.mxu0 %v525
  %529 = vmatprep.subr.mxu0 0.0
  %530 = vmatpush1.xpose.msra.mxu0 0.0
  %531 = vmatprep.subr.mxu0 0.0
  %532 = vmatpush1.xpose.msra.mxu0 0.0
  %533 = vmatprep.subr.mxu0 0.0
  %534 = vmatpush1.xpose.msra.mxu0 0.0
  %535 = vmatprep.subr.mxu0 0.0
  %536 = vmatpush1.xpose.msra.mxu0 0.0
  %537 = vmatprep.subr.mxu0 0.0
  %538 = vmatpush1.xpose.msra.mxu0 0.0
  %539 = vmatprep.subr.mxu0 0.0
  %540 = vmatpush1.xpose.msra.mxu0 0.0
  %541 = vmatprep.subr.mxu0 0.0
  %542 = vmatpush1.xpose.msra.mxu0 0.0
  %543 = vmatprep.subr.mxu0 0.0
  %544 = vmatpush1.xpose.msra.mxu0 0.0
  %545 = vmatprep.subr.mxu0 0.0
  %546 = vmatpush1.xpose.msra.mxu0 0.0
  %547 = vmatprep.subr.mxu0 0.0
  %548 = vmatpush1.xpose.msra.mxu0 0.0
  %549 = vmatprep.subr.mxu0 0.0
  %550 = vmatpush1.xpose.msra.mxu0 0.0
  %551 = vmatprep.subr.mxu0 0.0
  %552 = vmatpush1.xpose.msra.mxu0 0.0
  %553 = vmatprep.subr.mxu0 0.0
  %554 = vmatpush1.xpose.msra.mxu0 0.0
  %555 = vmatprep.subr.mxu0 0.0
  %556 = vmatpush1.xpose.msra.mxu0 0.0
  %557 = vmatprep.subr.mxu0 0.0
  %558 = vmatpush1.xpose.msra.mxu0 0.0
  %559 = vmatprep.subr.mxu0 0.0
  %560 = vmatpush1.xpose.msra.mxu0 0.0
  %561 = vmatprep.subr.mxu0 0.0
  %562 = vmatpush1.xpose.msra.mxu0 0.0
  %563 = vmatprep.subr.mxu0 0.0
  %564 = vmatpush1.xpose.msra.mxu0 0.0
  %565 = vmatprep.subr.mxu0 0.0
  %566 = vmatpush1.xpose.msra.mxu0 0.0
  %567 = vmatprep.subr.mxu0 0.0
  %568 = vmatpush1.xpose.msra.mxu0 0.0
  %569 = vmatprep.subr.mxu0 0.0
  %570 = vmatpush1.xpose.msra.mxu0 0.0
  %571 = vmatprep.subr.mxu0 0.0
  %572 = vmatpush1.xpose.msra.mxu0 0.0
  %573 = vmatprep.subr.mxu0 0.0
  %574 = vmatpush1.xpose.msra.mxu0 0.0
  %575 = vmatprep.subr.mxu0 0.0
  %576 = vmatpush1.xpose.msra.mxu0 0.0
  %577 = vmatprep.subr.mxu0 0.0
  %578 = vmatpush1.xpose.msra.mxu0 0.0
  %579 = vmatprep.subr.mxu0 0.0
  %580 = vmatpush1.xpose.msra.mxu0 0.0
  %581 = vmatprep.subr.mxu0 0.0
  %582 = vmatpush1.xpose.msra.mxu0 0.0
  %583 = vmatprep.subr.mxu0 0.0
  %584 = vmatpush1.xpose.msra.mxu0 0.0
  %585 = vmatprep.subr.mxu0 0.0
  %586 = vmatpush1.xpose.msra.mxu0 0.0
  %587 = vmatprep.subr.mxu0 0.0
  %588 = vmatpush1.xpose.msra.mxu0 0.0
  %589 = vmatprep.subr.mxu0 0.0
  %590 = vmatpush1.xpose.msra.mxu0 0.0
  %591 = vmatprep.mubr.f32.mxu0 0.0
  %592 = vmatmul.mubr.f32.gmra.mrb[0].mxu0 %v523
  %v593 = vpop.f32.mrb[0].mxu0
  %v594 = vadd.f32 %v183, %v593
  %v595 = vpop.f32.mrb[0].mxu0
  %596 = vdwg.mxu0
  %597 = vrot.lane.b32.xlu0 %v175, 120
  %v598 = vpop.permute.xlu0 %597
  %599 = vrot.lane.b32.xlu0 %v175, 88
  %v600 = vpop.permute.xlu0 %599
  %v601 = vsel %vm193, %v598, 0
  %v603 = vsel %vm193, %v600, 0
  %605 = vmatprep.subr.mxu0 0.0
  %606 = vmatpush1.xpose.msra.mxu0 %v603
  %607 = vmatprep.subr.mxu0 0.0
  %608 = vmatpush1.xpose.msra.mxu0 0.0
  %609 = vmatprep.subr.mxu0 0.0
  %610 = vmatpush1.xpose.msra.mxu0 0.0
  %611 = vmatprep.subr.mxu0 0.0
  %612 = vmatpush1.xpose.msra.mxu0 0.0
  %613 = vmatprep.subr.mxu0 0.0
  %614 = vmatpush1.xpose.msra.mxu0 0.0
  %615 = vmatprep.subr.mxu0 0.0
  %616 = vmatpush1.xpose.msra.mxu0 0.0
  %617 = vmatprep.subr.mxu0 0.0
  %618 = vmatpush1.xpose.msra.mxu0 0.0
  %619 = vmatprep.subr.mxu0 0.0
  %620 = vmatpush1.xpose.msra.mxu0 0.0
  %621 = vmatprep.subr.mxu0 0.0
  %622 = vmatpush1.xpose.msra.mxu0 0.0
  %623 = vmatprep.subr.mxu0 0.0
  %624 = vmatpush1.xpose.msra.mxu0 0.0
  %625 = vmatprep.subr.mxu0 0.0
  %626 = vmatpush1.xpose.msra.mxu0 0.0
  %627 = vmatprep.subr.mxu0 0.0
  %628 = vmatpush1.xpose.msra.mxu0 0.0
  %629 = vmatprep.subr.mxu0 0.0
  %630 = vmatpush1.xpose.msra.mxu0 0.0
  %631 = vmatprep.subr.mxu0 0.0
  %632 = vmatpush1.xpose.msra.mxu0 0.0
  %633 = vmatprep.subr.mxu0 0.0
  %634 = vmatpush1.xpose.msra.mxu0 0.0
  %635 = vmatprep.subr.mxu0 0.0
  %636 = vmatpush1.xpose.msra.mxu0 0.0
  %637 = vmatprep.subr.mxu0 0.0
  %638 = vmatpush1.xpose.msra.mxu0 0.0
  %639 = vmatprep.subr.mxu0 0.0
  %640 = vmatpush1.xpose.msra.mxu0 0.0
  %641 = vmatprep.subr.mxu0 0.0
  %642 = vmatpush1.xpose.msra.mxu0 0.0
  %643 = vmatprep.subr.mxu0 0.0
  %644 = vmatpush1.xpose.msra.mxu0 0.0
  %645 = vmatprep.subr.mxu0 0.0
  %646 = vmatpush1.xpose.msra.mxu0 0.0
  %647 = vmatprep.subr.mxu0 0.0
  %648 = vmatpush1.xpose.msra.mxu0 0.0
  %649 = vmatprep.subr.mxu0 0.0
  %650 = vmatpush1.xpose.msra.mxu0 0.0
  %651 = vmatprep.subr.mxu0 0.0
  %652 = vmatpush1.xpose.msra.mxu0 0.0
  %653 = vmatprep.subr.mxu0 0.0
  %654 = vmatpush1.xpose.msra.mxu0 0.0
  %655 = vmatprep.subr.mxu0 0.0
  %656 = vmatpush1.xpose.msra.mxu0 0.0
  %657 = vmatprep.subr.mxu0 0.0
  %658 = vmatpush1.xpose.msra.mxu0 0.0
  %659 = vmatprep.subr.mxu0 0.0
  %660 = vmatpush1.xpose.msra.mxu0 0.0
  %661 = vmatprep.subr.mxu0 0.0
  %662 = vmatpush1.xpose.msra.mxu0 0.0
  %663 = vmatprep.subr.mxu0 0.0
  %664 = vmatpush1.xpose.msra.mxu0 0.0
  %665 = vmatprep.subr.mxu0 0.0
  %666 = vmatpush1.xpose.msra.mxu0 0.0
  %667 = vmatprep.subr.mxu0 0.0
  %668 = vmatpush1.xpose.msra.mxu0 0.0
  %669 = vmatprep.mubr.f32.mxu0 0.0
  %670 = vmatmul.mubr.f32.gmra.mrb[0].mxu0 %v601
  %v671 = vpop.f32.mrb[0].mxu0
  %v672 = vadd.f32 %v187, %v671
  %v673 = vpop.f32.mrb[0].mxu0
  %674 = vdwg.mxu0
  %v675 = vsel %vm193, %v594, -inf
  %676 = vmax.xlane.f32.xlu0 %v675
  %v677 = vpop.xlane.xlu0 %676
  %v678 = vsel %vm193, %v672, -inf
  %679 = vmax.xlane.f32.xlu0 %v678
  %v680 = vpop.xlane.xlu0 %679
  %v681 = vsub.f32 %v594, %v677
  %v682 = vsub.f32 %v672, %v680
  %v683 = vmul.f32 %v681, 1.442695
  %v684 = vpow.pop %v683
  %v685 = vmul.f32 %v682, 1.442695
  %v686 = vpow.pop %v685
  %v687 = vsel %vm193, %v684, 0.0
  %688 = vadd.xlane.f32.xlu0 %v687
  %v689 = vpop.xlane.xlu0 %688
  %v690 = vsel %vm193, %v686, 0.0
  %691 = vadd.xlane.f32.xlu0 %v690
  %v692 = vpop.xlane.xlu0 %691
  %v693 = vrcp.pop %v689
  %v694 = vmul.f32 %v684, %v693
  %v695 = vrcp.pop %v692
  %v696 = vmul.f32 %v686, %v695
  %697 = vrot.lane.b32.xlu0 %v170, 56
  %v698 = vpop.permute.xlu0 %697
  %v701 = vsel %vm193, %v694, 0
  %703 = vmatprep.subr.mxu0 0.0
  %704 = vmatpush1.msra.mxu0 %v698
  %705 = vmatprep.subr.mxu0 0.0
  %706 = vmatpush1.msra.mxu0 0.0
  %707 = vmatprep.subr.mxu0 0.0
  %708 = vmatpush1.msra.mxu0 0.0
  %709 = vmatprep.subr.mxu0 0.0
  %710 = vmatpush1.msra.mxu0 0.0
  %711 = vmatprep.subr.mxu0 0.0
  %712 = vmatpush1.msra.mxu0 0.0
  %713 = vmatprep.subr.mxu0 0.0
  %714 = vmatpush1.msra.mxu0 0.0
  %715 = vmatprep.subr.mxu0 0.0
  %716 = vmatpush1.msra.mxu0 0.0
  %717 = vmatprep.subr.mxu0 0.0
  %718 = vmatpush1.msra.mxu0 0.0
  %719 = vmatprep.subr.mxu0 0.0
  %720 = vmatpush1.msra.mxu0 0.0
  %721 = vmatprep.subr.mxu0 0.0
  %722 = vmatpush1.msra.mxu0 0.0
  %723 = vmatprep.subr.mxu0 0.0
  %724 = vmatpush1.msra.mxu0 0.0
  %725 = vmatprep.subr.mxu0 0.0
  %726 = vmatpush1.msra.mxu0 0.0
  %727 = vmatprep.subr.mxu0 0.0
  %728 = vmatpush1.msra.mxu0 0.0
  %729 = vmatprep.subr.mxu0 0.0
  %730 = vmatpush1.msra.mxu0 0.0
  %731 = vmatprep.subr.mxu0 0.0
  %732 = vmatpush1.msra.mxu0 0.0
  %733 = vmatprep.subr.mxu0 0.0
  %734 = vmatpush1.msra.mxu0 0.0
  %735 = vmatprep.subr.mxu0 0.0
  %736 = vmatpush1.msra.mxu0 0.0
  %737 = vmatprep.subr.mxu0 0.0
  %738 = vmatpush1.msra.mxu0 0.0
  %739 = vmatprep.subr.mxu0 0.0
  %740 = vmatpush1.msra.mxu0 0.0
  %741 = vmatprep.subr.mxu0 0.0
  %742 = vmatpush1.msra.mxu0 0.0
  %743 = vmatprep.subr.mxu0 0.0
  %744 = vmatpush1.msra.mxu0 0.0
  %745 = vmatprep.subr.mxu0 0.0
  %746 = vmatpush1.msra.mxu0 0.0
  %747 = vmatprep.subr.mxu0 0.0
  %748 = vmatpush1.msra.mxu0 0.0
  %749 = vmatprep.subr.mxu0 0.0
  %750 = vmatpush1.msra.mxu0 0.0
  %751 = vmatprep.subr.mxu0 0.0
  %752 = vmatpush1.msra.mxu0 0.0
  %753 = vmatprep.subr.mxu0 0.0
  %754 = vmatpush1.msra.mxu0 0.0
  %755 = vmatprep.subr.mxu0 0.0
  %756 = vmatpush1.msra.mxu0 0.0
  %757 = vmatprep.subr.mxu0 0.0
  %758 = vmatpush1.msra.mxu0 0.0
  %759 = vmatprep.subr.mxu0 0.0
  %760 = vmatpush1.msra.mxu0 0.0
  %761 = vmatprep.subr.mxu0 0.0
  %762 = vmatpush1.msra.mxu0 0.0
  %763 = vmatprep.subr.mxu0 0.0
  %764 = vmatpush1.msra.mxu0 0.0
  %765 = vmatprep.subr.mxu0 0.0
  %766 = vmatpush1.msra.mxu0 0.0
  %767 = vmatprep.mubr.f32.mxu0 0.0
  %768 = vmatmul.mubr.f32.gmra.mrb[0].mxu0 %v701
  %v769 = vpop.f32.mrb[0].mxu0
  %v770 = vadd.f32 0.0, %v769
  %v771 = vpop.f32.mrb[0].mxu0
  %772 = vdwg.mxu0
  %773 = vrot.lane.b32.xlu0 %v175, 56
  %v774 = vpop.permute.xlu0 %773
  %v777 = vsel %vm193, %v696, 0
  %779 = vmatprep.subr.mxu0 0.0
  %780 = vmatpush1.msra.mxu0 %v774
  %781 = vmatprep.subr.mxu0 0.0
  %782 = vmatpush1.msra.mxu0 0.0
  %783 = vmatprep.subr.mxu0 0.0
  %784 = vmatpush1.msra.mxu0 0.0
  %785 = vmatprep.subr.mxu0 0.0
  %786 = vmatpush1.msra.mxu0 0.0
  %787 = vmatprep.subr.mxu0 0.0
  %788 = vmatpush1.msra.mxu0 0.0
  %789 = vmatprep.subr.mxu0 0.0
  %790 = vmatpush1.msra.mxu0 0.0
  %791 = vmatprep.subr.mxu0 0.0
  %792 = vmatpush1.msra.mxu0 0.0
  %793 = vmatprep.subr.mxu0 0.0
  %794 = vmatpush1.msra.mxu0 0.0
  %795 = vmatprep.subr.mxu0 0.0
  %796 = vmatpush1.msra.mxu0 0.0
  %797 = vmatprep.subr.mxu0 0.0
  %798 = vmatpush1.msra.mxu0 0.0
  %799 = vmatprep.subr.mxu0 0.0
  %800 = vmatpush1.msra.mxu0 0.0
  %801 = vmatprep.subr.mxu0 0.0
  %802 = vmatpush1.msra.mxu0 0.0
  %803 = vmatprep.subr.mxu0 0.0
  %804 = vmatpush1.msra.mxu0 0.0
  %805 = vmatprep.subr.mxu0 0.0
  %806 = vmatpush1.msra.mxu0 0.0
  %807 = vmatprep.subr.mxu0 0.0
  %808 = vmatpush1.msra.mxu0 0.0
  %809 = vmatprep.subr.mxu0 0.0
  %810 = vmatpush1.msra.mxu0 0.0
  %811 = vmatprep.subr.mxu0 0.0
  %812 = vmatpush1.msra.mxu0 0.0
  %813 = vmatprep.subr.mxu0 0.0
  %814 = vmatpush1.msra.mxu0 0.0
  %815 = vmatprep.subr.mxu0 0.0
  %816 = vmatpush1.msra.mxu0 0.0
  %817 = vmatprep.subr.mxu0 0.0
  %818 = vmatpush1.msra.mxu0 0.0
  %819 = vmatprep.subr.mxu0 0.0
  %820 = vmatpush1.msra.mxu0 0.0
  %821 = vmatprep.subr.mxu0 0.0
  %822 = vmatpush1.msra.mxu0 0.0
  %823 = vmatprep.subr.mxu0 0.0
  %824 = vmatpush1.msra.mxu0 0.0
  %825 = vmatprep.subr.mxu0 0.0
  %826 = vmatpush1.msra.mxu0 0.0
  %827 = vmatprep.subr.mxu0 0.0
  %828 = vmatpush1.msra.mxu0 0.0
  %829 = vmatprep.subr.mxu0 0.0
  %830 = vmatpush1.msra.mxu0 0.0
  %831 = vmatprep.subr.mxu0 0.0
  %832 = vmatpush1.msra.mxu0 0.0
  %833 = vmatprep.subr.mxu0 0.0
  %834 = vmatpush1.msra.mxu0 0.0
  %835 = vmatprep.subr.mxu0 0.0
  %836 = vmatpush1.msra.mxu0 0.0
  %837 = vmatprep.subr.mxu0 0.0
  %838 = vmatpush1.msra.mxu0 0.0
  %839 = vmatprep.subr.mxu0 0.0
  %840 = vmatpush1.msra.mxu0 0.0
  %841 = vmatprep.subr.mxu0 0.0
  %842 = vmatpush1.msra.mxu0 0.0
  %843 = vmatprep.mubr.f32.mxu0 0.0
  %844 = vmatmul.mubr.f32.gmra.mrb[0].mxu0 %v777
  %v845 = vpop.f32.mrb[0].mxu0
  %v846 = vadd.f32 0.0, %v845
  %v847 = vpop.f32.mrb[0].mxu0
  %848 = vdwg.mxu0
  %850 = vrot.lane.b32.xlu0 %v36, 32
  %v851 = vpop.permute.xlu0 %850
  %v854 = vsel %vm193, %v770, 0
  %v857 = vsel %vm193, %v846, 0
  %859 = vmatprep.subr.mxu0 0.0
  %860 = vmatpush1.msra.mxu0 %v851
  %861 = vmatprep.subr.mxu0 0.0
  %862 = vmatpush1.msra.mxu0 0.0
  %863 = vmatprep.subr.mxu0 0.0
  %864 = vmatpush1.msra.mxu0 0.0
  %865 = vmatprep.subr.mxu0 0.0
  %866 = vmatpush1.msra.mxu0 0.0
  %867 = vmatprep.subr.mxu0 0.0
  %868 = vmatpush1.msra.mxu0 0.0
  %869 = vmatprep.subr.mxu0 0.0
  %870 = vmatpush1.msra.mxu0 0.0
  %871 = vmatprep.subr.mxu0 0.0
  %872 = vmatpush1.msra.mxu0 0.0
  %873 = vmatprep.subr.mxu0 0.0
  %874 = vmatpush1.msra.mxu0 0.0
  %875 = vmatprep.subr.mxu0 0.0
  %876 = vmatpush1.msra.mxu0 0.0
  %877 = vmatprep.subr.mxu0 0.0
  %878 = vmatpush1.msra.mxu0 0.0
  %879 = vmatprep.subr.mxu0 0.0
  %880 = vmatpush1.msra.mxu0 0.0
  %881 = vmatprep.subr.mxu0 0.0
  %882 = vmatpush1.msra.mxu0 0.0
  %883 = vmatprep.subr.mxu0 0.0
  %884 = vmatpush1.msra.mxu0 0.0
  %885 = vmatprep.subr.mxu0 0.0
  %886 = vmatpush1.msra.mxu0 0.0
  %887 = vmatprep.subr.mxu0 0.0
  %888 = vmatpush1.msra.mxu0 0.0
  %889 = vmatprep.subr.mxu0 0.0
  %890 = vmatpush1.msra.mxu0 0.0
  %891 = vmatprep.subr.mxu0 0.0
  %892 = vmatpush1.msra.mxu0 0.0
  %893 = vmatprep.subr.mxu0 0.0
  %894 = vmatpush1.msra.mxu0 0.0
  %895 = vmatprep.subr.mxu0 0.0
  %896 = vmatpush1.msra.mxu0 0.0
  %897 = vmatprep.subr.mxu0 0.0
  %898 = vmatpush1.msra.mxu0 0.0
  %899 = vmatprep.subr.mxu0 0.0
  %900 = vmatpush1.msra.mxu0 0.0
  %901 = vmatprep.subr.mxu0 0.0
  %902 = vmatpush1.msra.mxu0 0.0
  %903 = vmatprep.subr.mxu0 0.0
  %904 = vmatpush1.msra.mxu0 0.0
  %905 = vmatprep.subr.mxu0 0.0
  %906 = vmatpush1.msra.mxu0 0.0
  %907 = vmatprep.subr.mxu0 0.0
  %908 = vmatpush1.msra.mxu0 0.0
  %909 = vmatprep.subr.mxu0 0.0
  %910 = vmatpush1.msra.mxu0 0.0
  %911 = vmatprep.subr.mxu0 0.0
  %912 = vmatpush1.msra.mxu0 0.0
  %913 = vmatprep.subr.mxu0 0.0
  %914 = vmatpush1.msra.mxu0 0.0
  %915 = vmatprep.subr.mxu0 0.0
  %916 = vmatpush1.msra.mxu0 0.0
  %917 = vmatprep.subr.mxu0 0.0
  %918 = vmatpush1.msra.mxu0 0.0
  %919 = vmatprep.subr.mxu0 0.0
  %920 = vmatpush1.msra.mxu0 0.0
  %921 = vmatprep.subr.mxu0 0.0
  %922 = vmatpush1.msra.mxu0 0.0
  %923 = vmatprep.mubr.f32.mxu0 0.0
  %924 = vmatmul.mubr.f32.gmra.mrb[0].mxu0 %v854
  %v925 = vpop.f32.mrb[0].mxu0
  %v926 = vadd.f32 0.0, %v925
  %v927 = vpop.f32.mrb[0].mxu0
  %928 = vmatprep.mubr.f32.mxu0 0.0
  %929 = vmatmul.mubr.f32.gmra.mrb[0].mxu0 %v857
  %v930 = vpop.f32.mrb[0].mxu0
  %v931 = vadd.f32 0.0, %v930
  %v932 = vpop.f32.mrb[0].mxu0
  %933 = vdwg.mxu0
  %935 = vrot.lane.b32.xlu0 %v35, 32
  %v936 = vpop.permute.xlu0 %935
  %v939 = vsel %vm193, %v440, 0
  %v942 = vsel %vm193, %v516, 0
  %944 = vmatprep.subr.mxu0 0.0
  %945 = vmatpush1.msra.mxu0 %v936
  %946 = vmatprep.subr.mxu0 0.0
  %947 = vmatpush1.msra.mxu0 0.0
  %948 = vmatprep.subr.mxu0 0.0
  %949 = vmatpush1.msra.mxu0 0.0
  %950 = vmatprep.subr.mxu0 0.0
  %951 = vmatpush1.msra.mxu0 0.0
  %952 = vmatprep.subr.mxu0 0.0
  %953 = vmatpush1.msra.mxu0 0.0
  %954 = vmatprep.subr.mxu0 0.0
  %955 = vmatpush1.msra.mxu0 0.0
  %956 = vmatprep.subr.mxu0 0.0
  %957 = vmatpush1.msra.mxu0 0.0
  %958 = vmatprep.subr.mxu0 0.0
  %959 = vmatpush1.msra.mxu0 0.0
  %960 = vmatprep.subr.mxu0 0.0
  %961 = vmatpush1.msra.mxu0 0.0
  %962 = vmatprep.subr.mxu0 0.0
  %963 = vmatpush1.msra.mxu0 0.0
  %964 = vmatprep.subr.mxu0 0.0
  %965 = vmatpush1.msra.mxu0 0.0
  %966 = vmatprep.subr.mxu0 0.0
  %967 = vmatpush1.msra.mxu0 0.0
  %968 = vmatprep.subr.mxu0 0.0
  %969 = vmatpush1.msra.mxu0 0.0
  %970 = vmatprep.subr.mxu0 0.0
  %971 = vmatpush1.msra.mxu0 0.0
  %972 = vmatprep.subr.mxu0 0.0
  %973 = vmatpush1.msra.mxu0 0.0
  %974 = vmatprep.subr.mxu0 0.0
  %975 = vmatpush1.msra.mxu0 0.0
  %976 = vmatprep.subr.mxu0 0.0
  %977 = vmatpush1.msra.mxu0 0.0
  %978 = vmatprep.subr.mxu0 0.0
  %979 = vmatpush1.msra.mxu0 0.0
  %980 = vmatprep.subr.mxu0 0.0
  %981 = vmatpush1.msra.mxu0 0.0
  %982 = vmatprep.subr.mxu0 0.0
  %983 = vmatpush1.msra.mxu0 0.0
  %984 = vmatprep.subr.mxu0 0.0
  %985 = vmatpush1.msra.mxu0 0.0
  %986 = vmatprep.subr.mxu0 0.0
  %987 = vmatpush1.msra.mxu0 0.0
  %988 = vmatprep.subr.mxu0 0.0
  %989 = vmatpush1.msra.mxu0 0.0
  %990 = vmatprep.subr.mxu0 0.0
  %991 = vmatpush1.msra.mxu0 0.0
  %992 = vmatprep.subr.mxu0 0.0
  %993 = vmatpush1.msra.mxu0 0.0
  %994 = vmatprep.subr.mxu0 0.0
  %995 = vmatpush1.msra.mxu0 0.0
  %996 = vmatprep.subr.mxu0 0.0
  %997 = vmatpush1.msra.mxu0 0.0
  %998 = vmatprep.subr.mxu0 0.0
  %999 = vmatpush1.msra.mxu0 0.0
  %1000 = vmatprep.subr.mxu0 0.0
  %1001 = vmatpush1.msra.mxu0 0.0
  %1002 = vmatprep.subr.mxu0 0.0
  %1003 = vmatpush1.msra.mxu0 0.0
  %1004 = vmatprep.subr.mxu0 0.0
  %1005 = vmatpush1.msra.mxu0 0.0
  %1006 = vmatprep.subr.mxu0 0.0
  %1007 = vmatpush1.msra.mxu0 0.0
  %1008 = vmatprep.mubr.f32.mxu0 0.0
  %1009 = vmatmul.mubr.f32.gmra.mrb[0].mxu0 %v939
  %v1010 = vpop.f32.mrb[0].mxu0
  %v1011 = vadd.f32 %v926, %v1010
  %v1012 = vpop.f32.mrb[0].mxu0
  %1013 = vmatprep.mubr.f32.mxu0 0.0
  %1014 = vmatmul.mubr.f32.gmra.mrb[0].mxu0 %v942
  %v1015 = vpop.f32.mrb[0].mxu0
  %v1016 = vadd.f32 %v931, %v1015
  %v1017 = vpop.f32.mrb[0].mxu0
  %1018 = vdwg.mxu0
  %1019 = vrot.lane.b32.xlu0 %v170, 112
  %v1020 = vpop.permute.xlu0 %1019
  %1021 = vrot.lane.b32.xlu0 %v170, 80
  %v1022 = vpop.permute.xlu0 %1021
  %v1023 = vsel %vm193, %v1020, 0
  %v1025 = vsel %vm193, %v1022, 0
  %1027 = vmatprep.subr.mxu0 0.0
  %1028 = vmatpush1.xpose.msra.mxu0 %v1025
  %1029 = vmatprep.subr.mxu0 0.0
  %1030 = vmatpush1.xpose.msra.mxu0 0.0
  %1031 = vmatprep.subr.mxu0 0.0
  %1032 = vmatpush1.xpose.msra.mxu0 0.0
  %1033 = vmatprep.subr.mxu0 0.0
  %1034 = vmatpush1.xpose.msra.mxu0 0.0
  %1035 = vmatprep.subr.mxu0 0.0
  %1036 = vmatpush1.xpose.msra.mxu0 0.0
  %1037 = vmatprep.subr.mxu0 0.0
  %1038 = vmatpush1.xpose.msra.mxu0 0.0
  %1039 = vmatprep.subr.mxu0 0.0
  %1040 = vmatpush1.xpose.msra.mxu0 0.0
  %1041 = vmatprep.subr.mxu0 0.0
  %1042 = vmatpush1.xpose.msra.mxu0 0.0
  %1043 = vmatprep.subr.mxu0 0.0
  %1044 = vmatpush1.xpose.msra.mxu0 0.0
  %1045 = vmatprep.subr.mxu0 0.0
  %1046 = vmatpush1.xpose.msra.mxu0 0.0
  %1047 = vmatprep.subr.mxu0 0.0
  %1048 = vmatpush1.xpose.msra.mxu0 0.0
  %1049 = vmatprep.subr.mxu0 0.0
  %1050 = vmatpush1.xpose.msra.mxu0 0.0
  %1051 = vmatprep.subr.mxu0 0.0
  %1052 = vmatpush1.xpose.msra.mxu0 0.0
  %1053 = vmatprep.subr.mxu0 0.0
  %1054 = vmatpush1.xpose.msra.mxu0 0.0
  %1055 = vmatprep.subr.mxu0 0.0
  %1056 = vmatpush1.xpose.msra.mxu0 0.0
  %1057 = vmatprep.subr.mxu0 0.0
  %1058 = vmatpush1.xpose.msra.mxu0 0.0
  %1059 = vmatprep.subr.mxu0 0.0
  %1060 = vmatpush1.xpose.msra.mxu0 0.0
  %1061 = vmatprep.subr.mxu0 0.0
  %1062 = vmatpush1.xpose.msra.mxu0 0.0
  %1063 = vmatprep.subr.mxu0 0.0
  %1064 = vmatpush1.xpose.msra.mxu0 0.0
  %1065 = vmatprep.subr.mxu0 0.0
  %1066 = vmatpush1.xpose.msra.mxu0 0.0
  %1067 = vmatprep.subr.mxu0 0.0
  %1068 = vmatpush1.xpose.msra.mxu0 0.0
  %1069 = vmatprep.subr.mxu0 0.0
  %1070 = vmatpush1.xpose.msra.mxu0 0.0
  %1071 = vmatprep.subr.mxu0 0.0
  %1072 = vmatpush1.xpose.msra.mxu0 0.0
  %1073 = vmatprep.subr.mxu0 0.0
  %1074 = vmatpush1.xpose.msra.mxu0 0.0
  %1075 = vmatprep.subr.mxu0 0.0
  %1076 = vmatpush1.xpose.msra.mxu0 0.0
  %1077 = vmatprep.subr.mxu0 0.0
  %1078 = vmatpush1.xpose.msra.mxu0 0.0
  %1079 = vmatprep.subr.mxu0 0.0
  %1080 = vmatpush1.xpose.msra.mxu0 0.0
  %1081 = vmatprep.subr.mxu0 0.0
  %1082 = vmatpush1.xpose.msra.mxu0 0.0
  %1083 = vmatprep.subr.mxu0 0.0
  %1084 = vmatpush1.xpose.msra.mxu0 0.0
  %1085 = vmatprep.subr.mxu0 0.0
  %1086 = vmatpush1.xpose.msra.mxu0 0.0
  %1087 = vmatprep.subr.mxu0 0.0
  %1088 = vmatpush1.xpose.msra.mxu0 0.0
  %1089 = vmatprep.subr.mxu0 0.0
  %1090 = vmatpush1.xpose.msra.mxu0 0.0
  %1091 = vmatprep.mubr.f32.mxu0 0.0
  %1092 = vmatmul.mubr.f32.gmra.mrb[0].mxu0 %v1023
  %v1093 = vpop.f32.mrb[0].mxu0
  %v1094 = vadd.f32 %v183, %v1093
  %v1095 = vpop.f32.mrb[0].mxu0
  %1096 = vdwg.mxu0
  %1097 = vrot.lane.b32.xlu0 %v175, 112
  %v1098 = vpop.permute.xlu0 %1097
  %1099 = vrot.lane.b32.xlu0 %v175, 80
  %v1100 = vpop.permute.xlu0 %1099
  %v1101 = vsel %vm193, %v1098, 0
  %v1103 = vsel %vm193, %v1100, 0
  %1105 = vmatprep.subr.mxu0 0.0
  %1106 = vmatpush1.xpose.msra.mxu0 %v1103
  %1107 = vmatprep.subr.mxu0 0.0
  %1108 = vmatpush1.xpose.msra.mxu0 0.0
  %1109 = vmatprep.subr.mxu0 0.0
  %1110 = vmatpush1.xpose.msra.mxu0 0.0
  %1111 = vmatprep.subr.mxu0 0.0
  %1112 = vmatpush1.xpose.msra.mxu0 0.0
  %1113 = vmatprep.subr.mxu0 0.0
  %1114 = vmatpush1.xpose.msra.mxu0 0.0
  %1115 = vmatprep.subr.mxu0 0.0
  %1116 = vmatpush1.xpose.msra.mxu0 0.0
  %1117 = vmatprep.subr.mxu0 0.0
  %1118 = vmatpush1.xpose.msra.mxu0 0.0
  %1119 = vmatprep.subr.mxu0 0.0
  %1120 = vmatpush1.xpose.msra.mxu0 0.0
  %1121 = vmatprep.subr.mxu0 0.0
  %1122 = vmatpush1.xpose.msra.mxu0 0.0
  %1123 = vmatprep.subr.mxu0 0.0
  %1124 = vmatpush1.xpose.msra.mxu0 0.0
  %1125 = vmatprep.subr.mxu0 0.0
  %1126 = vmatpush1.xpose.msra.mxu0 0.0
  %1127 = vmatprep.subr.mxu0 0.0
  %1128 = vmatpush1.xpose.msra.mxu0 0.0
  %1129 = vmatprep.subr.mxu0 0.0
  %1130 = vmatpush1.xpose.msra.mxu0 0.0
  %1131 = vmatprep.subr.mxu0 0.0
  %1132 = vmatpush1.xpose.msra.mxu0 0.0
  %1133 = vmatprep.subr.mxu0 0.0
  %1134 = vmatpush1.xpose.msra.mxu0 0.0
  %1135 = vmatprep.subr.mxu0 0.0
  %1136 = vmatpush1.xpose.msra.mxu0 0.0
  %1137 = vmatprep.subr.mxu0 0.0
  %1138 = vmatpush1.xpose.msra.mxu0 0.0
  %1139 = vmatprep.subr.mxu0 0.0
  %1140 = vmatpush1.xpose.msra.mxu0 0.0
  %1141 = vmatprep.subr.mxu0 0.0
  %1142 = vmatpush1.xpose.msra.mxu0 0.0
  %1143 = vmatprep.subr.mxu0 0.0
  %1144 = vmatpush1.xpose.msra.mxu0 0.0
  %1145 = vmatprep.subr.mxu0 0.0
  %1146 = vmatpush1.xpose.msra.mxu0 0.0
  %1147 = vmatprep.subr.mxu0 0.0
  %1148 = vmatpush1.xpose.msra.mxu0 0.0
  %1149 = vmatprep.subr.mxu0 0.0
  %1150 = vmatpush1.xpose.msra.mxu0 0.0
  %1151 = vmatprep.subr.mxu0 0.0
  %1152 = vmatpush1.xpose.msra.mxu0 0.0
  %1153 = vmatprep.subr.mxu0 0.0
  %1154 = vmatpush1.xpose.msra.mxu0 0.0
  %1155 = vmatprep.subr.mxu0 0.0
  %1156 = vmatpush1.xpose.msra.mxu0 0.0
  %1157 = vmatprep.subr.mxu0 0.0
  %1158 = vmatpush1.xpose.msra.mxu0 0.0
  %1159 = vmatprep.subr.mxu0 0.0
  %1160 = vmatpush1.xpose.msra.mxu0 0.0
  %1161 = vmatprep.subr.mxu0 0.0
  %1162 = vmatpush1.xpose.msra.mxu0 0.0
  %1163 = vmatprep.subr.mxu0 0.0
  %1164 = vmatpush1.xpose.msra.mxu0 0.0
  %1165 = vmatprep.subr.mxu0 0.0
  %1166 = vmatpush1.xpose.msra.mxu0 0.0
  %1167 = vmatprep.subr.mxu0 0.0
  %1168 = vmatpush1.xpose.msra.mxu0 0.0
  %1169 = vmatprep.mubr.f32.mxu0 0.0
  %1170 = vmatmul.mubr.f32.gmra.mrb[0].mxu0 %v1101
  %v1171 = vpop.f32.mrb[0].mxu0
  %v1172 = vadd.f32 %v187, %v1171
  %v1173 = vpop.f32.mrb[0].mxu0
  %1174 = vdwg.mxu0
  %v1175 = vsel %vm193, %v1094, -inf
  %1176 = vmax.xlane.f32.xlu0 %v1175
  %v1177 = vpop.xlane.xlu0 %1176
  %v1178 = vsel %vm193, %v1172, -inf
  %1179 = vmax.xlane.f32.xlu0 %v1178
  %v1180 = vpop.xlane.xlu0 %1179
  %v1181 = vsub.f32 %v1094, %v1177
  %v1182 = vsub.f32 %v1172, %v1180
  %v1183 = vmul.f32 %v1181, 1.442695
  %v1184 = vpow.pop %v1183
  %v1185 = vmul.f32 %v1182, 1.442695
  %v1186 = vpow.pop %v1185
  %v1187 = vsel %vm193, %v1184, 0.0
  %1188 = vadd.xlane.f32.xlu0 %v1187
  %v1189 = vpop.xlane.xlu0 %1188
  %v1190 = vsel %vm193, %v1186, 0.0
  %1191 = vadd.xlane.f32.xlu0 %v1190
  %v1192 = vpop.xlane.xlu0 %1191
  %v1193 = vrcp.pop %v1189
  %v1194 = vmul.f32 %v1184, %v1193
  %v1195 = vrcp.pop %v1192
  %v1196 = vmul.f32 %v1186, %v1195
  %1197 = vrot.lane.b32.xlu0 %v170, 48
  %v1198 = vpop.permute.xlu0 %1197
  %v1201 = vsel %vm193, %v1194, 0
  %1203 = vmatprep.subr.mxu0 0.0
  %1204 = vmatpush1.msra.mxu0 %v1198
  %1205 = vmatprep.subr.mxu0 0.0
  %1206 = vmatpush1.msra.mxu0 0.0
  %1207 = vmatprep.subr.mxu0 0.0
  %1208 = vmatpush1.msra.mxu0 0.0
  %1209 = vmatprep.subr.mxu0 0.0
  %1210 = vmatpush1.msra.mxu0 0.0
  %1211 = vmatprep.subr.mxu0 0.0
  %1212 = vmatpush1.msra.mxu0 0.0
  %1213 = vmatprep.subr.mxu0 0.0
  %1214 = vmatpush1.msra.mxu0 0.0
  %1215 = vmatprep.subr.mxu0 0.0
  %1216 = vmatpush1.msra.mxu0 0.0
  %1217 = vmatprep.subr.mxu0 0.0
  %1218 = vmatpush1.msra.mxu0 0.0
  %1219 = vmatprep.subr.mxu0 0.0
  %1220 = vmatpush1.msra.mxu0 0.0
  %1221 = vmatprep.subr.mxu0 0.0
  %1222 = vmatpush1.msra.mxu0 0.0
  %1223 = vmatprep.subr.mxu0 0.0
  %1224 = vmatpush1.msra.mxu0 0.0
  %1225 = vmatprep.subr.mxu0 0.0
  %1226 = vmatpush1.msra.mxu0 0.0
  %1227 = vmatprep.subr.mxu0 0.0
  %1228 = vmatpush1.msra.mxu0 0.0
  %1229 = vmatprep.subr.mxu0 0.0
  %1230 = vmatpush1.msra.mxu0 0.0
  %1231 = vmatprep.subr.mxu0 0.0
  %1232 = vmatpush1.msra.mxu0 0.0
  %1233 = vmatprep.subr.mxu0 0.0
  %1234 = vmatpush1.msra.mxu0 0.0
  %1235 = vmatprep.subr.mxu0 0.0
  %1236 = vmatpush1.msra.mxu0 0.0
  %1237 = vmatprep.subr.mxu0 0.0
  %1238 = vmatpush1.msra.mxu0 0.0
  %1239 = vmatprep.subr.mxu0 0.0
  %1240 = vmatpush1.msra.mxu0 0.0
  %1241 = vmatprep.subr.mxu0 0.0
  %1242 = vmatpush1.msra.mxu0 0.0
  %1243 = vmatprep.subr.mxu0 0.0
  %1244 = vmatpush1.msra.mxu0 0.0
  %1245 = vmatprep.subr.mxu0 0.0
  %1246 = vmatpush1.msra.mxu0 0.0
  %1247 = vmatprep.subr.mxu0 0.0
  %1248 = vmatpush1.msra.mxu0 0.0
  %1249 = vmatprep.subr.mxu0 0.0
  %1250 = vmatpush1.msra.mxu0 0.0
  %1251 = vmatprep.subr.mxu0 0.0
  %1252 = vmatpush1.msra.mxu0 0.0
  %1253 = vmatprep.subr.mxu0 0.0
  %1254 = vmatpush1.msra.mxu0 0.0
  %1255 = vmatprep.subr.mxu0 0.0
  %1256 = vmatpush1.msra.mxu0 0.0
  %1257 = vmatprep.subr.mxu0 0.0
  %1258 = vmatpush1.msra.mxu0 0.0
  %1259 = vmatprep.subr.mxu0 0.0
  %1260 = vmatpush1.msra.mxu0 0.0
  %1261 = vmatprep.subr.mxu0 0.0
  %1262 = vmatpush1.msra.mxu0 0.0
  %1263 = vmatprep.subr.mxu0 0.0
  %1264 = vmatpush1.msra.mxu0 0.0
  %1265 = vmatprep.subr.mxu0 0.0
  %1266 = vmatpush1.msra.mxu0 0.0
  %1267 = vmatprep.mubr.f32.mxu0 0.0
  %1268 = vmatmul.mubr.f32.gmra.mrb[0].mxu0 %v1201
  %v1269 = vpop.f32.mrb[0].mxu0
  %v1270 = vadd.f32 0.0, %v1269
  %v1271 = vpop.f32.mrb[0].mxu0
  %1272 = vdwg.mxu0
  %1273 = vrot.lane.b32.xlu0 %v175, 48
  %v1274 = vpop.permute.xlu0 %1273
  %v1277 = vsel %vm193, %v1196, 0
  %1279 = vmatprep.subr.mxu0 0.0
  %1280 = vmatpush1.msra.mxu0 %v1274
  %1281 = vmatprep.subr.mxu0 0.0
  %1282 = vmatpush1.msra.mxu0 0.0
  %1283 = vmatprep.subr.mxu0 0.0
  %1284 = vmatpush1.msra.mxu0 0.0
  %1285 = vmatprep.subr.mxu0 0.0
  %1286 = vmatpush1.msra.mxu0 0.0
  %1287 = vmatprep.subr.mxu0 0.0
  %1288 = vmatpush1.msra.mxu0 0.0
  %1289 = vmatprep.subr.mxu0 0.0
  %1290 = vmatpush1.msra.mxu0 0.0
  %1291 = vmatprep.subr.mxu0 0.0
  %1292 = vmatpush1.msra.mxu0 0.0
  %1293 = vmatprep.subr.mxu0 0.0
  %1294 = vmatpush1.msra.mxu0 0.0
  %1295 = vmatprep.subr.mxu0 0.0
  %1296 = vmatpush1.msra.mxu0 0.0
  %1297 = vmatprep.subr.mxu0 0.0
  %1298 = vmatpush1.msra.mxu0 0.0
  %1299 = vmatprep.subr.mxu0 0.0
  %1300 = vmatpush1.msra.mxu0 0.0
  %1301 = vmatprep.subr.mxu0 0.0
  %1302 = vmatpush1.msra.mxu0 0.0
  %1303 = vmatprep.subr.mxu0 0.0
  %1304 = vmatpush1.msra.mxu0 0.0
  %1305 = vmatprep.subr.mxu0 0.0
  %1306 = vmatpush1.msra.mxu0 0.0
  %1307 = vmatprep.subr.mxu0 0.0
  %1308 = vmatpush1.msra.mxu0 0.0
  %1309 = vmatprep.subr.mxu0 0.0
  %1310 = vmatpush1.msra.mxu0 0.0
  %1311 = vmatprep.subr.mxu0 0.0
  %1312 = vmatpush1.msra.mxu0 0.0
  %1313 = vmatprep.subr.mxu0 0.0
  %1314 = vmatpush1.msra.mxu0 0.0
  %1315 = vmatprep.subr.mxu0 0.0
  %1316 = vmatpush1.msra.mxu0 0.0
  %1317 = vmatprep.subr.mxu0 0.0
  %1318 = vmatpush1.msra.mxu0 0.0
  %1319 = vmatprep.subr.mxu0 0.0
  %1320 = vmatpush1.msra.mxu0 0.0
  %1321 = vmatprep.subr.mxu0 0.0
  %1322 = vmatpush1.msra.mxu0 0.0
  %1323 = vmatprep.subr.mxu0 0.0
  %1324 = vmatpush1.msra.mxu0 0.0
  %1325 = vmatprep.subr.mxu0 0.0
  %1326 = vmatpush1.msra.mxu0 0.0
  %1327 = vmatprep.subr.mxu0 0.0
  %1328 = vmatpush1.msra.mxu0 0.0
  %1329 = vmatprep.subr.mxu0 0.0
  %1330 = vmatpush1.msra.mxu0 0.0
  %1331 = vmatprep.subr.mxu0 0.0
  %1332 = vmatpush1.msra.mxu0 0.0
  %1333 = vmatprep.subr.mxu0 0.0
  %1334 = vmatpush1.msra.mxu0 0.0
  %1335 = vmatprep.subr.mxu0 0.0
  %1336 = vmatpush1.msra.mxu0 0.0
  %1337 = vmatprep.subr.mxu0 0.0
  %1338 = vmatpush1.msra.mxu0 0.0
  %1339 = vmatprep.subr.mxu0 0.0
  %1340 = vmatpush1.msra.mxu0 0.0
  %1341 = vmatprep.subr.mxu0 0.0
  %1342 = vmatpush1.msra.mxu0 0.0
  %1343 = vmatprep.mubr.f32.mxu0 0.0
  %1344 = vmatmul.mubr.f32.gmra.mrb[0].mxu0 %v1277
  %v1345 = vpop.f32.mrb[0].mxu0
  %v1346 = vadd.f32 0.0, %v1345
  %v1347 = vpop.f32.mrb[0].mxu0
  %1348 = vdwg.mxu0
  %1350 = vrot.lane.b32.xlu0 %v37, 32
  %v1351 = vpop.permute.xlu0 %1350
  %v1354 = vsel %vm193, %v1270, 0
  %v1357 = vsel %vm193, %v1346, 0
  %1359 = vmatprep.subr.mxu0 0.0
  %1360 = vmatpush1.msra.mxu0 %v1351
  %1361 = vmatprep.subr.mxu0 0.0
  %1362 = vmatpush1.msra.mxu0 0.0
  %1363 = vmatprep.subr.mxu0 0.0
  %1364 = vmatpush1.msra.mxu0 0.0
  %1365 = vmatprep.subr.mxu0 0.0
  %1366 = vmatpush1.msra.mxu0 0.0
  %1367 = vmatprep.subr.mxu0 0.0
  %1368 = vmatpush1.msra.mxu0 0.0
  %1369 = vmatprep.subr.mxu0 0.0
  %1370 = vmatpush1.msra.mxu0 0.0
  %1371 = vmatprep.subr.mxu0 0.0
  %1372 = vmatpush1.msra.mxu0 0.0
  %1373 = vmatprep.subr.mxu0 0.0
  %1374 = vmatpush1.msra.mxu0 0.0
  %1375 = vmatprep.subr.mxu0 0.0
  %1376 = vmatpush1.msra.mxu0 0.0
  %1377 = vmatprep.subr.mxu0 0.0
  %1378 = vmatpush1.msra.mxu0 0.0
  %1379 = vmatprep.subr.mxu0 0.0
  %1380 = vmatpush1.msra.mxu0 0.0
  %1381 = vmatprep.subr.mxu0 0.0
  %1382 = vmatpush1.msra.mxu0 0.0
  %1383 = vmatprep.subr.mxu0 0.0
  %1384 = vmatpush1.msra.mxu0 0.0
  %1385 = vmatprep.subr.mxu0 0.0
  %1386 = vmatpush1.msra.mxu0 0.0
  %1387 = vmatprep.subr.mxu0 0.0
  %1388 = vmatpush1.msra.mxu0 0.0
  %1389 = vmatprep.subr.mxu0 0.0
  %1390 = vmatpush1.msra.mxu0 0.0
  %1391 = vmatprep.subr.mxu0 0.0
  %1392 = vmatpush1.msra.mxu0 0.0
  %1393 = vmatprep.subr.mxu0 0.0
  %1394 = vmatpush1.msra.mxu0 0.0
  %1395 = vmatprep.subr.mxu0 0.0
  %1396 = vmatpush1.msra.mxu0 0.0
  %1397 = vmatprep.subr.mxu0 0.0
  %1398 = vmatpush1.msra.mxu0 0.0
  %1399 = vmatprep.subr.mxu0 0.0
  %1400 = vmatpush1.msra.mxu0 0.0
  %1401 = vmatprep.subr.mxu0 0.0
  %1402 = vmatpush1.msra.mxu0 0.0
  %1403 = vmatprep.subr.mxu0 0.0
  %1404 = vmatpush1.msra.mxu0 0.0
  %1405 = vmatprep.subr.mxu0 0.0
  %1406 = vmatpush1.msra.mxu0 0.0
  %1407 = vmatprep.subr.mxu0 0.0
  %1408 = vmatpush1.msra.mxu0 0.0
  %1409 = vmatprep.subr.mxu0 0.0
  %1410 = vmatpush1.msra.mxu0 0.0
  %1411 = vmatprep.subr.mxu0 0.0
  %1412 = vmatpush1.msra.mxu0 0.0
  %1413 = vmatprep.subr.mxu0 0.0
  %1414 = vmatpush1.msra.mxu0 0.0
  %1415 = vmatprep.subr.mxu0 0.0
  %1416 = vmatpush1.msra.mxu0 0.0
  %1417 = vmatprep.subr.mxu0 0.0
  %1418 = vmatpush1.msra.mxu0 0.0
  %1419 = vmatprep.subr.mxu0 0.0
  %1420 = vmatpush1.msra.mxu0 0.0
  %1421 = vmatprep.subr.mxu0 0.0
  %1422 = vmatpush1.msra.mxu0 0.0
  %1423 = vmatprep.mubr.f32.mxu0 0.0
  %1424 = vmatmul.mubr.f32.gmra.mrb[0].mxu0 %v1354
  %v1425 = vpop.f32.mrb[0].mxu0
  %v1426 = vadd.f32 0.0, %v1425
  %v1427 = vpop.f32.mrb[0].mxu0
  %1428 = vmatprep.mubr.f32.mxu0 0.0
  %1429 = vmatmul.mubr.f32.gmra.mrb[0].mxu0 %v1357
  %v1430 = vpop.f32.mrb[0].mxu0
  %v1431 = vadd.f32 0.0, %v1430
  %v1432 = vpop.f32.mrb[0].mxu0
  %1433 = vdwg.mxu0
  %v1434 = vadd.f32 %v1011, %v1426
  %v1435 = vadd.f32 %v1016, %v1431
  %1436 = vrot.lane.b32.xlu0 %v170, 104
  %v1437 = vpop.permute.xlu0 %1436
  %1438 = vrot.lane.b32.xlu0 %v170, 72
  %v1439 = vpop.permute.xlu0 %1438
  %v1440 = vsel %vm193, %v1437, 0
  %v1442 = vsel %vm193, %v1439, 0
  %1444 = vmatprep.subr.mxu0 0.0
  %1445 = vmatpush1.xpose.msra.mxu0 %v1442
  %1446 = vmatprep.subr.mxu0 0.0
  %1447 = vmatpush1.xpose.msra.mxu0 0.0
  %1448 = vmatprep.subr.mxu0 0.0
  %1449 = vmatpush1.xpose.msra.mxu0 0.0
  %1450 = vmatprep.subr.mxu0 0.0
  %1451 = vmatpush1.xpose.msra.mxu0 0.0
  %1452 = vmatprep.subr.mxu0 0.0
  %1453 = vmatpush1.xpose.msra.mxu0 0.0
  %1454 = vmatprep.subr.mxu0 0.0
  %1455 = vmatpush1.xpose.msra.mxu0 0.0
  %1456 = vmatprep.subr.mxu0 0.0
  %1457 = vmatpush1.xpose.msra.mxu0 0.0
  %1458 = vmatprep.subr.mxu0 0.0
  %1459 = vmatpush1.xpose.msra.mxu0 0.0
  %1460 = vmatprep.subr.mxu0 0.0
  %1461 = vmatpush1.xpose.msra.mxu0 0.0
  %1462 = vmatprep.subr.mxu0 0.0
  %1463 = vmatpush1.xpose.msra.mxu0 0.0
  %1464 = vmatprep.subr.mxu0 0.0
  %1465 = vmatpush1.xpose.msra.mxu0 0.0
  %1466 = vmatprep.subr.mxu0 0.0
  %1467 = vmatpush1.xpose.msra.mxu0 0.0
  %1468 = vmatprep.subr.mxu0 0.0
  %1469 = vmatpush1.xpose.msra.mxu0 0.0
  %1470 = vmatprep.subr.mxu0 0.0
  %1471 = vmatpush1.xpose.msra.mxu0 0.0
  %1472 = vmatprep.subr.mxu0 0.0
  %1473 = vmatpush1.xpose.msra.mxu0 0.0
  %1474 = vmatprep.subr.mxu0 0.0
  %1475 = vmatpush1.xpose.msra.mxu0 0.0
  %1476 = vmatprep.subr.mxu0 0.0
  %1477 = vmatpush1.xpose.msra.mxu0 0.0
  %1478 = vmatprep.subr.mxu0 0.0
  %1479 = vmatpush1.xpose.msra.mxu0 0.0
  %1480 = vmatprep.subr.mxu0 0.0
  %1481 = vmatpush1.xpose.msra.mxu0 0.0
  %1482 = vmatprep.subr.mxu0 0.0
  %1483 = vmatpush1.xpose.msra.mxu0 0.0
  %1484 = vmatprep.subr.mxu0 0.0
  %1485 = vmatpush1.xpose.msra.mxu0 0.0
  %1486 = vmatprep.subr.mxu0 0.0
  %1487 = vmatpush1.xpose.msra.mxu0 0.0
  %1488 = vmatprep.subr.mxu0 0.0
  %1489 = vmatpush1.xpose.msra.mxu0 0.0
  %1490 = vmatprep.subr.mxu0 0.0
  %1491 = vmatpush1.xpose.msra.mxu0 0.0
  %1492 = vmatprep.subr.mxu0 0.0
  %1493 = vmatpush1.xpose.msra.mxu0 0.0
  %1494 = vmatprep.subr.mxu0 0.0
  %1495 = vmatpush1.xpose.msra.mxu0 0.0
  %1496 = vmatprep.subr.mxu0 0.0
  %1497 = vmatpush1.xpose.msra.mxu0 0.0
  %1498 = vmatprep.subr.mxu0 0.0
  %1499 = vmatpush1.xpose.msra.mxu0 0.0
  %1500 = vmatprep.subr.mxu0 0.0
  %1501 = vmatpush1.xpose.msra.mxu0 0.0
  %1502 = vmatprep.subr.mxu0 0.0
  %1503 = vmatpush1.xpose.msra.mxu0 0.0
  %1504 = vmatprep.subr.mxu0 0.0
  %1505 = vmatpush1.xpose.msra.mxu0 0.0
  %1506 = vmatprep.subr.mxu0 0.0
  %1507 = vmatpush1.xpose.msra.mxu0 0.0
  %1508 = vmatprep.mubr.f32.mxu0 0.0
  %1509 = vmatmul.mubr.f32.gmra.mrb[0].mxu0 %v1440
  %v1510 = vpop.f32.mrb[0].mxu0
  %v1511 = vadd.f32 %v183, %v1510
  %v1512 = vpop.f32.mrb[0].mxu0
  %1513 = vdwg.mxu0
  %1514 = vrot.lane.b32.xlu0 %v175, 104
  %v1515 = vpop.permute.xlu0 %1514
  %1516 = vrot.lane.b32.xlu0 %v175, 72
  %v1517 = vpop.permute.xlu0 %1516
  %v1518 = vsel %vm193, %v1515, 0
  %v1520 = vsel %vm193, %v1517, 0
  %1522 = vmatprep.subr.mxu0 0.0
  %1523 = vmatpush1.xpose.msra.mxu0 %v1520
  %1524 = vmatprep.subr.mxu0 0.0
  %1525 = vmatpush1.xpose.msra.mxu0 0.0
  %1526 = vmatprep.subr.mxu0 0.0
  %1527 = vmatpush1.xpose.msra.mxu0 0.0
  %1528 = vmatprep.subr.mxu0 0.0
  %1529 = vmatpush1.xpose.msra.mxu0 0.0
  %1530 = vmatprep.subr.mxu0 0.0
  %1531 = vmatpush1.xpose.msra.mxu0 0.0
  %1532 = vmatprep.subr.mxu0 0.0
  %1533 = vmatpush1.xpose.msra.mxu0 0.0
  %1534 = vmatprep.subr.mxu0 0.0
  %1535 = vmatpush1.xpose.msra.mxu0 0.0
  %1536 = vmatprep.subr.mxu0 0.0
  %1537 = vmatpush1.xpose.msra.mxu0 0.0
  %1538 = vmatprep.subr.mxu0 0.0
  %1539 = vmatpush1.xpose.msra.mxu0 0.0
  %1540 = vmatprep.subr.mxu0 0.0
  %1541 = vmatpush1.xpose.msra.mxu0 0.0
  %1542 = vmatprep.subr.mxu0 0.0
  %1543 = vmatpush1.xpose.msra.mxu0 0.0
  %1544 = vmatprep.subr.mxu0 0.0
  %1545 = vmatpush1.xpose.msra.mxu0 0.0
  %1546 = vmatprep.subr.mxu0 0.0
  %1547 = vmatpush1.xpose.msra.mxu0 0.0
  %1548 = vmatprep.subr.mxu0 0.0
  %1549 = vmatpush1.xpose.msra.mxu0 0.0
  %1550 = vmatprep.subr.mxu0 0.0
  %1551 = vmatpush1.xpose.msra.mxu0 0.0
  %1552 = vmatprep.subr.mxu0 0.0
  %1553 = vmatpush1.xpose.msra.mxu0 0.0
  %1554 = vmatprep.subr.mxu0 0.0
  %1555 = vmatpush1.xpose.msra.mxu0 0.0
  %1556 = vmatprep.subr.mxu0 0.0
  %1557 = vmatpush1.xpose.msra.mxu0 0.0
  %1558 = vmatprep.subr.mxu0 0.0
  %1559 = vmatpush1.xpose.msra.mxu0 0.0
  %1560 = vmatprep.subr.mxu0 0.0
  %1561 = vmatpush1.xpose.msra.mxu0 0.0
  %1562 = vmatprep.subr.mxu0 0.0
  %1563 = vmatpush1.xpose.msra.mxu0 0.0
  %1564 = vmatprep.subr.mxu0 0.0
  %1565 = vmatpush1.xpose.msra.mxu0 0.0
  %1566 = vmatprep.subr.mxu0 0.0
  %1567 = vmatpush1.xpose.msra.mxu0 0.0
  %1568 = vmatprep.subr.mxu0 0.0
  %1569 = vmatpush1.xpose.msra.mxu0 0.0
  %1570 = vmatprep.subr.mxu0 0.0
  %1571 = vmatpush1.xpose.msra.mxu0 0.0
  %1572 = vmatprep.subr.mxu0 0.0
  %1573 = vmatpush1.xpose.msra.mxu0 0.0
  %1574 = vmatprep.subr.mxu0 0.0
  %1575 = vmatpush1.xpose.msra.mxu0 0.0
  %1576 = vmatprep.subr.mxu0 0.0
  %1577 = vmatpush1.xpose.msra.mxu0 0.0
  %1578 = vmatprep.subr.mxu0 0.0
  %1579 = vmatpush1.xpose.msra.mxu0 0.0
  %1580 = vmatprep.subr.mxu0 0.0
  %1581 = vmatpush1.xpose.msra.mxu0 0.0
  %1582 = vmatprep.subr.mxu0 0.0
  %1583 = vmatpush1.xpose.msra.mxu0 0.0
  %1584 = vmatprep.subr.mxu0 0.0
  %1585 = vmatpush1.xpose.msra.mxu0 0.0
  %1586 = vmatprep.mubr.f32.mxu0 0.0
  %1587 = vmatmul.mubr.f32.gmra.mrb[0].mxu0 %v1518
  %v1588 = vpop.f32.mrb[0].mxu0
  %v1589 = vadd.f32 %v187, %v1588
  %v1590 = vpop.f32.mrb[0].mxu0
  %1591 = vdwg.mxu0
  %v1592 = vsel %vm193, %v1511, -inf
  %1593 = vmax.xlane.f32.xlu0 %v1592
  %v1594 = vpop.xlane.xlu0 %1593
  %v1595 = vsel %vm193, %v1589, -inf
  %1596 = vmax.xlane.f32.xlu0 %v1595
  %v1597 = vpop.xlane.xlu0 %1596
  %v1598 = vsub.f32 %v1511, %v1594
  %v1599 = vsub.f32 %v1589, %v1597
  %v1600 = vmul.f32 %v1598, 1.442695
  %v1601 = vpow.pop %v1600
  %v1602 = vmul.f32 %v1599, 1.442695
  %v1603 = vpow.pop %v1602
  %v1604 = vsel %vm193, %v1601, 0.0
  %1605 = vadd.xlane.f32.xlu0 %v1604
  %v1606 = vpop.xlane.xlu0 %1605
  %v1607 = vsel %vm193, %v1603, 0.0
  %1608 = vadd.xlane.f32.xlu0 %v1607
  %v1609 = vpop.xlane.xlu0 %1608
  %v1610 = vrcp.pop %v1606
  %v1611 = vmul.f32 %v1601, %v1610
  %v1612 = vrcp.pop %v1609
  %v1613 = vmul.f32 %v1603, %v1612
  %1614 = vrot.lane.b32.xlu0 %v170, 40
  %v1615 = vpop.permute.xlu0 %1614
  %v1618 = vsel %vm193, %v1611, 0
  %1620 = vmatprep.subr.mxu0 0.0
  %1621 = vmatpush1.msra.mxu0 %v1615
  %1622 = vmatprep.subr.mxu0 0.0
  %1623 = vmatpush1.msra.mxu0 0.0
  %1624 = vmatprep.subr.mxu0 0.0
  %1625 = vmatpush1.msra.mxu0 0.0
  %1626 = vmatprep.subr.mxu0 0.0
  %1627 = vmatpush1.msra.mxu0 0.0
  %1628 = vmatprep.subr.mxu0 0.0
  %1629 = vmatpush1.msra.mxu0 0.0
  %1630 = vmatprep.subr.mxu0 0.0
  %1631 = vmatpush1.msra.mxu0 0.0
  %1632 = vmatprep.subr.mxu0 0.0
  %1633 = vmatpush1.msra.mxu0 0.0
  %1634 = vmatprep.subr.mxu0 0.0
  %1635 = vmatpush1.msra.mxu0 0.0
  %1636 = vmatprep.subr.mxu0 0.0
  %1637 = vmatpush1.msra.mxu0 0.0
  %1638 = vmatprep.subr.mxu0 0.0
  %1639 = vmatpush1.msra.mxu0 0.0
  %1640 = vmatprep.subr.mxu0 0.0
  %1641 = vmatpush1.msra.mxu0 0.0
  %1642 = vmatprep.subr.mxu0 0.0
  %1643 = vmatpush1.msra.mxu0 0.0
  %1644 = vmatprep.subr.mxu0 0.0
  %1645 = vmatpush1.msra.mxu0 0.0
  %1646 = vmatprep.subr.mxu0 0.0
  %1647 = vmatpush1.msra.mxu0 0.0
  %1648 = vmatprep.subr.mxu0 0.0
  %1649 = vmatpush1.msra.mxu0 0.0
  %1650 = vmatprep.subr.mxu0 0.0
  %1651 = vmatpush1.msra.mxu0 0.0
  %1652 = vmatprep.subr.mxu0 0.0
  %1653 = vmatpush1.msra.mxu0 0.0
  %1654 = vmatprep.subr.mxu0 0.0
  %1655 = vmatpush1.msra.mxu0 0.0
  %1656 = vmatprep.subr.mxu0 0.0
  %1657 = vmatpush1.msra.mxu0 0.0
  %1658 = vmatprep.subr.mxu0 0.0
  %1659 = vmatpush1.msra.mxu0 0.0
  %1660 = vmatprep.subr.mxu0 0.0
  %1661 = vmatpush1.msra.mxu0 0.0
  %1662 = vmatprep.subr.mxu0 0.0
  %1663 = vmatpush1.msra.mxu0 0.0
  %1664 = vmatprep.subr.mxu0 0.0
  %1665 = vmatpush1.msra.mxu0 0.0
  %1666 = vmatprep.subr.mxu0 0.0
  %1667 = vmatpush1.msra.mxu0 0.0
  %1668 = vmatprep.subr.mxu0 0.0
  %1669 = vmatpush1.msra.mxu0 0.0
  %1670 = vmatprep.subr.mxu0 0.0
  %1671 = vmatpush1.msra.mxu0 0.0
  %1672 = vmatprep.subr.mxu0 0.0
  %1673 = vmatpush1.msra.mxu0 0.0
  %1674 = vmatprep.subr.mxu0 0.0
  %1675 = vmatpush1.msra.mxu0 0.0
  %1676 = vmatprep.subr.mxu0 0.0
  %1677 = vmatpush1.msra.mxu0 0.0
  %1678 = vmatprep.subr.mxu0 0.0
  %1679 = vmatpush1.msra.mxu0 0.0
  %1680 = vmatprep.subr.mxu0 0.0
  %1681 = vmatpush1.msra.mxu0 0.0
  %1682 = vmatprep.subr.mxu0 0.0
  %1683 = vmatpush1.msra.mxu0 0.0
  %1684 = vmatprep.mubr.f32.mxu0 0.0
  %1685 = vmatmul.mubr.f32.gmra.mrb[0].mxu0 %v1618
  %v1686 = vpop.f32.mrb[0].mxu0
  %v1687 = vadd.f32 0.0, %v1686
  %v1688 = vpop.f32.mrb[0].mxu0
  %1689 = vdwg.mxu0
  %1690 = vrot.lane.b32.xlu0 %v175, 40
  %v1691 = vpop.permute.xlu0 %1690
  %v1694 = vsel %vm193, %v1613, 0
  %1696 = vmatprep.subr.mxu0 0.0
  %1697 = vmatpush1.msra.mxu0 %v1691
  %1698 = vmatprep.subr.mxu0 0.0
  %1699 = vmatpush1.msra.mxu0 0.0
  %1700 = vmatprep.subr.mxu0 0.0
  %1701 = vmatpush1.msra.mxu0 0.0
  %1702 = vmatprep.subr.mxu0 0.0
  %1703 = vmatpush1.msra.mxu0 0.0
  %1704 = vmatprep.subr.mxu0 0.0
  %1705 = vmatpush1.msra.mxu0 0.0
  %1706 = vmatprep.subr.mxu0 0.0
  %1707 = vmatpush1.msra.mxu0 0.0
  %1708 = vmatprep.subr.mxu0 0.0
  %1709 = vmatpush1.msra.mxu0 0.0
  %1710 = vmatprep.subr.mxu0 0.0
  %1711 = vmatpush1.msra.mxu0 0.0
  %1712 = vmatprep.subr.mxu0 0.0
  %1713 = vmatpush1.msra.mxu0 0.0
  %1714 = vmatprep.subr.mxu0 0.0
  %1715 = vmatpush1.msra.mxu0 0.0
  %1716 = vmatprep.subr.mxu0 0.0
  %1717 = vmatpush1.msra.mxu0 0.0
  %1718 = vmatprep.subr.mxu0 0.0
  %1719 = vmatpush1.msra.mxu0 0.0
  %1720 = vmatprep.subr.mxu0 0.0
  %1721 = vmatpush1.msra.mxu0 0.0
  %1722 = vmatprep.subr.mxu0 0.0
  %1723 = vmatpush1.msra.mxu0 0.0
  %1724 = vmatprep.subr.mxu0 0.0
  %1725 = vmatpush1.msra.mxu0 0.0
  %1726 = vmatprep.subr.mxu0 0.0
  %1727 = vmatpush1.msra.mxu0 0.0
  %1728 = vmatprep.subr.mxu0 0.0
  %1729 = vmatpush1.msra.mxu0 0.0
  %1730 = vmatprep.subr.mxu0 0.0
  %1731 = vmatpush1.msra.mxu0 0.0
  %1732 = vmatprep.subr.mxu0 0.0
  %1733 = vmatpush1.msra.mxu0 0.0
  %1734 = vmatprep.subr.mxu0 0.0
  %1735 = vmatpush1.msra.mxu0 0.0
  %1736 = vmatprep.subr.mxu0 0.0
  %1737 = vmatpush1.msra.mxu0 0.0
  %1738 = vmatprep.subr.mxu0 0.0
  %1739 = vmatpush1.msra.mxu0 0.0
  %1740 = vmatprep.subr.mxu0 0.0
  %1741 = vmatpush1.msra.mxu0 0.0
  %1742 = vmatprep.subr.mxu0 0.0
  %1743 = vmatpush1.msra.mxu0 0.0
  %1744 = vmatprep.subr.mxu0 0.0
  %1745 = vmatpush1.msra.mxu0 0.0
  %1746 = vmatprep.subr.mxu0 0.0
  %1747 = vmatpush1.msra.mxu0 0.0
  %1748 = vmatprep.subr.mxu0 0.0
  %1749 = vmatpush1.msra.mxu0 0.0
  %1750 = vmatprep.subr.mxu0 0.0
  %1751 = vmatpush1.msra.mxu0 0.0
  %1752 = vmatprep.subr.mxu0 0.0
  %1753 = vmatpush1.msra.mxu0 0.0
  %1754 = vmatprep.subr.mxu0 0.0
  %1755 = vmatpush1.msra.mxu0 0.0
  %1756 = vmatprep.subr.mxu0 0.0
  %1757 = vmatpush1.msra.mxu0 0.0
  %1758 = vmatprep.subr.mxu0 0.0
  %1759 = vmatpush1.msra.mxu0 0.0
  %1760 = vmatprep.mubr.f32.mxu0 0.0
  %1761 = vmatmul.mubr.f32.gmra.mrb[0].mxu0 %v1694
  %v1762 = vpop.f32.mrb[0].mxu0
  %v1763 = vadd.f32 0.0, %v1762
  %v1764 = vpop.f32.mrb[0].mxu0
  %1765 = vdwg.mxu0
  %1767 = vrot.lane.b32.xlu0 %v38, 32
  %v1768 = vpop.permute.xlu0 %1767
  %v1771 = vsel %vm193, %v1687, 0
  %v1774 = vsel %vm193, %v1763, 0
  %1776 = vmatprep.subr.mxu0 0.0
  %1777 = vmatpush1.msra.mxu0 %v1768
  %1778 = vmatprep.subr.mxu0 0.0
  %1779 = vmatpush1.msra.mxu0 0.0
  %1780 = vmatprep.subr.mxu0 0.0
  %1781 = vmatpush1.msra.mxu0 0.0
  %1782 = vmatprep.subr.mxu0 0.0
  %1783 = vmatpush1.msra.mxu0 0.0
  %1784 = vmatprep.subr.mxu0 0.0
  %1785 = vmatpush1.msra.mxu0 0.0
  %1786 = vmatprep.subr.mxu0 0.0
  %1787 = vmatpush1.msra.mxu0 0.0
  %1788 = vmatprep.subr.mxu0 0.0
  %1789 = vmatpush1.msra.mxu0 0.0
  %1790 = vmatprep.subr.mxu0 0.0
  %1791 = vmatpush1.msra.mxu0 0.0
  %1792 = vmatprep.subr.mxu0 0.0
  %1793 = vmatpush1.msra.mxu0 0.0
  %1794 = vmatprep.subr.mxu0 0.0
  %1795 = vmatpush1.msra.mxu0 0.0
  %1796 = vmatprep.subr.mxu0 0.0
  %1797 = vmatpush1.msra.mxu0 0.0
  %1798 = vmatprep.subr.mxu0 0.0
  %1799 = vmatpush1.msra.mxu0 0.0
  %1800 = vmatprep.subr.mxu0 0.0
  %1801 = vmatpush1.msra.mxu0 0.0
  %1802 = vmatprep.subr.mxu0 0.0
  %1803 = vmatpush1.msra.mxu0 0.0
  %1804 = vmatprep.subr.mxu0 0.0
  %1805 = vmatpush1.msra.mxu0 0.0
  %1806 = vmatprep.subr.mxu0 0.0
  %1807 = vmatpush1.msra.mxu0 0.0
  %1808 = vmatprep.subr.mxu0 0.0
  %1809 = vmatpush1.msra.mxu0 0.0
  %1810 = vmatprep.subr.mxu0 0.0
  %1811 = vmatpush1.msra.mxu0 0.0
  %1812 = vmatprep.subr.mxu0 0.0
  %1813 = vmatpush1.msra.mxu0 0.0
  %1814 = vmatprep.subr.mxu0 0.0
  %1815 = vmatpush1.msra.mxu0 0.0
  %1816 = vmatprep.subr.mxu0 0.0
  %1817 = vmatpush1.msra.mxu0 0.0
  %1818 = vmatprep.subr.mxu0 0.0
  %1819 = vmatpush1.msra.mxu0 0.0
  %1820 = vmatprep.subr.mxu0 0.0
  %1821 = vmatpush1.msra.mxu0 0.0
  %1822 = vmatprep.subr.mxu0 0.0
  %1823 = vmatpush1.msra.mxu0 0.0
  %1824 = vmatprep.subr.mxu0 0.0
  %1825 = vmatpush1.msra.mxu0 0.0
  %1826 = vmatprep.subr.mxu0 0.0
  %1827 = vmatpush1.msra.mxu0 0.0
  %1828 = vmatprep.subr.mxu0 0.0
  %1829 = vmatpush1.msra.mxu0 0.0
  %1830 = vmatprep.subr.mxu0 0.0
  %1831 = vmatpush1.msra.mxu0 0.0
  %1832 = vmatprep.subr.mxu0 0.0
  %1833 = vmatpush1.msra.mxu0 0.0
  %1834 = vmatprep.subr.mxu0 0.0
  %1835 = vmatpush1.msra.mxu0 0.0
  %1836 = vmatprep.subr.mxu0 0.0
  %1837 = vmatpush1.msra.mxu0 0.0
  %1838 = vmatprep.subr.mxu0 0.0
  %1839 = vmatpush1.msra.mxu0 0.0
  %1840 = vmatprep.mubr.f32.mxu0 0.0
  %1841 = vmatmul.mubr.f32.gmra.mrb[0].mxu0 %v1771
  %v1842 = vpop.f32.mrb[0].mxu0
  %v1843 = vadd.f32 0.0, %v1842
  %v1844 = vpop.f32.mrb[0].mxu0
  %1845 = vmatprep.mubr.f32.mxu0 0.0
  %1846 = vmatmul.mubr.f32.gmra.mrb[0].mxu0 %v1774
  %v1847 = vpop.f32.mrb[0].mxu0
  %v1848 = vadd.f32 0.0, %v1847
  %v1849 = vpop.f32.mrb[0].mxu0
  %1850 = vdwg.mxu0
  %v1851 = vadd.f32 %v1434, %v1843
  %v1852 = vadd.f32 %v1435, %v1848
  %v1853 = vadd.f32 %v23, %v1851
  %v1854 = vadd.f32 %v24, %v1852
  %v1855 = vlaneseq
  %v1856 = vshrl.u32 %v1855, 7
  %v1857 = vsub.s32 0, %v1856
  %v1858 = vrot.slane %v30, %v1857
  %v1859 = vadd.f32 %v1853, %v1858
  %v1860 = vadd.f32 %v1854, %v1858
  %v1861 = vsel %vm39, %v1859, 0.0
  %1862 = vadd.xlane.f32.xlu0 %v1861
  %v1863 = vpop.xlane.xlu0 %1862
  %v1864 = vsel %vm39, %v1860, 0.0
  %1865 = vadd.xlane.f32.xlu0 %v1864
  %v1866 = vpop.xlane.xlu0 %1865
  %v1867 = vmul.f32 %v1863, %v46
  %v1868 = vmul.f32 %v1866, %v46
  %v1869 = vsub.f32 %v1859, %v1867
  %v1870 = vsub.f32 %v1860, %v1868
  %v1871 = vmul.f32 %v1869, %v1869
  %v1872 = vmul.f32 %v1870, %v1870
  %v1873 = vsel %vm39, %v1871, 0.0
  %1874 = vadd.xlane.f32.xlu0 %v1873
  %v1875 = vpop.xlane.xlu0 %1874
  %v1876 = vsel %vm39, %v1872, 0.0
  %1877 = vadd.xlane.f32.xlu0 %v1876
  %v1878 = vpop.xlane.xlu0 %1877
  %v1879 = vmul.f32 %v1875, 0.032258064
  %v1880 = vmul.f32 %v1878, 0.032258064
  %v1881 = vrsqrt.pop %v1879
  %v1882 = vmul.f32 %v1879, %v1881
  %vm1883 = vcmp.eq.f32.partialorder %v1879, inf
  %v1884 = vsel %vm1883, %v1879, %v1882
  %vm1885 = vcmp.eq.f32.partialorder %v1879, 0.0
  %v1886 = vand.u32 %v1879, 2147483648
  %v1887 = vsel %vm1885, %v1886, %v1884
  %v1888 = vrsqrt.pop %v1880
  %v1889 = vmul.f32 %v1880, %v1888
  %vm1890 = vcmp.eq.f32.partialorder %v1880, inf
  %v1891 = vsel %vm1890, %v1880, %v1889
  %vm1892 = vcmp.eq.f32.partialorder %v1880, 0.0
  %v1893 = vand.u32 %v1880, 2147483648
  %v1894 = vsel %vm1892, %v1893, %v1891
  %v1895 = vadd.f32 %v1887, 1e-06
  %v1896 = vadd.f32 %v1894, 1e-06
  %v1897 = vrcp.pop %v1895
  %v1898 = vrcp.pop %v1896
  %v1899 = vmul.f32 %v1869, %v1897
  %v1900 = vmul.f32 %v1870, %v1898
  %v1901 = vlaneseq
  %v1902 = vshrl.u32 %v1901, 7
  %v1903 = vsub.s32 0, %v1902
  %v1904 = vrot.slane %v31, %v1903
  %v1905 = vmul.f32 %v1904, %v1899
  %v1906 = vmul.f32 %v1904, %v1900
  %v1907 = vlaneseq
  %v1908 = vshrl.u32 %v1907, 7
  %v1909 = vsub.s32 0, %v1908
  %v1910 = vrot.slane %v32, %v1909
  %v1911 = vadd.f32 %v1905, %v1910
  %v1912 = vadd.f32 %v1906, %v1910
  %v1913 = vld [vmem:[%s3] sm:$0xff]
  %v1914 = vld [vmem:[%s3 + $0x8] sm:$0xff]
  %v1915 = vld [vmem:[%s3 + $0x10] sm:$0xff]
  %v1916 = vld [vmem:[%s3 + $0x18] sm:$0xff]
  %v1917 = vlaneseq
  %v1918 = vshrl.u32 %v1917, 7
  %v1919 = vsub.s32 0, %v1918
  %v1920 = vrot.slane %v33, %v1919
  %v1922 = vsel %vm39, %v1911, 0
  %v1925 = vsel %vm39, %v1912, 0
  %1927 = vmatprep.subr.mxu0 0.0
  %1928 = vmatpush1.msra.mxu0 %v1913
  %1929 = vmatprep.subr.mxu0 0.0
  %1930 = vmatpush1.msra.mxu0 %v1914
  %1931 = vmatprep.subr.mxu0 0.0
  %1932 = vmatpush1.msra.mxu0 %v1915
  %1933 = vmatprep.subr.mxu0 0.0
  %1934 = vmatpush1.msra.mxu0 %v1916
  %1935 = vmatprep.subr.mxu0 0.0
  %1936 = vmatpush1.msra.mxu0 0.0
  %1937 = vmatprep.subr.mxu0 0.0
  %1938 = vmatpush1.msra.mxu0 0.0
  %1939 = vmatprep.subr.mxu0 0.0
  %1940 = vmatpush1.msra.mxu0 0.0
  %1941 = vmatprep.subr.mxu0 0.0
  %1942 = vmatpush1.msra.mxu0 0.0
  %1943 = vmatprep.subr.mxu0 0.0
  %1944 = vmatpush1.msra.mxu0 0.0
  %1945 = vmatprep.subr.mxu0 0.0
  %1946 = vmatpush1.msra.mxu0 0.0
  %1947 = vmatprep.subr.mxu0 0.0
  %1948 = vmatpush1.msra.mxu0 0.0
  %1949 = vmatprep.subr.mxu0 0.0
  %1950 = vmatpush1.msra.mxu0 0.0
  %1951 = vmatprep.subr.mxu0 0.0
  %1952 = vmatpush1.msra.mxu0 0.0
  %1953 = vmatprep.subr.mxu0 0.0
  %1954 = vmatpush1.msra.mxu0 0.0
  %1955 = vmatprep.subr.mxu0 0.0
  %1956 = vmatpush1.msra.mxu0 0.0
  %1957 = vmatprep.subr.mxu0 0.0
  %1958 = vmatpush1.msra.mxu0 0.0
  %1959 = vmatprep.subr.mxu0 0.0
  %1960 = vmatpush1.msra.mxu0 0.0
  %1961 = vmatprep.subr.mxu0 0.0
  %1962 = vmatpush1.msra.mxu0 0.0
  %1963 = vmatprep.subr.mxu0 0.0
  %1964 = vmatpush1.msra.mxu0 0.0
  %1965 = vmatprep.subr.mxu0 0.0
  %1966 = vmatpush1.msra.mxu0 0.0
  %1967 = vmatprep.subr.mxu0 0.0
  %1968 = vmatpush1.msra.mxu0 0.0
  %1969 = vmatprep.subr.mxu0 0.0
  %1970 = vmatpush1.msra.mxu0 0.0
  %1971 = vmatprep.subr.mxu0 0.0
  %1972 = vmatpush1.msra.mxu0 0.0
  %1973 = vmatprep.subr.mxu0 0.0
  %1974 = vmatpush1.msra.mxu0 0.0
  %1975 = vmatprep.subr.mxu0 0.0
  %1976 = vmatpush1.msra.mxu0 0.0
  %1977 = vmatprep.subr.mxu0 0.0
  %1978 = vmatpush1.msra.mxu0 0.0
  %1979 = vmatprep.subr.mxu0 0.0
  %1980 = vmatpush1.msra.mxu0 0.0
  %1981 = vmatprep.subr.mxu0 0.0
  %1982 = vmatpush1.msra.mxu0 0.0
  %1983 = vmatprep.subr.mxu0 0.0
  %1984 = vmatpush1.msra.mxu0 0.0
  %1985 = vmatprep.subr.mxu0 0.0
  %1986 = vmatpush1.msra.mxu0 0.0
  %1987 = vmatprep.subr.mxu0 0.0
  %1988 = vmatpush1.msra.mxu0 0.0
  %1989 = vmatprep.subr.mxu0 0.0
  %1990 = vmatpush1.msra.mxu0 0.0
  %1991 = vmatprep.mubr.f32.mxu0 0.0
  %1992 = vmatmul.mubr.f32.gmra.mrb[0].mxu0 %v1922
  %v1993 = vpop.f32.mrb[0].mxu0
  %v1994 = vadd.f32 %v1920, %v1993
  %v1995 = vpop.f32.mrb[0].mxu0
  %1996 = vmatprep.mubr.f32.mxu0 0.0
  %1997 = vmatmul.mubr.f32.gmra.mrb[0].mxu0 %v1925
  %v1998 = vpop.f32.mrb[0].mxu0
  %v1999 = vadd.f32 %v1920, %v1998
  %v2000 = vpop.f32.mrb[0].mxu0
  %2001 = vdwg.mxu0
  %v2002 = vmax.f32 %v1994, 0.0
  %v2003 = vmax.f32 %v1999, 0.0
  %v2004 = vld [vmem:[%s4] sm:$0xff]
  %v2005 = vld [vmem:[%s4 + $0x8] sm:$0xff]
  %v2006 = vld [vmem:[%s4 + $0x10] sm:$0xff]
  %v2007 = vld [vmem:[%s4 + $0x18] sm:$0xff]
  %v2008 = vld [vmem:[%s4 + $0x20] sm:$0xff]
  %v2009 = vld [vmem:[%s4 + $0x28] sm:$0xff]
  %v2010 = vld [vmem:[%s4 + $0x30] sm:$0xff]
  %v2011 = vld [vmem:[%s4 + $0x38] sm:$0xff]
  %v2012 = vlaneseq
  %v2013 = vshrl.u32 %v2012, 7
  %v2014 = vsub.s32 0, %v2013
  %v2015 = vrot.slane %v34, %v2014
  %vm2016 = vcmask 523264
  %v2018 = vsel %vm2016, %v2002, 0
  %v2021 = vsel %vm2016, %v2003, 0
  %2023 = vmatprep.subr.mxu0 0.0
  %2024 = vmatpush1.msra.mxu0 %v2004
  %2025 = vmatprep.subr.mxu0 0.0
  %2026 = vmatpush1.msra.mxu0 %v2005
  %2027 = vmatprep.subr.mxu0 0.0
  %2028 = vmatpush1.msra.mxu0 %v2006
  %2029 = vmatprep.subr.mxu0 0.0
  %2030 = vmatpush1.msra.mxu0 %v2007
  %2031 = vmatprep.subr.mxu0 0.0
  %2032 = vmatpush1.msra.mxu0 %v2008
  %2033 = vmatprep.subr.mxu0 0.0
  %2034 = vmatpush1.msra.mxu0 %v2009
  %2035 = vmatprep.subr.mxu0 0.0
  %2036 = vmatpush1.msra.mxu0 %v2010
  %2037 = vmatprep.subr.mxu0 0.0
  %2038 = vmatpush1.msra.mxu0 %v2011
  %2039 = vmatprep.subr.mxu0 0.0
  %2040 = vmatpush1.msra.mxu0 0.0
  %2041 = vmatprep.subr.mxu0 0.0
  %2042 = vmatpush1.msra.mxu0 0.0
  %2043 = vmatprep.subr.mxu0 0.0
  %2044 = vmatpush1.msra.mxu0 0.0
  %2045 = vmatprep.subr.mxu0 0.0
  %2046 = vmatpush1.msra.mxu0 0.0
  %2047 = vmatprep.subr.mxu0 0.0
  %2048 = vmatpush1.msra.mxu0 0.0
  %2049 = vmatprep.subr.mxu0 0.0
  %2050 = vmatpush1.msra.mxu0 0.0
  %2051 = vmatprep.subr.mxu0 0.0
  %2052 = vmatpush1.msra.mxu0 0.0
  %2053 = vmatprep.subr.mxu0 0.0
  %2054 = vmatpush1.msra.mxu0 0.0
  %2055 = vmatprep.subr.mxu0 0.0
  %2056 = vmatpush1.msra.mxu0 0.0
  %2057 = vmatprep.subr.mxu0 0.0
  %2058 = vmatpush1.msra.mxu0 0.0
  %2059 = vmatprep.subr.mxu0 0.0
  %2060 = vmatpush1.msra.mxu0 0.0
  %2061 = vmatprep.subr.mxu0 0.0
  %2062 = vmatpush1.msra.mxu0 0.0
  %2063 = vmatprep.subr.mxu0 0.0
  %2064 = vmatpush1.msra.mxu0 0.0
  %2065 = vmatprep.subr.mxu0 0.0
  %2066 = vmatpush1.msra.mxu0 0.0
  %2067 = vmatprep.subr.mxu0 0.0
  %2068 = vmatpush1.msra.mxu0 0.0
  %2069 = vmatprep.subr.mxu0 0.0
  %2070 = vmatpush1.msra.mxu0 0.0
  %2071 = vmatprep.subr.mxu0 0.0
  %2072 = vmatpush1.msra.mxu0 0.0
  %2073 = vmatprep.subr.mxu0 0.0
  %2074 = vmatpush1.msra.mxu0 0.0
  %2075 = vmatprep.subr.mxu0 0.0
  %2076 = vmatpush1.msra.mxu0 0.0
  %2077 = vmatprep.subr.mxu0 0.0
  %2078 = vmatpush1.msra.mxu0 0.0
  %2079 = vmatprep.subr.mxu0 0.0
  %2080 = vmatpush1.msra.mxu0 0.0
  %2081 = vmatprep.subr.mxu0 0.0
  %2082 = vmatpush1.msra.mxu0 0.0
  %2083 = vmatprep.subr.mxu0 0.0
  %2084 = vmatpush1.msra.mxu0 0.0
  %2085 = vmatprep.subr.mxu0 0.0
  %2086 = vmatpush1.msra.mxu0 0.0
  %2087 = vmatprep.mubr.f32.mxu0 0.0
  %2088 = vmatmul.mubr.f32.gmra.mrb[0].mxu0 %v2018
  %v2089 = vpop.f32.mrb[0].mxu0
  %v2090 = vadd.f32 %v2015, %v2089
  %v2091 = vpop.f32.mrb[0].mxu0
  %2092 = vmatprep.mubr.f32.mxu0 0.0
  %2093 = vmatmul.mubr.f32.gmra.mrb[0].mxu0 %v2021
  %v2094 = vpop.f32.mrb[0].mxu0
  %v2095 = vadd.f32 %v2015, %v2094
  %v2096 = vpop.f32.mrb[0].mxu0
  %2097 = vdwg.mxu0
  %v2098 = vadd.f32 %v1859, %v2090
  %v2099 = vadd.f32 %v1860, %v2095
  %v2100 = vld [vmem:[%s5 + $0xa] sm:$0x1]
  %v2101 = vld [vmem:[%s5 + $0xb] sm:$0x1]
  %v2102 = vld [vmem:[%s5 + $0xc] sm:$0x1]
  %v2103 = vld [vmem:[%s5 + $0xd] sm:$0x1]
  %v2104 = vld [vmem:[%s5 + $0xe] sm:$0x1]
  %v2105 = vld [vmem:[%s5 + $0xf] sm:$0x1]
  %v2106 = vld [vmem:[%s5 + $0x10] sm:$0x1]
  %v2107 = vld [vmem:[%s5 + $0x11] sm:$0x1]
  %s2108 = scalar_lea.vmem %s2, 32
  %v2109 = vld [vmem:[%s2108] sm:$0xff]
  %v2110 = vld [vmem:[%s2108 + $0x8] sm:$0xff]
  %v2111 = vld [vmem:[%s2108 + $0x10] sm:$0xff]
  %v2112 = vld [vmem:[%s2108 + $0x18] sm:$0xff]
  %v2113 = vsel %vm39, %v2098, 0.0
  %2114 = vadd.xlane.f32.xlu0 %v2113
  %v2115 = vpop.xlane.xlu0 %2114
  %v2116 = vsel %vm39, %v2099, 0.0
  %2117 = vadd.xlane.f32.xlu0 %v2116
  %v2118 = vpop.xlane.xlu0 %2117
  %v2119 = vmul.f32 %v2115, %v46
  %v2120 = vmul.f32 %v2118, %v46
  %v2121 = vsub.f32 %v2098, %v2119
  %v2122 = vsub.f32 %v2099, %v2120
  %v2123 = vmul.f32 %v2121, %v2121
  %v2124 = vmul.f32 %v2122, %v2122
  %v2125 = vsel %vm39, %v2123, 0.0
  %2126 = vadd.xlane.f32.xlu0 %v2125
  %v2127 = vpop.xlane.xlu0 %2126
  %v2128 = vsel %vm39, %v2124, 0.0
  %2129 = vadd.xlane.f32.xlu0 %v2128
  %v2130 = vpop.xlane.xlu0 %2129
  %v2131 = vmul.f32 %v2127, 0.032258064
  %v2132 = vmul.f32 %v2130, 0.032258064
  %v2133 = vrsqrt.pop %v2131
  %v2134 = vmul.f32 %v2131, %v2133
  %vm2135 = vcmp.eq.f32.partialorder %v2131, inf
  %v2136 = vsel %vm2135, %v2131, %v2134
  %vm2137 = vcmp.eq.f32.partialorder %v2131, 0.0
  %v2138 = vand.u32 %v2131, 2147483648
  %v2139 = vsel %vm2137, %v2138, %v2136
  %v2140 = vrsqrt.pop %v2132
  %v2141 = vmul.f32 %v2132, %v2140
  %vm2142 = vcmp.eq.f32.partialorder %v2132, inf
  %v2143 = vsel %vm2142, %v2132, %v2141
  %vm2144 = vcmp.eq.f32.partialorder %v2132, 0.0
  %v2145 = vand.u32 %v2132, 2147483648
  %v2146 = vsel %vm2144, %v2145, %v2143
  %v2147 = vadd.f32 %v2139, 1e-06
  %v2148 = vadd.f32 %v2146, 1e-06
  %v2149 = vrcp.pop %v2147
  %v2150 = vrcp.pop %v2148
  %v2151 = vmul.f32 %v2121, %v2149
  %v2152 = vmul.f32 %v2122, %v2150
  %v2153 = vlaneseq
  %v2154 = vshrl.u32 %v2153, 7
  %v2155 = vsub.s32 0, %v2154
  %v2156 = vrot.slane %v2100, %v2155
  %v2157 = vmul.f32 %v2156, %v2151
  %v2158 = vmul.f32 %v2156, %v2152
  %v2159 = vlaneseq
  %v2160 = vshrl.u32 %v2159, 7
  %v2161 = vsub.s32 0, %v2160
  %v2162 = vrot.slane %v2101, %v2161
  %v2163 = vadd.f32 %v2157, %v2162
  %v2164 = vadd.f32 %v2158, %v2162
  %v2165 = vlaneseq
  %v2166 = vshrl.u32 %v2165, 7
  %v2167 = vsub.s32 0, %v2166
  %v2168 = vrot.slane %v2102, %v2167
  %v2170 = vsel %vm39, %v2163, 0
  %v2173 = vsel %vm39, %v2164, 0
  %2175 = vmatprep.subr.mxu0 0.0
  %2176 = vmatpush1.msra.mxu0 %v2109
  %2177 = vmatprep.subr.mxu0 0.0
  %2178 = vmatpush1.msra.mxu0 %v2110
  %2179 = vmatprep.subr.mxu0 0.0
  %2180 = vmatpush1.msra.mxu0 %v2111
  %2181 = vmatprep.subr.mxu0 0.0
  %2182 = vmatpush1.msra.mxu0 %v2112
  %2183 = vmatprep.subr.mxu0 0.0
  %2184 = vmatpush1.msra.mxu0 0.0
  %2185 = vmatprep.subr.mxu0 0.0
  %2186 = vmatpush1.msra.mxu0 0.0
  %2187 = vmatprep.subr.mxu0 0.0
  %2188 = vmatpush1.msra.mxu0 0.0
  %2189 = vmatprep.subr.mxu0 0.0
  %2190 = vmatpush1.msra.mxu0 0.0
  %2191 = vmatprep.subr.mxu0 0.0
  %2192 = vmatpush1.msra.mxu0 0.0
  %2193 = vmatprep.subr.mxu0 0.0
  %2194 = vmatpush1.msra.mxu0 0.0
  %2195 = vmatprep.subr.mxu0 0.0
  %2196 = vmatpush1.msra.mxu0 0.0
  %2197 = vmatprep.subr.mxu0 0.0
  %2198 = vmatpush1.msra.mxu0 0.0
  %2199 = vmatprep.subr.mxu0 0.0
  %2200 = vmatpush1.msra.mxu0 0.0
  %2201 = vmatprep.subr.mxu0 0.0
  %2202 = vmatpush1.msra.mxu0 0.0
  %2203 = vmatprep.subr.mxu0 0.0
  %2204 = vmatpush1.msra.mxu0 0.0
  %2205 = vmatprep.subr.mxu0 0.0
  %2206 = vmatpush1.msra.mxu0 0.0
  %2207 = vmatprep.subr.mxu0 0.0
  %2208 = vmatpush1.msra.mxu0 0.0
  %2209 = vmatprep.subr.mxu0 0.0
  %2210 = vmatpush1.msra.mxu0 0.0
  %2211 = vmatprep.subr.mxu0 0.0
  %2212 = vmatpush1.msra.mxu0 0.0
  %2213 = vmatprep.subr.mxu0 0.0
  %2214 = vmatpush1.msra.mxu0 0.0
  %2215 = vmatprep.subr.mxu0 0.0
  %2216 = vmatpush1.msra.mxu0 0.0
  %2217 = vmatprep.subr.mxu0 0.0
  %2218 = vmatpush1.msra.mxu0 0.0
  %2219 = vmatprep.subr.mxu0 0.0
  %2220 = vmatpush1.msra.mxu0 0.0
  %2221 = vmatprep.subr.mxu0 0.0
  %2222 = vmatpush1.msra.mxu0 0.0
  %2223 = vmatprep.subr.mxu0 0.0
  %2224 = vmatpush1.msra.mxu0 0.0
  %2225 = vmatprep.subr.mxu0 0.0
  %2226 = vmatpush1.msra.mxu0 0.0
  %2227 = vmatprep.subr.mxu0 0.0
  %2228 = vmatpush1.msra.mxu0 0.0
  %2229 = vmatprep.subr.mxu0 0.0
  %2230 = vmatpush1.msra.mxu0 0.0
  %2231 = vmatprep.subr.mxu0 0.0
  %2232 = vmatpush1.msra.mxu0 0.0
  %2233 = vmatprep.subr.mxu0 0.0
  %2234 = vmatpush1.msra.mxu0 0.0
  %2235 = vmatprep.subr.mxu0 0.0
  %2236 = vmatpush1.msra.mxu0 0.0
  %2237 = vmatprep.subr.mxu0 0.0
  %2238 = vmatpush1.msra.mxu0 0.0
  %2239 = vmatprep.mubr.f32.mxu0 0.0
  %2240 = vmatmul.mubr.f32.gmra.mrb[0].mxu0 %v2170
  %v2241 = vpop.f32.mrb[0].mxu0
  %v2242 = vadd.f32 %v2168, %v2241
  %v2243 = vpop.f32.mrb[0].mxu0
  %2244 = vmatprep.mubr.f32.mxu0 0.0
  %2245 = vmatmul.mubr.f32.gmra.mrb[0].mxu0 %v2173
  %v2246 = vpop.f32.mrb[0].mxu0
  %v2247 = vadd.f32 %v2168, %v2246
  %v2248 = vpop.f32.mrb[0].mxu0
  %2249 = vdwg.mxu0
  %2251 = vrot.lane.b32.xlu0 %v2242, 96
  %v2252 = vpop.permute.xlu0 %2251
  %v2253 = vsel %vm193, %v2242, 0
  %v2255 = vsel %vm193, %v2252, 0
  %2257 = vmatprep.subr.mxu0 0.0
  %2258 = vmatpush1.xpose.msra.mxu0 %v2255
  %2259 = vmatprep.subr.mxu0 0.0
  %2260 = vmatpush1.xpose.msra.mxu0 0.0
  %2261 = vmatprep.subr.mxu0 0.0
  %2262 = vmatpush1.xpose.msra.mxu0 0.0
  %2263 = vmatprep.subr.mxu0 0.0
  %2264 = vmatpush1.xpose.msra.mxu0 0.0
  %2265 = vmatprep.subr.mxu0 0.0
  %2266 = vmatpush1.xpose.msra.mxu0 0.0
  %2267 = vmatprep.subr.mxu0 0.0
  %2268 = vmatpush1.xpose.msra.mxu0 0.0
  %2269 = vmatprep.subr.mxu0 0.0
  %2270 = vmatpush1.xpose.msra.mxu0 0.0
  %2271 = vmatprep.subr.mxu0 0.0
  %2272 = vmatpush1.xpose.msra.mxu0 0.0
  %2273 = vmatprep.subr.mxu0 0.0
  %2274 = vmatpush1.xpose.msra.mxu0 0.0
  %2275 = vmatprep.subr.mxu0 0.0
  %2276 = vmatpush1.xpose.msra.mxu0 0.0
  %2277 = vmatprep.subr.mxu0 0.0
  %2278 = vmatpush1.xpose.msra.mxu0 0.0
  %2279 = vmatprep.subr.mxu0 0.0
  %2280 = vmatpush1.xpose.msra.mxu0 0.0
  %2281 = vmatprep.subr.mxu0 0.0
  %2282 = vmatpush1.xpose.msra.mxu0 0.0
  %2283 = vmatprep.subr.mxu0 0.0
  %2284 = vmatpush1.xpose.msra.mxu0 0.0
  %2285 = vmatprep.subr.mxu0 0.0
  %2286 = vmatpush1.xpose.msra.mxu0 0.0
  %2287 = vmatprep.subr.mxu0 0.0
  %2288 = vmatpush1.xpose.msra.mxu0 0.0
  %2289 = vmatprep.subr.mxu0 0.0
  %2290 = vmatpush1.xpose.msra.mxu0 0.0
  %2291 = vmatprep.subr.mxu0 0.0
  %2292 = vmatpush1.xpose.msra.mxu0 0.0
  %2293 = vmatprep.subr.mxu0 0.0
  %2294 = vmatpush1.xpose.msra.mxu0 0.0
  %2295 = vmatprep.subr.mxu0 0.0
  %2296 = vmatpush1.xpose.msra.mxu0 0.0
  %2297 = vmatprep.subr.mxu0 0.0
  %2298 = vmatpush1.xpose.msra.mxu0 0.0
  %2299 = vmatprep.subr.mxu0 0.0
  %2300 = vmatpush1.xpose.msra.mxu0 0.0
  %2301 = vmatprep.subr.mxu0 0.0
  %2302 = vmatpush1.xpose.msra.mxu0 0.0
  %2303 = vmatprep.subr.mxu0 0.0
  %2304 = vmatpush1.xpose.msra.mxu0 0.0
  %2305 = vmatprep.subr.mxu0 0.0
  %2306 = vmatpush1.xpose.msra.mxu0 0.0
  %2307 = vmatprep.subr.mxu0 0.0
  %2308 = vmatpush1.xpose.msra.mxu0 0.0
  %2309 = vmatprep.subr.mxu0 0.0
  %2310 = vmatpush1.xpose.msra.mxu0 0.0
  %2311 = vmatprep.subr.mxu0 0.0
  %2312 = vmatpush1.xpose.msra.mxu0 0.0
  %2313 = vmatprep.subr.mxu0 0.0
  %2314 = vmatpush1.xpose.msra.mxu0 0.0
  %2315 = vmatprep.subr.mxu0 0.0
  %2316 = vmatpush1.xpose.msra.mxu0 0.0
  %2317 = vmatprep.subr.mxu0 0.0
  %2318 = vmatpush1.xpose.msra.mxu0 0.0
  %2319 = vmatprep.subr.mxu0 0.0
  %2320 = vmatpush1.xpose.msra.mxu0 0.0
  %2321 = vmatprep.mubr.f32.mxu0 0.0
  %2322 = vmatmul.mubr.f32.gmra.mrb[0].mxu0 %v2253
  %v2323 = vpop.f32.mrb[0].mxu0
  %v2324 = vadd.f32 %v183, %v2323
  %v2325 = vpop.f32.mrb[0].mxu0
  %2326 = vdwg.mxu0
  %2328 = vrot.lane.b32.xlu0 %v2247, 96
  %v2329 = vpop.permute.xlu0 %2328
  %v2330 = vsel %vm193, %v2247, 0
  %v2332 = vsel %vm193, %v2329, 0
  %2334 = vmatprep.subr.mxu0 0.0
  %2335 = vmatpush1.xpose.msra.mxu0 %v2332
  %2336 = vmatprep.subr.mxu0 0.0
  %2337 = vmatpush1.xpose.msra.mxu0 0.0
  %2338 = vmatprep.subr.mxu0 0.0
  %2339 = vmatpush1.xpose.msra.mxu0 0.0
  %2340 = vmatprep.subr.mxu0 0.0
  %2341 = vmatpush1.xpose.msra.mxu0 0.0
  %2342 = vmatprep.subr.mxu0 0.0
  %2343 = vmatpush1.xpose.msra.mxu0 0.0
  %2344 = vmatprep.subr.mxu0 0.0
  %2345 = vmatpush1.xpose.msra.mxu0 0.0
  %2346 = vmatprep.subr.mxu0 0.0
  %2347 = vmatpush1.xpose.msra.mxu0 0.0
  %2348 = vmatprep.subr.mxu0 0.0
  %2349 = vmatpush1.xpose.msra.mxu0 0.0
  %2350 = vmatprep.subr.mxu0 0.0
  %2351 = vmatpush1.xpose.msra.mxu0 0.0
  %2352 = vmatprep.subr.mxu0 0.0
  %2353 = vmatpush1.xpose.msra.mxu0 0.0
  %2354 = vmatprep.subr.mxu0 0.0
  %2355 = vmatpush1.xpose.msra.mxu0 0.0
  %2356 = vmatprep.subr.mxu0 0.0
  %2357 = vmatpush1.xpose.msra.mxu0 0.0
  %2358 = vmatprep.subr.mxu0 0.0
  %2359 = vmatpush1.xpose.msra.mxu0 0.0
  %2360 = vmatprep.subr.mxu0 0.0
  %2361 = vmatpush1.xpose.msra.mxu0 0.0
  %2362 = vmatprep.subr.mxu0 0.0
  %2363 = vmatpush1.xpose.msra.mxu0 0.0
  %2364 = vmatprep.subr.mxu0 0.0
  %2365 = vmatpush1.xpose.msra.mxu0 0.0
  %2366 = vmatprep.subr.mxu0 0.0
  %2367 = vmatpush1.xpose.msra.mxu0 0.0
  %2368 = vmatprep.subr.mxu0 0.0
  %2369 = vmatpush1.xpose.msra.mxu0 0.0
  %2370 = vmatprep.subr.mxu0 0.0
  %2371 = vmatpush1.xpose.msra.mxu0 0.0
  %2372 = vmatprep.subr.mxu0 0.0
  %2373 = vmatpush1.xpose.msra.mxu0 0.0
  %2374 = vmatprep.subr.mxu0 0.0
  %2375 = vmatpush1.xpose.msra.mxu0 0.0
  %2376 = vmatprep.subr.mxu0 0.0
  %2377 = vmatpush1.xpose.msra.mxu0 0.0
  %2378 = vmatprep.subr.mxu0 0.0
  %2379 = vmatpush1.xpose.msra.mxu0 0.0
  %2380 = vmatprep.subr.mxu0 0.0
  %2381 = vmatpush1.xpose.msra.mxu0 0.0
  %2382 = vmatprep.subr.mxu0 0.0
  %2383 = vmatpush1.xpose.msra.mxu0 0.0
  %2384 = vmatprep.subr.mxu0 0.0
  %2385 = vmatpush1.xpose.msra.mxu0 0.0
  %2386 = vmatprep.subr.mxu0 0.0
  %2387 = vmatpush1.xpose.msra.mxu0 0.0
  %2388 = vmatprep.subr.mxu0 0.0
  %2389 = vmatpush1.xpose.msra.mxu0 0.0
  %2390 = vmatprep.subr.mxu0 0.0
  %2391 = vmatpush1.xpose.msra.mxu0 0.0
  %2392 = vmatprep.subr.mxu0 0.0
  %2393 = vmatpush1.xpose.msra.mxu0 0.0
  %2394 = vmatprep.subr.mxu0 0.0
  %2395 = vmatpush1.xpose.msra.mxu0 0.0
  %2396 = vmatprep.subr.mxu0 0.0
  %2397 = vmatpush1.xpose.msra.mxu0 0.0
  %2398 = vmatprep.mubr.f32.mxu0 0.0
  %2399 = vmatmul.mubr.f32.gmra.mrb[0].mxu0 %v2330
  %v2400 = vpop.f32.mrb[0].mxu0
  %v2401 = vadd.f32 %v187, %v2400
  %v2402 = vpop.f32.mrb[0].mxu0
  %2403 = vdwg.mxu0
  %v2404 = vsel %vm193, %v2324, -inf
  %2405 = vmax.xlane.f32.xlu0 %v2404
  %v2406 = vpop.xlane.xlu0 %2405
  %v2407 = vsel %vm193, %v2401, -inf
  %2408 = vmax.xlane.f32.xlu0 %v2407
  %v2409 = vpop.xlane.xlu0 %2408
  %v2410 = vsub.f32 %v2324, %v2406
  %v2411 = vsub.f32 %v2401, %v2409
  %v2412 = vmul.f32 %v2410, 1.442695
  %v2413 = vpow.pop %v2412
  %v2414 = vmul.f32 %v2411, 1.442695
  %v2415 = vpow.pop %v2414
  %v2416 = vsel %vm193, %v2413, 0.0
  %2417 = vadd.xlane.f32.xlu0 %v2416
  %v2418 = vpop.xlane.xlu0 %2417
  %v2419 = vsel %vm193, %v2415, 0.0
  %2420 = vadd.xlane.f32.xlu0 %v2419
  %v2421 = vpop.xlane.xlu0 %2420
  %v2422 = vrcp.pop %v2418
  %v2423 = vmul.f32 %v2413, %v2422
  %v2424 = vrcp.pop %v2421
  %v2425 = vmul.f32 %v2415, %v2424
  %2426 = vrot.lane.b32.xlu0 %v2242, 64
  %v2427 = vpop.permute.xlu0 %2426
  %v2430 = vsel %vm193, %v2423, 0
  %2432 = vmatprep.subr.mxu0 0.0
  %2433 = vmatpush1.msra.mxu0 %v2427
  %2434 = vmatprep.subr.mxu0 0.0
  %2435 = vmatpush1.msra.mxu0 0.0
  %2436 = vmatprep.subr.mxu0 0.0
  %2437 = vmatpush1.msra.mxu0 0.0
  %2438 = vmatprep.subr.mxu0 0.0
  %2439 = vmatpush1.msra.mxu0 0.0
  %2440 = vmatprep.subr.mxu0 0.0
  %2441 = vmatpush1.msra.mxu0 0.0
  %2442 = vmatprep.subr.mxu0 0.0
  %2443 = vmatpush1.msra.mxu0 0.0
  %2444 = vmatprep.subr.mxu0 0.0
  %2445 = vmatpush1.msra.mxu0 0.0
  %2446 = vmatprep.subr.mxu0 0.0
  %2447 = vmatpush1.msra.mxu0 0.0
  %2448 = vmatprep.subr.mxu0 0.0
  %2449 = vmatpush1.msra.mxu0 0.0
  %2450 = vmatprep.subr.mxu0 0.0
  %2451 = vmatpush1.msra.mxu0 0.0
  %2452 = vmatprep.subr.mxu0 0.0
  %2453 = vmatpush1.msra.mxu0 0.0
  %2454 = vmatprep.subr.mxu0 0.0
  %2455 = vmatpush1.msra.mxu0 0.0
  %2456 = vmatprep.subr.mxu0 0.0
  %2457 = vmatpush1.msra.mxu0 0.0
  %2458 = vmatprep.subr.mxu0 0.0
  %2459 = vmatpush1.msra.mxu0 0.0
  %2460 = vmatprep.subr.mxu0 0.0
  %2461 = vmatpush1.msra.mxu0 0.0
  %2462 = vmatprep.subr.mxu0 0.0
  %2463 = vmatpush1.msra.mxu0 0.0
  %2464 = vmatprep.subr.mxu0 0.0
  %2465 = vmatpush1.msra.mxu0 0.0
  %2466 = vmatprep.subr.mxu0 0.0
  %2467 = vmatpush1.msra.mxu0 0.0
  %2468 = vmatprep.subr.mxu0 0.0
  %2469 = vmatpush1.msra.mxu0 0.0
  %2470 = vmatprep.subr.mxu0 0.0
  %2471 = vmatpush1.msra.mxu0 0.0
  %2472 = vmatprep.subr.mxu0 0.0
  %2473 = vmatpush1.msra.mxu0 0.0
  %2474 = vmatprep.subr.mxu0 0.0
  %2475 = vmatpush1.msra.mxu0 0.0
  %2476 = vmatprep.subr.mxu0 0.0
  %2477 = vmatpush1.msra.mxu0 0.0
  %2478 = vmatprep.subr.mxu0 0.0
  %2479 = vmatpush1.msra.mxu0 0.0
  %2480 = vmatprep.subr.mxu0 0.0
  %2481 = vmatpush1.msra.mxu0 0.0
  %2482 = vmatprep.subr.mxu0 0.0
  %2483 = vmatpush1.msra.mxu0 0.0
  %2484 = vmatprep.subr.mxu0 0.0
  %2485 = vmatpush1.msra.mxu0 0.0
  %2486 = vmatprep.subr.mxu0 0.0
  %2487 = vmatpush1.msra.mxu0 0.0
  %2488 = vmatprep.subr.mxu0 0.0
  %2489 = vmatpush1.msra.mxu0 0.0
  %2490 = vmatprep.subr.mxu0 0.0
  %2491 = vmatpush1.msra.mxu0 0.0
  %2492 = vmatprep.subr.mxu0 0.0
  %2493 = vmatpush1.msra.mxu0 0.0
  %2494 = vmatprep.subr.mxu0 0.0
  %2495 = vmatpush1.msra.mxu0 0.0
  %2496 = vmatprep.mubr.f32.mxu0 0.0
  %2497 = vmatmul.mubr.f32.gmra.mrb[0].mxu0 %v2430
  %v2498 = vpop.f32.mrb[0].mxu0
  %v2499 = vadd.f32 0.0, %v2498
  %v2500 = vpop.f32.mrb[0].mxu0
  %2501 = vdwg.mxu0
  %2502 = vrot.lane.b32.xlu0 %v2247, 64
  %v2503 = vpop.permute.xlu0 %2502
  %v2506 = vsel %vm193, %v2425, 0
  %2508 = vmatprep.subr.mxu0 0.0
  %2509 = vmatpush1.msra.mxu0 %v2503
  %2510 = vmatprep.subr.mxu0 0.0
  %2511 = vmatpush1.msra.mxu0 0.0
  %2512 = vmatprep.subr.mxu0 0.0
  %2513 = vmatpush1.msra.mxu0 0.0
  %2514 = vmatprep.subr.mxu0 0.0
  %2515 = vmatpush1.msra.mxu0 0.0
  %2516 = vmatprep.subr.mxu0 0.0
  %2517 = vmatpush1.msra.mxu0 0.0
  %2518 = vmatprep.subr.mxu0 0.0
  %2519 = vmatpush1.msra.mxu0 0.0
  %2520 = vmatprep.subr.mxu0 0.0
  %2521 = vmatpush1.msra.mxu0 0.0
  %2522 = vmatprep.subr.mxu0 0.0
  %2523 = vmatpush1.msra.mxu0 0.0
  %2524 = vmatprep.subr.mxu0 0.0
  %2525 = vmatpush1.msra.mxu0 0.0
  %2526 = vmatprep.subr.mxu0 0.0
  %2527 = vmatpush1.msra.mxu0 0.0
  %2528 = vmatprep.subr.mxu0 0.0
  %2529 = vmatpush1.msra.mxu0 0.0
  %2530 = vmatprep.subr.mxu0 0.0
  %2531 = vmatpush1.msra.mxu0 0.0
  %2532 = vmatprep.subr.mxu0 0.0
  %2533 = vmatpush1.msra.mxu0 0.0
  %2534 = vmatprep.subr.mxu0 0.0
  %2535 = vmatpush1.msra.mxu0 0.0
  %2536 = vmatprep.subr.mxu0 0.0
  %2537 = vmatpush1.msra.mxu0 0.0
  %2538 = vmatprep.subr.mxu0 0.0
  %2539 = vmatpush1.msra.mxu0 0.0
  %2540 = vmatprep.subr.mxu0 0.0
  %2541 = vmatpush1.msra.mxu0 0.0
  %2542 = vmatprep.subr.mxu0 0.0
  %2543 = vmatpush1.msra.mxu0 0.0
  %2544 = vmatprep.subr.mxu0 0.0
  %2545 = vmatpush1.msra.mxu0 0.0
  %2546 = vmatprep.subr.mxu0 0.0
  %2547 = vmatpush1.msra.mxu0 0.0
  %2548 = vmatprep.subr.mxu0 0.0
  %2549 = vmatpush1.msra.mxu0 0.0
  %2550 = vmatprep.subr.mxu0 0.0
  %2551 = vmatpush1.msra.mxu0 0.0
  %2552 = vmatprep.subr.mxu0 0.0
  %2553 = vmatpush1.msra.mxu0 0.0
  %2554 = vmatprep.subr.mxu0 0.0
  %2555 = vmatpush1.msra.mxu0 0.0
  %2556 = vmatprep.subr.mxu0 0.0
  %2557 = vmatpush1.msra.mxu0 0.0
  %2558 = vmatprep.subr.mxu0 0.0
  %2559 = vmatpush1.msra.mxu0 0.0
  %2560 = vmatprep.subr.mxu0 0.0
  %2561 = vmatpush1.msra.mxu0 0.0
  %2562 = vmatprep.subr.mxu0 0.0
  %2563 = vmatpush1.msra.mxu0 0.0
  %2564 = vmatprep.subr.mxu0 0.0
  %2565 = vmatpush1.msra.mxu0 0.0
  %2566 = vmatprep.subr.mxu0 0.0
  %2567 = vmatpush1.msra.mxu0 0.0
  %2568 = vmatprep.subr.mxu0 0.0
  %2569 = vmatpush1.msra.mxu0 0.0
  %2570 = vmatprep.subr.mxu0 0.0
  %2571 = vmatpush1.msra.mxu0 0.0
  %2572 = vmatprep.mubr.f32.mxu0 0.0
  %2573 = vmatmul.mubr.f32.gmra.mrb[0].mxu0 %v2506
  %v2574 = vpop.f32.mrb[0].mxu0
  %v2575 = vadd.f32 0.0, %v2574
  %v2576 = vpop.f32.mrb[0].mxu0
  %2577 = vdwg.mxu0
  %2578 = vrot.lane.b32.xlu0 %v2242, 120
  %v2579 = vpop.permute.xlu0 %2578
  %2580 = vrot.lane.b32.xlu0 %v2242, 88
  %v2581 = vpop.permute.xlu0 %2580
  %v2582 = vsel %vm193, %v2579, 0
  %v2584 = vsel %vm193, %v2581, 0
  %2586 = vmatprep.subr.mxu0 0.0
  %2587 = vmatpush1.xpose.msra.mxu0 %v2584
  %2588 = vmatprep.subr.mxu0 0.0
  %2589 = vmatpush1.xpose.msra.mxu0 0.0
  %2590 = vmatprep.subr.mxu0 0.0
  %2591 = vmatpush1.xpose.msra.mxu0 0.0
  %2592 = vmatprep.subr.mxu0 0.0
  %2593 = vmatpush1.xpose.msra.mxu0 0.0
  %2594 = vmatprep.subr.mxu0 0.0
  %2595 = vmatpush1.xpose.msra.mxu0 0.0
  %2596 = vmatprep.subr.mxu0 0.0
  %2597 = vmatpush1.xpose.msra.mxu0 0.0
  %2598 = vmatprep.subr.mxu0 0.0
  %2599 = vmatpush1.xpose.msra.mxu0 0.0
  %2600 = vmatprep.subr.mxu0 0.0
  %2601 = vmatpush1.xpose.msra.mxu0 0.0
  %2602 = vmatprep.subr.mxu0 0.0
  %2603 = vmatpush1.xpose.msra.mxu0 0.0
  %2604 = vmatprep.subr.mxu0 0.0
  %2605 = vmatpush1.xpose.msra.mxu0 0.0
  %2606 = vmatprep.subr.mxu0 0.0
  %2607 = vmatpush1.xpose.msra.mxu0 0.0
  %2608 = vmatprep.subr.mxu0 0.0
  %2609 = vmatpush1.xpose.msra.mxu0 0.0
  %2610 = vmatprep.subr.mxu0 0.0
  %2611 = vmatpush1.xpose.msra.mxu0 0.0
  %2612 = vmatprep.subr.mxu0 0.0
  %2613 = vmatpush1.xpose.msra.mxu0 0.0
  %2614 = vmatprep.subr.mxu0 0.0
  %2615 = vmatpush1.xpose.msra.mxu0 0.0
  %2616 = vmatprep.subr.mxu0 0.0
  %2617 = vmatpush1.xpose.msra.mxu0 0.0
  %2618 = vmatprep.subr.mxu0 0.0
  %2619 = vmatpush1.xpose.msra.mxu0 0.0
  %2620 = vmatprep.subr.mxu0 0.0
  %2621 = vmatpush1.xpose.msra.mxu0 0.0
  %2622 = vmatprep.subr.mxu0 0.0
  %2623 = vmatpush1.xpose.msra.mxu0 0.0
  %2624 = vmatprep.subr.mxu0 0.0
  %2625 = vmatpush1.xpose.msra.mxu0 0.0
  %2626 = vmatprep.subr.mxu0 0.0
  %2627 = vmatpush1.xpose.msra.mxu0 0.0
  %2628 = vmatprep.subr.mxu0 0.0
  %2629 = vmatpush1.xpose.msra.mxu0 0.0
  %2630 = vmatprep.subr.mxu0 0.0
  %2631 = vmatpush1.xpose.msra.mxu0 0.0
  %2632 = vmatprep.subr.mxu0 0.0
  %2633 = vmatpush1.xpose.msra.mxu0 0.0
  %2634 = vmatprep.subr.mxu0 0.0
  %2635 = vmatpush1.xpose.msra.mxu0 0.0
  %2636 = vmatprep.subr.mxu0 0.0
  %2637 = vmatpush1.xpose.msra.mxu0 0.0
  %2638 = vmatprep.subr.mxu0 0.0
  %2639 = vmatpush1.xpose.msra.mxu0 0.0
  %2640 = vmatprep.subr.mxu0 0.0
  %2641 = vmatpush1.xpose.msra.mxu0 0.0
  %2642 = vmatprep.subr.mxu0 0.0
  %2643 = vmatpush1.xpose.msra.mxu0 0.0
  %2644 = vmatprep.subr.mxu0 0.0
  %2645 = vmatpush1.xpose.msra.mxu0 0.0
  %2646 = vmatprep.subr.mxu0 0.0
  %2647 = vmatpush1.xpose.msra.mxu0 0.0
  %2648 = vmatprep.subr.mxu0 0.0
  %2649 = vmatpush1.xpose.msra.mxu0 0.0
  %2650 = vmatprep.mubr.f32.mxu0 0.0
  %2651 = vmatmul.mubr.f32.gmra.mrb[0].mxu0 %v2582
  %v2652 = vpop.f32.mrb[0].mxu0
  %v2653 = vadd.f32 %v183, %v2652
  %v2654 = vpop.f32.mrb[0].mxu0
  %2655 = vdwg.mxu0
  %2656 = vrot.lane.b32.xlu0 %v2247, 120
  %v2657 = vpop.permute.xlu0 %2656
  %2658 = vrot.lane.b32.xlu0 %v2247, 88
  %v2659 = vpop.permute.xlu0 %2658
  %v2660 = vsel %vm193, %v2657, 0
  %v2662 = vsel %vm193, %v2659, 0
  %2664 = vmatprep.subr.mxu0 0.0
  %2665 = vmatpush1.xpose.msra.mxu0 %v2662
  %2666 = vmatprep.subr.mxu0 0.0
  %2667 = vmatpush1.xpose.msra.mxu0 0.0
  %2668 = vmatprep.subr.mxu0 0.0
  %2669 = vmatpush1.xpose.msra.mxu0 0.0
  %2670 = vmatprep.subr.mxu0 0.0
  %2671 = vmatpush1.xpose.msra.mxu0 0.0
  %2672 = vmatprep.subr.mxu0 0.0
  %2673 = vmatpush1.xpose.msra.mxu0 0.0
  %2674 = vmatprep.subr.mxu0 0.0
  %2675 = vmatpush1.xpose.msra.mxu0 0.0
  %2676 = vmatprep.subr.mxu0 0.0
  %2677 = vmatpush1.xpose.msra.mxu0 0.0
  %2678 = vmatprep.subr.mxu0 0.0
  %2679 = vmatpush1.xpose.msra.mxu0 0.0
  %2680 = vmatprep.subr.mxu0 0.0
  %2681 = vmatpush1.xpose.msra.mxu0 0.0
  %2682 = vmatprep.subr.mxu0 0.0
  %2683 = vmatpush1.xpose.msra.mxu0 0.0
  %2684 = vmatprep.subr.mxu0 0.0
  %2685 = vmatpush1.xpose.msra.mxu0 0.0
  %2686 = vmatprep.subr.mxu0 0.0
  %2687 = vmatpush1.xpose.msra.mxu0 0.0
  %2688 = vmatprep.subr.mxu0 0.0
  %2689 = vmatpush1.xpose.msra.mxu0 0.0
  %2690 = vmatprep.subr.mxu0 0.0
  %2691 = vmatpush1.xpose.msra.mxu0 0.0
  %2692 = vmatprep.subr.mxu0 0.0
  %2693 = vmatpush1.xpose.msra.mxu0 0.0
  %2694 = vmatprep.subr.mxu0 0.0
  %2695 = vmatpush1.xpose.msra.mxu0 0.0
  %2696 = vmatprep.subr.mxu0 0.0
  %2697 = vmatpush1.xpose.msra.mxu0 0.0
  %2698 = vmatprep.subr.mxu0 0.0
  %2699 = vmatpush1.xpose.msra.mxu0 0.0
  %2700 = vmatprep.subr.mxu0 0.0
  %2701 = vmatpush1.xpose.msra.mxu0 0.0
  %2702 = vmatprep.subr.mxu0 0.0
  %2703 = vmatpush1.xpose.msra.mxu0 0.0
  %2704 = vmatprep.subr.mxu0 0.0
  %2705 = vmatpush1.xpose.msra.mxu0 0.0
  %2706 = vmatprep.subr.mxu0 0.0
  %2707 = vmatpush1.xpose.msra.mxu0 0.0
  %2708 = vmatprep.subr.mxu0 0.0
  %2709 = vmatpush1.xpose.msra.mxu0 0.0
  %2710 = vmatprep.subr.mxu0 0.0
  %2711 = vmatpush1.xpose.msra.mxu0 0.0
  %2712 = vmatprep.subr.mxu0 0.0
  %2713 = vmatpush1.xpose.msra.mxu0 0.0
  %2714 = vmatprep.subr.mxu0 0.0
  %2715 = vmatpush1.xpose.msra.mxu0 0.0
  %2716 = vmatprep.subr.mxu0 0.0
  %2717 = vmatpush1.xpose.msra.mxu0 0.0
  %2718 = vmatprep.subr.mxu0 0.0
  %2719 = vmatpush1.xpose.msra.mxu0 0.0
  %2720 = vmatprep.subr.mxu0 0.0
  %2721 = vmatpush1.xpose.msra.mxu0 0.0
  %2722 = vmatprep.subr.mxu0 0.0
  %2723 = vmatpush1.xpose.msra.mxu0 0.0
  %2724 = vmatprep.subr.mxu0 0.0
  %2725 = vmatpush1.xpose.msra.mxu0 0.0
  %2726 = vmatprep.subr.mxu0 0.0
  %2727 = vmatpush1.xpose.msra.mxu0 0.0
  %2728 = vmatprep.mubr.f32.mxu0 0.0
  %2729 = vmatmul.mubr.f32.gmra.mrb[0].mxu0 %v2660
  %v2730 = vpop.f32.mrb[0].mxu0
  %v2731 = vadd.f32 %v187, %v2730
  %v2732 = vpop.f32.mrb[0].mxu0
  %2733 = vdwg.mxu0
  %v2734 = vsel %vm193, %v2653, -inf
  %2735 = vmax.xlane.f32.xlu0 %v2734
  %v2736 = vpop.xlane.xlu0 %2735
  %v2737 = vsel %vm193, %v2731, -inf
  %2738 = vmax.xlane.f32.xlu0 %v2737
  %v2739 = vpop.xlane.xlu0 %2738
  %v2740 = vsub.f32 %v2653, %v2736
  %v2741 = vsub.f32 %v2731, %v2739
  %v2742 = vmul.f32 %v2740, 1.442695
  %v2743 = vpow.pop %v2742
  %v2744 = vmul.f32 %v2741, 1.442695
  %v2745 = vpow.pop %v2744
  %v2746 = vsel %vm193, %v2743, 0.0
  %2747 = vadd.xlane.f32.xlu0 %v2746
  %v2748 = vpop.xlane.xlu0 %2747
  %v2749 = vsel %vm193, %v2745, 0.0
  %2750 = vadd.xlane.f32.xlu0 %v2749
  %v2751 = vpop.xlane.xlu0 %2750
  %v2752 = vrcp.pop %v2748
  %v2753 = vmul.f32 %v2743, %v2752
  %v2754 = vrcp.pop %v2751
  %v2755 = vmul.f32 %v2745, %v2754
  %2756 = vrot.lane.b32.xlu0 %v2242, 56
  %v2757 = vpop.permute.xlu0 %2756
  %v2760 = vsel %vm193, %v2753, 0
  %2762 = vmatprep.subr.mxu0 0.0
  %2763 = vmatpush1.msra.mxu0 %v2757
  %2764 = vmatprep.subr.mxu0 0.0
  %2765 = vmatpush1.msra.mxu0 0.0
  %2766 = vmatprep.subr.mxu0 0.0
  %2767 = vmatpush1.msra.mxu0 0.0
  %2768 = vmatprep.subr.mxu0 0.0
  %2769 = vmatpush1.msra.mxu0 0.0
  %2770 = vmatprep.subr.mxu0 0.0
  %2771 = vmatpush1.msra.mxu0 0.0
  %2772 = vmatprep.subr.mxu0 0.0
  %2773 = vmatpush1.msra.mxu0 0.0
  %2774 = vmatprep.subr.mxu0 0.0
  %2775 = vmatpush1.msra.mxu0 0.0
  %2776 = vmatprep.subr.mxu0 0.0
  %2777 = vmatpush1.msra.mxu0 0.0
  %2778 = vmatprep.subr.mxu0 0.0
  %2779 = vmatpush1.msra.mxu0 0.0
  %2780 = vmatprep.subr.mxu0 0.0
  %2781 = vmatpush1.msra.mxu0 0.0
  %2782 = vmatprep.subr.mxu0 0.0
  %2783 = vmatpush1.msra.mxu0 0.0
  %2784 = vmatprep.subr.mxu0 0.0
  %2785 = vmatpush1.msra.mxu0 0.0
  %2786 = vmatprep.subr.mxu0 0.0
  %2787 = vmatpush1.msra.mxu0 0.0
  %2788 = vmatprep.subr.mxu0 0.0
  %2789 = vmatpush1.msra.mxu0 0.0
  %2790 = vmatprep.subr.mxu0 0.0
  %2791 = vmatpush1.msra.mxu0 0.0
  %2792 = vmatprep.subr.mxu0 0.0
  %2793 = vmatpush1.msra.mxu0 0.0
  %2794 = vmatprep.subr.mxu0 0.0
  %2795 = vmatpush1.msra.mxu0 0.0
  %2796 = vmatprep.subr.mxu0 0.0
  %2797 = vmatpush1.msra.mxu0 0.0
  %2798 = vmatprep.subr.mxu0 0.0
  %2799 = vmatpush1.msra.mxu0 0.0
  %2800 = vmatprep.subr.mxu0 0.0
  %2801 = vmatpush1.msra.mxu0 0.0
  %2802 = vmatprep.subr.mxu0 0.0
  %2803 = vmatpush1.msra.mxu0 0.0
  %2804 = vmatprep.subr.mxu0 0.0
  %2805 = vmatpush1.msra.mxu0 0.0
  %2806 = vmatprep.subr.mxu0 0.0
  %2807 = vmatpush1.msra.mxu0 0.0
  %2808 = vmatprep.subr.mxu0 0.0
  %2809 = vmatpush1.msra.mxu0 0.0
  %2810 = vmatprep.subr.mxu0 0.0
  %2811 = vmatpush1.msra.mxu0 0.0
  %2812 = vmatprep.subr.mxu0 0.0
  %2813 = vmatpush1.msra.mxu0 0.0
  %2814 = vmatprep.subr.mxu0 0.0
  %2815 = vmatpush1.msra.mxu0 0.0
  %2816 = vmatprep.subr.mxu0 0.0
  %2817 = vmatpush1.msra.mxu0 0.0
  %2818 = vmatprep.subr.mxu0 0.0
  %2819 = vmatpush1.msra.mxu0 0.0
  %2820 = vmatprep.subr.mxu0 0.0
  %2821 = vmatpush1.msra.mxu0 0.0
  %2822 = vmatprep.subr.mxu0 0.0
  %2823 = vmatpush1.msra.mxu0 0.0
  %2824 = vmatprep.subr.mxu0 0.0
  %2825 = vmatpush1.msra.mxu0 0.0
  %2826 = vmatprep.mubr.f32.mxu0 0.0
  %2827 = vmatmul.mubr.f32.gmra.mrb[0].mxu0 %v2760
  %v2828 = vpop.f32.mrb[0].mxu0
  %v2829 = vadd.f32 0.0, %v2828
  %v2830 = vpop.f32.mrb[0].mxu0
  %2831 = vdwg.mxu0
  %2832 = vrot.lane.b32.xlu0 %v2247, 56
  %v2833 = vpop.permute.xlu0 %2832
  %v2836 = vsel %vm193, %v2755, 0
  %2838 = vmatprep.subr.mxu0 0.0
  %2839 = vmatpush1.msra.mxu0 %v2833
  %2840 = vmatprep.subr.mxu0 0.0
  %2841 = vmatpush1.msra.mxu0 0.0
  %2842 = vmatprep.subr.mxu0 0.0
  %2843 = vmatpush1.msra.mxu0 0.0
  %2844 = vmatprep.subr.mxu0 0.0
  %2845 = vmatpush1.msra.mxu0 0.0
  %2846 = vmatprep.subr.mxu0 0.0
  %2847 = vmatpush1.msra.mxu0 0.0
  %2848 = vmatprep.subr.mxu0 0.0
  %2849 = vmatpush1.msra.mxu0 0.0
  %2850 = vmatprep.subr.mxu0 0.0
  %2851 = vmatpush1.msra.mxu0 0.0
  %2852 = vmatprep.subr.mxu0 0.0
  %2853 = vmatpush1.msra.mxu0 0.0
  %2854 = vmatprep.subr.mxu0 0.0
  %2855 = vmatpush1.msra.mxu0 0.0
  %2856 = vmatprep.subr.mxu0 0.0
  %2857 = vmatpush1.msra.mxu0 0.0
  %2858 = vmatprep.subr.mxu0 0.0
  %2859 = vmatpush1.msra.mxu0 0.0
  %2860 = vmatprep.subr.mxu0 0.0
  %2861 = vmatpush1.msra.mxu0 0.0
  %2862 = vmatprep.subr.mxu0 0.0
  %2863 = vmatpush1.msra.mxu0 0.0
  %2864 = vmatprep.subr.mxu0 0.0
  %2865 = vmatpush1.msra.mxu0 0.0
  %2866 = vmatprep.subr.mxu0 0.0
  %2867 = vmatpush1.msra.mxu0 0.0
  %2868 = vmatprep.subr.mxu0 0.0
  %2869 = vmatpush1.msra.mxu0 0.0
  %2870 = vmatprep.subr.mxu0 0.0
  %2871 = vmatpush1.msra.mxu0 0.0
  %2872 = vmatprep.subr.mxu0 0.0
  %2873 = vmatpush1.msra.mxu0 0.0
  %2874 = vmatprep.subr.mxu0 0.0
  %2875 = vmatpush1.msra.mxu0 0.0
  %2876 = vmatprep.subr.mxu0 0.0
  %2877 = vmatpush1.msra.mxu0 0.0
  %2878 = vmatprep.subr.mxu0 0.0
  %2879 = vmatpush1.msra.mxu0 0.0
  %2880 = vmatprep.subr.mxu0 0.0
  %2881 = vmatpush1.msra.mxu0 0.0
  %2882 = vmatprep.subr.mxu0 0.0
  %2883 = vmatpush1.msra.mxu0 0.0
  %2884 = vmatprep.subr.mxu0 0.0
  %2885 = vmatpush1.msra.mxu0 0.0
  %2886 = vmatprep.subr.mxu0 0.0
  %2887 = vmatpush1.msra.mxu0 0.0
  %2888 = vmatprep.subr.mxu0 0.0
  %2889 = vmatpush1.msra.mxu0 0.0
  %2890 = vmatprep.subr.mxu0 0.0
  %2891 = vmatpush1.msra.mxu0 0.0
  %2892 = vmatprep.subr.mxu0 0.0
  %2893 = vmatpush1.msra.mxu0 0.0
  %2894 = vmatprep.subr.mxu0 0.0
  %2895 = vmatpush1.msra.mxu0 0.0
  %2896 = vmatprep.subr.mxu0 0.0
  %2897 = vmatpush1.msra.mxu0 0.0
  %2898 = vmatprep.subr.mxu0 0.0
  %2899 = vmatpush1.msra.mxu0 0.0
  %2900 = vmatprep.subr.mxu0 0.0
  %2901 = vmatpush1.msra.mxu0 0.0
  %2902 = vmatprep.mubr.f32.mxu0 0.0
  %2903 = vmatmul.mubr.f32.gmra.mrb[0].mxu0 %v2836
  %v2904 = vpop.f32.mrb[0].mxu0
  %v2905 = vadd.f32 0.0, %v2904
  %v2906 = vpop.f32.mrb[0].mxu0
  %2907 = vdwg.mxu0
  %2909 = vrot.lane.b32.xlu0 %v2110, 32
  %v2910 = vpop.permute.xlu0 %2909
  %v2913 = vsel %vm193, %v2829, 0
  %v2916 = vsel %vm193, %v2905, 0
  %2918 = vmatprep.subr.mxu0 0.0
  %2919 = vmatpush1.msra.mxu0 %v2910
  %2920 = vmatprep.subr.mxu0 0.0
  %2921 = vmatpush1.msra.mxu0 0.0
  %2922 = vmatprep.subr.mxu0 0.0
  %2923 = vmatpush1.msra.mxu0 0.0
  %2924 = vmatprep.subr.mxu0 0.0
  %2925 = vmatpush1.msra.mxu0 0.0
  %2926 = vmatprep.subr.mxu0 0.0
  %2927 = vmatpush1.msra.mxu0 0.0
  %2928 = vmatprep.subr.mxu0 0.0
  %2929 = vmatpush1.msra.mxu0 0.0
  %2930 = vmatprep.subr.mxu0 0.0
  %2931 = vmatpush1.msra.mxu0 0.0
  %2932 = vmatprep.subr.mxu0 0.0
  %2933 = vmatpush1.msra.mxu0 0.0
  %2934 = vmatprep.subr.mxu0 0.0
  %2935 = vmatpush1.msra.mxu0 0.0
  %2936 = vmatprep.subr.mxu0 0.0
  %2937 = vmatpush1.msra.mxu0 0.0
  %2938 = vmatprep.subr.mxu0 0.0
  %2939 = vmatpush1.msra.mxu0 0.0
  %2940 = vmatprep.subr.mxu0 0.0
  %2941 = vmatpush1.msra.mxu0 0.0
  %2942 = vmatprep.subr.mxu0 0.0
  %2943 = vmatpush1.msra.mxu0 0.0
  %2944 = vmatprep.subr.mxu0 0.0
  %2945 = vmatpush1.msra.mxu0 0.0
  %2946 = vmatprep.subr.mxu0 0.0
  %2947 = vmatpush1.msra.mxu0 0.0
  %2948 = vmatprep.subr.mxu0 0.0
  %2949 = vmatpush1.msra.mxu0 0.0
  %2950 = vmatprep.subr.mxu0 0.0
  %2951 = vmatpush1.msra.mxu0 0.0
  %2952 = vmatprep.subr.mxu0 0.0
  %2953 = vmatpush1.msra.mxu0 0.0
  %2954 = vmatprep.subr.mxu0 0.0
  %2955 = vmatpush1.msra.mxu0 0.0
  %2956 = vmatprep.subr.mxu0 0.0
  %2957 = vmatpush1.msra.mxu0 0.0
  %2958 = vmatprep.subr.mxu0 0.0
  %2959 = vmatpush1.msra.mxu0 0.0
  %2960 = vmatprep.subr.mxu0 0.0
  %2961 = vmatpush1.msra.mxu0 0.0
  %2962 = vmatprep.subr.mxu0 0.0
  %2963 = vmatpush1.msra.mxu0 0.0
  %2964 = vmatprep.subr.mxu0 0.0
  %2965 = vmatpush1.msra.mxu0 0.0
  %2966 = vmatprep.subr.mxu0 0.0
  %2967 = vmatpush1.msra.mxu0 0.0
  %2968 = vmatprep.subr.mxu0 0.0
  %2969 = vmatpush1.msra.mxu0 0.0
  %2970 = vmatprep.subr.mxu0 0.0
  %2971 = vmatpush1.msra.mxu0 0.0
  %2972 = vmatprep.subr.mxu0 0.0
  %2973 = vmatpush1.msra.mxu0 0.0
  %2974 = vmatprep.subr.mxu0 0.0
  %2975 = vmatpush1.msra.mxu0 0.0
  %2976 = vmatprep.subr.mxu0 0.0
  %2977 = vmatpush1.msra.mxu0 0.0
  %2978 = vmatprep.subr.mxu0 0.0
  %2979 = vmatpush1.msra.mxu0 0.0
  %2980 = vmatprep.subr.mxu0 0.0
  %2981 = vmatpush1.msra.mxu0 0.0
  %2982 = vmatprep.mubr.f32.mxu0 0.0
  %2983 = vmatmul.mubr.f32.gmra.mrb[0].mxu0 %v2913
  %v2984 = vpop.f32.mrb[0].mxu0
  %v2985 = vadd.f32 0.0, %v2984
  %v2986 = vpop.f32.mrb[0].mxu0
  %2987 = vmatprep.mubr.f32.mxu0 0.0
  %2988 = vmatmul.mubr.f32.gmra.mrb[0].mxu0 %v2916
  %v2989 = vpop.f32.mrb[0].mxu0
  %v2990 = vadd.f32 0.0, %v2989
  %v2991 = vpop.f32.mrb[0].mxu0
  %2992 = vdwg.mxu0
  %2994 = vrot.lane.b32.xlu0 %v2109, 32
  %v2995 = vpop.permute.xlu0 %2994
  %v2998 = vsel %vm193, %v2499, 0
  %v3001 = vsel %vm193, %v2575, 0
  %3003 = vmatprep.subr.mxu0 0.0
  %3004 = vmatpush1.msra.mxu0 %v2995
  %3005 = vmatprep.subr.mxu0 0.0
  %3006 = vmatpush1.msra.mxu0 0.0
  %3007 = vmatprep.subr.mxu0 0.0
  %3008 = vmatpush1.msra.mxu0 0.0
  %3009 = vmatprep.subr.mxu0 0.0
  %3010 = vmatpush1.msra.mxu0 0.0
  %3011 = vmatprep.subr.mxu0 0.0
  %3012 = vmatpush1.msra.mxu0 0.0
  %3013 = vmatprep.subr.mxu0 0.0
  %3014 = vmatpush1.msra.mxu0 0.0
  %3015 = vmatprep.subr.mxu0 0.0
  %3016 = vmatpush1.msra.mxu0 0.0
  %3017 = vmatprep.subr.mxu0 0.0
  %3018 = vmatpush1.msra.mxu0 0.0
  %3019 = vmatprep.subr.mxu0 0.0
  %3020 = vmatpush1.msra.mxu0 0.0
  %3021 = vmatprep.subr.mxu0 0.0
  %3022 = vmatpush1.msra.mxu0 0.0
  %3023 = vmatprep.subr.mxu0 0.0
  %3024 = vmatpush1.msra.mxu0 0.0
  %3025 = vmatprep.subr.mxu0 0.0
  %3026 = vmatpush1.msra.mxu0 0.0
  %3027 = vmatprep.subr.mxu0 0.0
  %3028 = vmatpush1.msra.mxu0 0.0
  %3029 = vmatprep.subr.mxu0 0.0
  %3030 = vmatpush1.msra.mxu0 0.0
  %3031 = vmatprep.subr.mxu0 0.0
  %3032 = vmatpush1.msra.mxu0 0.0
  %3033 = vmatprep.subr.mxu0 0.0
  %3034 = vmatpush1.msra.mxu0 0.0
  %3035 = vmatprep.subr.mxu0 0.0
  %3036 = vmatpush1.msra.mxu0 0.0
  %3037 = vmatprep.subr.mxu0 0.0
  %3038 = vmatpush1.msra.mxu0 0.0
  %3039 = vmatprep.subr.mxu0 0.0
  %3040 = vmatpush1.msra.mxu0 0.0
  %3041 = vmatprep.subr.mxu0 0.0
  %3042 = vmatpush1.msra.mxu0 0.0
  %3043 = vmatprep.subr.mxu0 0.0
  %3044 = vmatpush1.msra.mxu0 0.0
  %3045 = vmatprep.subr.mxu0 0.0
  %3046 = vmatpush1.msra.mxu0 0.0
  %3047 = vmatprep.subr.mxu0 0.0
  %3048 = vmatpush1.msra.mxu0 0.0
  %3049 = vmatprep.subr.mxu0 0.0
  %3050 = vmatpush1.msra.mxu0 0.0
  %3051 = vmatprep.subr.mxu0 0.0
  %3052 = vmatpush1.msra.mxu0 0.0
  %3053 = vmatprep.subr.mxu0 0.0
  %3054 = vmatpush1.msra.mxu0 0.0
  %3055 = vmatprep.subr.mxu0 0.0
  %3056 = vmatpush1.msra.mxu0 0.0
  %3057 = vmatprep.subr.mxu0 0.0
  %3058 = vmatpush1.msra.mxu0 0.0
  %3059 = vmatprep.subr.mxu0 0.0
  %3060 = vmatpush1.msra.mxu0 0.0
  %3061 = vmatprep.subr.mxu0 0.0
  %3062 = vmatpush1.msra.mxu0 0.0
  %3063 = vmatprep.subr.mxu0 0.0
  %3064 = vmatpush1.msra.mxu0 0.0
  %3065 = vmatprep.subr.mxu0 0.0
  %3066 = vmatpush1.msra.mxu0 0.0
  %3067 = vmatprep.mubr.f32.mxu0 0.0
  %3068 = vmatmul.mubr.f32.gmra.mrb[0].mxu0 %v2998
  %v3069 = vpop.f32.mrb[0].mxu0
  %v3070 = vadd.f32 %v2985, %v3069
  %v3071 = vpop.f32.mrb[0].mxu0
  %3072 = vmatprep.mubr.f32.mxu0 0.0
  %3073 = vmatmul.mubr.f32.gmra.mrb[0].mxu0 %v3001
  %v3074 = vpop.f32.mrb[0].mxu0
  %v3075 = vadd.f32 %v2990, %v3074
  %v3076 = vpop.f32.mrb[0].mxu0
  %3077 = vdwg.mxu0
  %3078 = vrot.lane.b32.xlu0 %v2242, 112
  %v3079 = vpop.permute.xlu0 %3078
  %3080 = vrot.lane.b32.xlu0 %v2242, 80
  %v3081 = vpop.permute.xlu0 %3080
  %v3082 = vsel %vm193, %v3079, 0
  %v3084 = vsel %vm193, %v3081, 0
  %3086 = vmatprep.subr.mxu0 0.0
  %3087 = vmatpush1.xpose.msra.mxu0 %v3084
  %3088 = vmatprep.subr.mxu0 0.0
  %3089 = vmatpush1.xpose.msra.mxu0 0.0
  %3090 = vmatprep.subr.mxu0 0.0
  %3091 = vmatpush1.xpose.msra.mxu0 0.0
  %3092 = vmatprep.subr.mxu0 0.0
  %3093 = vmatpush1.xpose.msra.mxu0 0.0
  %3094 = vmatprep.subr.mxu0 0.0
  %3095 = vmatpush1.xpose.msra.mxu0 0.0
  %3096 = vmatprep.subr.mxu0 0.0
  %3097 = vmatpush1.xpose.msra.mxu0 0.0
  %3098 = vmatprep.subr.mxu0 0.0
  %3099 = vmatpush1.xpose.msra.mxu0 0.0
  %3100 = vmatprep.subr.mxu0 0.0
  %3101 = vmatpush1.xpose.msra.mxu0 0.0
  %3102 = vmatprep.subr.mxu0 0.0
  %3103 = vmatpush1.xpose.msra.mxu0 0.0
  %3104 = vmatprep.subr.mxu0 0.0
  %3105 = vmatpush1.xpose.msra.mxu0 0.0
  %3106 = vmatprep.subr.mxu0 0.0
  %3107 = vmatpush1.xpose.msra.mxu0 0.0
  %3108 = vmatprep.subr.mxu0 0.0
  %3109 = vmatpush1.xpose.msra.mxu0 0.0
  %3110 = vmatprep.subr.mxu0 0.0
  %3111 = vmatpush1.xpose.msra.mxu0 0.0
  %3112 = vmatprep.subr.mxu0 0.0
  %3113 = vmatpush1.xpose.msra.mxu0 0.0
  %3114 = vmatprep.subr.mxu0 0.0
  %3115 = vmatpush1.xpose.msra.mxu0 0.0
  %3116 = vmatprep.subr.mxu0 0.0
  %3117 = vmatpush1.xpose.msra.mxu0 0.0
  %3118 = vmatprep.subr.mxu0 0.0
  %3119 = vmatpush1.xpose.msra.mxu0 0.0
  %3120 = vmatprep.subr.mxu0 0.0
  %3121 = vmatpush1.xpose.msra.mxu0 0.0
  %3122 = vmatprep.subr.mxu0 0.0
  %3123 = vmatpush1.xpose.msra.mxu0 0.0
  %3124 = vmatprep.subr.mxu0 0.0
  %3125 = vmatpush1.xpose.msra.mxu0 0.0
  %3126 = vmatprep.subr.mxu0 0.0
  %3127 = vmatpush1.xpose.msra.mxu0 0.0
  %3128 = vmatprep.subr.mxu0 0.0
  %3129 = vmatpush1.xpose.msra.mxu0 0.0
  %3130 = vmatprep.subr.mxu0 0.0
  %3131 = vmatpush1.xpose.msra.mxu0 0.0
  %3132 = vmatprep.subr.mxu0 0.0
  %3133 = vmatpush1.xpose.msra.mxu0 0.0
  %3134 = vmatprep.subr.mxu0 0.0
  %3135 = vmatpush1.xpose.msra.mxu0 0.0
  %3136 = vmatprep.subr.mxu0 0.0
  %3137 = vmatpush1.xpose.msra.mxu0 0.0
  %3138 = vmatprep.subr.mxu0 0.0
  %3139 = vmatpush1.xpose.msra.mxu0 0.0
  %3140 = vmatprep.subr.mxu0 0.0
  %3141 = vmatpush1.xpose.msra.mxu0 0.0
  %3142 = vmatprep.subr.mxu0 0.0
  %3143 = vmatpush1.xpose.msra.mxu0 0.0
  %3144 = vmatprep.subr.mxu0 0.0
  %3145 = vmatpush1.xpose.msra.mxu0 0.0
  %3146 = vmatprep.subr.mxu0 0.0
  %3147 = vmatpush1.xpose.msra.mxu0 0.0
  %3148 = vmatprep.subr.mxu0 0.0
  %3149 = vmatpush1.xpose.msra.mxu0 0.0
  %3150 = vmatprep.mubr.f32.mxu0 0.0
  %3151 = vmatmul.mubr.f32.gmra.mrb[0].mxu0 %v3082
  %v3152 = vpop.f32.mrb[0].mxu0
  %v3153 = vadd.f32 %v183, %v3152
  %v3154 = vpop.f32.mrb[0].mxu0
  %3155 = vdwg.mxu0
  %3156 = vrot.lane.b32.xlu0 %v2247, 112
  %v3157 = vpop.permute.xlu0 %3156
  %3158 = vrot.lane.b32.xlu0 %v2247, 80
  %v3159 = vpop.permute.xlu0 %3158
  %v3160 = vsel %vm193, %v3157, 0
  %v3162 = vsel %vm193, %v3159, 0
  %3164 = vmatprep.subr.mxu0 0.0
  %3165 = vmatpush1.xpose.msra.mxu0 %v3162
  %3166 = vmatprep.subr.mxu0 0.0
  %3167 = vmatpush1.xpose.msra.mxu0 0.0
  %3168 = vmatprep.subr.mxu0 0.0
  %3169 = vmatpush1.xpose.msra.mxu0 0.0
  %3170 = vmatprep.subr.mxu0 0.0
  %3171 = vmatpush1.xpose.msra.mxu0 0.0
  %3172 = vmatprep.subr.mxu0 0.0
  %3173 = vmatpush1.xpose.msra.mxu0 0.0
  %3174 = vmatprep.subr.mxu0 0.0
  %3175 = vmatpush1.xpose.msra.mxu0 0.0
  %3176 = vmatprep.subr.mxu0 0.0
  %3177 = vmatpush1.xpose.msra.mxu0 0.0
  %3178 = vmatprep.subr.mxu0 0.0
  %3179 = vmatpush1.xpose.msra.mxu0 0.0
  %3180 = vmatprep.subr.mxu0 0.0
  %3181 = vmatpush1.xpose.msra.mxu0 0.0
  %3182 = vmatprep.subr.mxu0 0.0
  %3183 = vmatpush1.xpose.msra.mxu0 0.0
  %3184 = vmatprep.subr.mxu0 0.0
  %3185 = vmatpush1.xpose.msra.mxu0 0.0
  %3186 = vmatprep.subr.mxu0 0.0
  %3187 = vmatpush1.xpose.msra.mxu0 0.0
  %3188 = vmatprep.subr.mxu0 0.0
  %3189 = vmatpush1.xpose.msra.mxu0 0.0
  %3190 = vmatprep.subr.mxu0 0.0
  %3191 = vmatpush1.xpose.msra.mxu0 0.0
  %3192 = vmatprep.subr.mxu0 0.0
  %3193 = vmatpush1.xpose.msra.mxu0 0.0
  %3194 = vmatprep.subr.mxu0 0.0
  %3195 = vmatpush1.xpose.msra.mxu0 0.0
  %3196 = vmatprep.subr.mxu0 0.0
  %3197 = vmatpush1.xpose.msra.mxu0 0.0
  %3198 = vmatprep.subr.mxu0 0.0
  %3199 = vmatpush1.xpose.msra.mxu0 0.0
  %3200 = vmatprep.subr.mxu0 0.0
  %3201 = vmatpush1.xpose.msra.mxu0 0.0
  %3202 = vmatprep.subr.mxu0 0.0
  %3203 = vmatpush1.xpose.msra.mxu0 0.0
  %3204 = vmatprep.subr.mxu0 0.0
  %3205 = vmatpush1.xpose.msra.mxu0 0.0
  %3206 = vmatprep.subr.mxu0 0.0
  %3207 = vmatpush1.xpose.msra.mxu0 0.0
  %3208 = vmatprep.subr.mxu0 0.0
  %3209 = vmatpush1.xpose.msra.mxu0 0.0
  %3210 = vmatprep.subr.mxu0 0.0
  %3211 = vmatpush1.xpose.msra.mxu0 0.0
  %3212 = vmatprep.subr.mxu0 0.0
  %3213 = vmatpush1.xpose.msra.mxu0 0.0
  %3214 = vmatprep.subr.mxu0 0.0
  %3215 = vmatpush1.xpose.msra.mxu0 0.0
  %3216 = vmatprep.subr.mxu0 0.0
  %3217 = vmatpush1.xpose.msra.mxu0 0.0
  %3218 = vmatprep.subr.mxu0 0.0
  %3219 = vmatpush1.xpose.msra.mxu0 0.0
  %3220 = vmatprep.subr.mxu0 0.0
  %3221 = vmatpush1.xpose.msra.mxu0 0.0
  %3222 = vmatprep.subr.mxu0 0.0
  %3223 = vmatpush1.xpose.msra.mxu0 0.0
  %3224 = vmatprep.subr.mxu0 0.0
  %3225 = vmatpush1.xpose.msra.mxu0 0.0
  %3226 = vmatprep.subr.mxu0 0.0
  %3227 = vmatpush1.xpose.msra.mxu0 0.0
  %3228 = vmatprep.mubr.f32.mxu0 0.0
  %3229 = vmatmul.mubr.f32.gmra.mrb[0].mxu0 %v3160
  %v3230 = vpop.f32.mrb[0].mxu0
  %v3231 = vadd.f32 %v187, %v3230
  %v3232 = vpop.f32.mrb[0].mxu0
  %3233 = vdwg.mxu0
  %v3234 = vsel %vm193, %v3153, -inf
  %3235 = vmax.xlane.f32.xlu0 %v3234
  %v3236 = vpop.xlane.xlu0 %3235
  %v3237 = vsel %vm193, %v3231, -inf
  %3238 = vmax.xlane.f32.xlu0 %v3237
  %v3239 = vpop.xlane.xlu0 %3238
  %v3240 = vsub.f32 %v3153, %v3236
  %v3241 = vsub.f32 %v3231, %v3239
  %v3242 = vmul.f32 %v3240, 1.442695
  %v3243 = vpow.pop %v3242
  %v3244 = vmul.f32 %v3241, 1.442695
  %v3245 = vpow.pop %v3244
  %v3246 = vsel %vm193, %v3243, 0.0
  %3247 = vadd.xlane.f32.xlu0 %v3246
  %v3248 = vpop.xlane.xlu0 %3247
  %v3249 = vsel %vm193, %v3245, 0.0
  %3250 = vadd.xlane.f32.xlu0 %v3249
  %v3251 = vpop.xlane.xlu0 %3250
  %v3252 = vrcp.pop %v3248
  %v3253 = vmul.f32 %v3243, %v3252
  %v3254 = vrcp.pop %v3251
  %v3255 = vmul.f32 %v3245, %v3254
  %3256 = vrot.lane.b32.xlu0 %v2242, 48
  %v3257 = vpop.permute.xlu0 %3256
  %v3260 = vsel %vm193, %v3253, 0
  %3262 = vmatprep.subr.mxu0 0.0
  %3263 = vmatpush1.msra.mxu0 %v3257
  %3264 = vmatprep.subr.mxu0 0.0
  %3265 = vmatpush1.msra.mxu0 0.0
  %3266 = vmatprep.subr.mxu0 0.0
  %3267 = vmatpush1.msra.mxu0 0.0
  %3268 = vmatprep.subr.mxu0 0.0
  %3269 = vmatpush1.msra.mxu0 0.0
  %3270 = vmatprep.subr.mxu0 0.0
  %3271 = vmatpush1.msra.mxu0 0.0
  %3272 = vmatprep.subr.mxu0 0.0
  %3273 = vmatpush1.msra.mxu0 0.0
  %3274 = vmatprep.subr.mxu0 0.0
  %3275 = vmatpush1.msra.mxu0 0.0
  %3276 = vmatprep.subr.mxu0 0.0
  %3277 = vmatpush1.msra.mxu0 0.0
  %3278 = vmatprep.subr.mxu0 0.0
  %3279 = vmatpush1.msra.mxu0 0.0
  %3280 = vmatprep.subr.mxu0 0.0
  %3281 = vmatpush1.msra.mxu0 0.0
  %3282 = vmatprep.subr.mxu0 0.0
  %3283 = vmatpush1.msra.mxu0 0.0
  %3284 = vmatprep.subr.mxu0 0.0
  %3285 = vmatpush1.msra.mxu0 0.0
  %3286 = vmatprep.subr.mxu0 0.0
  %3287 = vmatpush1.msra.mxu0 0.0
  %3288 = vmatprep.subr.mxu0 0.0
  %3289 = vmatpush1.msra.mxu0 0.0
  %3290 = vmatprep.subr.mxu0 0.0
  %3291 = vmatpush1.msra.mxu0 0.0
  %3292 = vmatprep.subr.mxu0 0.0
  %3293 = vmatpush1.msra.mxu0 0.0
  %3294 = vmatprep.subr.mxu0 0.0
  %3295 = vmatpush1.msra.mxu0 0.0
  %3296 = vmatprep.subr.mxu0 0.0
  %3297 = vmatpush1.msra.mxu0 0.0
  %3298 = vmatprep.subr.mxu0 0.0
  %3299 = vmatpush1.msra.mxu0 0.0
  %3300 = vmatprep.subr.mxu0 0.0
  %3301 = vmatpush1.msra.mxu0 0.0
  %3302 = vmatprep.subr.mxu0 0.0
  %3303 = vmatpush1.msra.mxu0 0.0
  %3304 = vmatprep.subr.mxu0 0.0
  %3305 = vmatpush1.msra.mxu0 0.0
  %3306 = vmatprep.subr.mxu0 0.0
  %3307 = vmatpush1.msra.mxu0 0.0
  %3308 = vmatprep.subr.mxu0 0.0
  %3309 = vmatpush1.msra.mxu0 0.0
  %3310 = vmatprep.subr.mxu0 0.0
  %3311 = vmatpush1.msra.mxu0 0.0
  %3312 = vmatprep.subr.mxu0 0.0
  %3313 = vmatpush1.msra.mxu0 0.0
  %3314 = vmatprep.subr.mxu0 0.0
  %3315 = vmatpush1.msra.mxu0 0.0
  %3316 = vmatprep.subr.mxu0 0.0
  %3317 = vmatpush1.msra.mxu0 0.0
  %3318 = vmatprep.subr.mxu0 0.0
  %3319 = vmatpush1.msra.mxu0 0.0
  %3320 = vmatprep.subr.mxu0 0.0
  %3321 = vmatpush1.msra.mxu0 0.0
  %3322 = vmatprep.subr.mxu0 0.0
  %3323 = vmatpush1.msra.mxu0 0.0
  %3324 = vmatprep.subr.mxu0 0.0
  %3325 = vmatpush1.msra.mxu0 0.0
  %3326 = vmatprep.mubr.f32.mxu0 0.0
  %3327 = vmatmul.mubr.f32.gmra.mrb[0].mxu0 %v3260
  %v3328 = vpop.f32.mrb[0].mxu0
  %v3329 = vadd.f32 0.0, %v3328
  %v3330 = vpop.f32.mrb[0].mxu0
  %3331 = vdwg.mxu0
  %3332 = vrot.lane.b32.xlu0 %v2247, 48
  %v3333 = vpop.permute.xlu0 %3332
  %v3336 = vsel %vm193, %v3255, 0
  %3338 = vmatprep.subr.mxu0 0.0
  %3339 = vmatpush1.msra.mxu0 %v3333
  %3340 = vmatprep.subr.mxu0 0.0
  %3341 = vmatpush1.msra.mxu0 0.0
  %3342 = vmatprep.subr.mxu0 0.0
  %3343 = vmatpush1.msra.mxu0 0.0
  %3344 = vmatprep.subr.mxu0 0.0
  %3345 = vmatpush1.msra.mxu0 0.0
  %3346 = vmatprep.subr.mxu0 0.0
  %3347 = vmatpush1.msra.mxu0 0.0
  %3348 = vmatprep.subr.mxu0 0.0
  %3349 = vmatpush1.msra.mxu0 0.0
  %3350 = vmatprep.subr.mxu0 0.0
  %3351 = vmatpush1.msra.mxu0 0.0
  %3352 = vmatprep.subr.mxu0 0.0
  %3353 = vmatpush1.msra.mxu0 0.0
  %3354 = vmatprep.subr.mxu0 0.0
  %3355 = vmatpush1.msra.mxu0 0.0
  %3356 = vmatprep.subr.mxu0 0.0
  %3357 = vmatpush1.msra.mxu0 0.0
  %3358 = vmatprep.subr.mxu0 0.0
  %3359 = vmatpush1.msra.mxu0 0.0
  %3360 = vmatprep.subr.mxu0 0.0
  %3361 = vmatpush1.msra.mxu0 0.0
  %3362 = vmatprep.subr.mxu0 0.0
  %3363 = vmatpush1.msra.mxu0 0.0
  %3364 = vmatprep.subr.mxu0 0.0
  %3365 = vmatpush1.msra.mxu0 0.0
  %3366 = vmatprep.subr.mxu0 0.0
  %3367 = vmatpush1.msra.mxu0 0.0
  %3368 = vmatprep.subr.mxu0 0.0
  %3369 = vmatpush1.msra.mxu0 0.0
  %3370 = vmatprep.subr.mxu0 0.0
  %3371 = vmatpush1.msra.mxu0 0.0
  %3372 = vmatprep.subr.mxu0 0.0
  %3373 = vmatpush1.msra.mxu0 0.0
  %3374 = vmatprep.subr.mxu0 0.0
  %3375 = vmatpush1.msra.mxu0 0.0
  %3376 = vmatprep.subr.mxu0 0.0
  %3377 = vmatpush1.msra.mxu0 0.0
  %3378 = vmatprep.subr.mxu0 0.0
  %3379 = vmatpush1.msra.mxu0 0.0
  %3380 = vmatprep.subr.mxu0 0.0
  %3381 = vmatpush1.msra.mxu0 0.0
  %3382 = vmatprep.subr.mxu0 0.0
  %3383 = vmatpush1.msra.mxu0 0.0
  %3384 = vmatprep.subr.mxu0 0.0
  %3385 = vmatpush1.msra.mxu0 0.0
  %3386 = vmatprep.subr.mxu0 0.0
  %3387 = vmatpush1.msra.mxu0 0.0
  %3388 = vmatprep.subr.mxu0 0.0
  %3389 = vmatpush1.msra.mxu0 0.0
  %3390 = vmatprep.subr.mxu0 0.0
  %3391 = vmatpush1.msra.mxu0 0.0
  %3392 = vmatprep.subr.mxu0 0.0
  %3393 = vmatpush1.msra.mxu0 0.0
  %3394 = vmatprep.subr.mxu0 0.0
  %3395 = vmatpush1.msra.mxu0 0.0
  %3396 = vmatprep.subr.mxu0 0.0
  %3397 = vmatpush1.msra.mxu0 0.0
  %3398 = vmatprep.subr.mxu0 0.0
  %3399 = vmatpush1.msra.mxu0 0.0
  %3400 = vmatprep.subr.mxu0 0.0
  %3401 = vmatpush1.msra.mxu0 0.0
  %3402 = vmatprep.mubr.f32.mxu0 0.0
  %3403 = vmatmul.mubr.f32.gmra.mrb[0].mxu0 %v3336
  %v3404 = vpop.f32.mrb[0].mxu0
  %v3405 = vadd.f32 0.0, %v3404
  %v3406 = vpop.f32.mrb[0].mxu0
  %3407 = vdwg.mxu0
  %3409 = vrot.lane.b32.xlu0 %v2111, 32
  %v3410 = vpop.permute.xlu0 %3409
  %v3413 = vsel %vm193, %v3329, 0
  %v3416 = vsel %vm193, %v3405, 0
  %3418 = vmatprep.subr.mxu0 0.0
  %3419 = vmatpush1.msra.mxu0 %v3410
  %3420 = vmatprep.subr.mxu0 0.0
  %3421 = vmatpush1.msra.mxu0 0.0
  %3422 = vmatprep.subr.mxu0 0.0
  %3423 = vmatpush1.msra.mxu0 0.0
  %3424 = vmatprep.subr.mxu0 0.0
  %3425 = vmatpush1.msra.mxu0 0.0
  %3426 = vmatprep.subr.mxu0 0.0
  %3427 = vmatpush1.msra.mxu0 0.0
  %3428 = vmatprep.subr.mxu0 0.0
  %3429 = vmatpush1.msra.mxu0 0.0
  %3430 = vmatprep.subr.mxu0 0.0
  %3431 = vmatpush1.msra.mxu0 0.0
  %3432 = vmatprep.subr.mxu0 0.0
  %3433 = vmatpush1.msra.mxu0 0.0
  %3434 = vmatprep.subr.mxu0 0.0
  %3435 = vmatpush1.msra.mxu0 0.0
  %3436 = vmatprep.subr.mxu0 0.0
  %3437 = vmatpush1.msra.mxu0 0.0
  %3438 = vmatprep.subr.mxu0 0.0
  %3439 = vmatpush1.msra.mxu0 0.0
  %3440 = vmatprep.subr.mxu0 0.0
  %3441 = vmatpush1.msra.mxu0 0.0
  %3442 = vmatprep.subr.mxu0 0.0
  %3443 = vmatpush1.msra.mxu0 0.0
  %3444 = vmatprep.subr.mxu0 0.0
  %3445 = vmatpush1.msra.mxu0 0.0
  %3446 = vmatprep.subr.mxu0 0.0
  %3447 = vmatpush1.msra.mxu0 0.0
  %3448 = vmatprep.subr.mxu0 0.0
  %3449 = vmatpush1.msra.mxu0 0.0
  %3450 = vmatprep.subr.mxu0 0.0
  %3451 = vmatpush1.msra.mxu0 0.0
  %3452 = vmatprep.subr.mxu0 0.0
  %3453 = vmatpush1.msra.mxu0 0.0
  %3454 = vmatprep.subr.mxu0 0.0
  %3455 = vmatpush1.msra.mxu0 0.0
  %3456 = vmatprep.subr.mxu0 0.0
  %3457 = vmatpush1.msra.mxu0 0.0
  %3458 = vmatprep.subr.mxu0 0.0
  %3459 = vmatpush1.msra.mxu0 0.0
  %3460 = vmatprep.subr.mxu0 0.0
  %3461 = vmatpush1.msra.mxu0 0.0
  %3462 = vmatprep.subr.mxu0 0.0
  %3463 = vmatpush1.msra.mxu0 0.0
  %3464 = vmatprep.subr.mxu0 0.0
  %3465 = vmatpush1.msra.mxu0 0.0
  %3466 = vmatprep.subr.mxu0 0.0
  %3467 = vmatpush1.msra.mxu0 0.0
  %3468 = vmatprep.subr.mxu0 0.0
  %3469 = vmatpush1.msra.mxu0 0.0
  %3470 = vmatprep.subr.mxu0 0.0
  %3471 = vmatpush1.msra.mxu0 0.0
  %3472 = vmatprep.subr.mxu0 0.0
  %3473 = vmatpush1.msra.mxu0 0.0
  %3474 = vmatprep.subr.mxu0 0.0
  %3475 = vmatpush1.msra.mxu0 0.0
  %3476 = vmatprep.subr.mxu0 0.0
  %3477 = vmatpush1.msra.mxu0 0.0
  %3478 = vmatprep.subr.mxu0 0.0
  %3479 = vmatpush1.msra.mxu0 0.0
  %3480 = vmatprep.subr.mxu0 0.0
  %3481 = vmatpush1.msra.mxu0 0.0
  %3482 = vmatprep.mubr.f32.mxu0 0.0
  %3483 = vmatmul.mubr.f32.gmra.mrb[0].mxu0 %v3413
  %v3484 = vpop.f32.mrb[0].mxu0
  %v3485 = vadd.f32 0.0, %v3484
  %v3486 = vpop.f32.mrb[0].mxu0
  %3487 = vmatprep.mubr.f32.mxu0 0.0
  %3488 = vmatmul.mubr.f32.gmra.mrb[0].mxu0 %v3416
  %v3489 = vpop.f32.mrb[0].mxu0
  %v3490 = vadd.f32 0.0, %v3489
  %v3491 = vpop.f32.mrb[0].mxu0
  %3492 = vdwg.mxu0
  %v3493 = vadd.f32 %v3070, %v3485
  %v3494 = vadd.f32 %v3075, %v3490
  %3495 = vrot.lane.b32.xlu0 %v2242, 104
  %v3496 = vpop.permute.xlu0 %3495
  %3497 = vrot.lane.b32.xlu0 %v2242, 72
  %v3498 = vpop.permute.xlu0 %3497
  %v3499 = vsel %vm193, %v3496, 0
  %v3501 = vsel %vm193, %v3498, 0
  %3503 = vmatprep.subr.mxu0 0.0
  %3504 = vmatpush1.xpose.msra.mxu0 %v3501
  %3505 = vmatprep.subr.mxu0 0.0
  %3506 = vmatpush1.xpose.msra.mxu0 0.0
  %3507 = vmatprep.subr.mxu0 0.0
  %3508 = vmatpush1.xpose.msra.mxu0 0.0
  %3509 = vmatprep.subr.mxu0 0.0
  %3510 = vmatpush1.xpose.msra.mxu0 0.0
  %3511 = vmatprep.subr.mxu0 0.0
  %3512 = vmatpush1.xpose.msra.mxu0 0.0
  %3513 = vmatprep.subr.mxu0 0.0
  %3514 = vmatpush1.xpose.msra.mxu0 0.0
  %3515 = vmatprep.subr.mxu0 0.0
  %3516 = vmatpush1.xpose.msra.mxu0 0.0
  %3517 = vmatprep.subr.mxu0 0.0
  %3518 = vmatpush1.xpose.msra.mxu0 0.0
  %3519 = vmatprep.subr.mxu0 0.0
  %3520 = vmatpush1.xpose.msra.mxu0 0.0
  %3521 = vmatprep.subr.mxu0 0.0
  %3522 = vmatpush1.xpose.msra.mxu0 0.0
  %3523 = vmatprep.subr.mxu0 0.0
  %3524 = vmatpush1.xpose.msra.mxu0 0.0
  %3525 = vmatprep.subr.mxu0 0.0
  %3526 = vmatpush1.xpose.msra.mxu0 0.0
  %3527 = vmatprep.subr.mxu0 0.0
  %3528 = vmatpush1.xpose.msra.mxu0 0.0
  %3529 = vmatprep.subr.mxu0 0.0
  %3530 = vmatpush1.xpose.msra.mxu0 0.0
  %3531 = vmatprep.subr.mxu0 0.0
  %3532 = vmatpush1.xpose.msra.mxu0 0.0
  %3533 = vmatprep.subr.mxu0 0.0
  %3534 = vmatpush1.xpose.msra.mxu0 0.0
  %3535 = vmatprep.subr.mxu0 0.0
  %3536 = vmatpush1.xpose.msra.mxu0 0.0
  %3537 = vmatprep.subr.mxu0 0.0
  %3538 = vmatpush1.xpose.msra.mxu0 0.0
  %3539 = vmatprep.subr.mxu0 0.0
  %3540 = vmatpush1.xpose.msra.mxu0 0.0
  %3541 = vmatprep.subr.mxu0 0.0
  %3542 = vmatpush1.xpose.msra.mxu0 0.0
  %3543 = vmatprep.subr.mxu0 0.0
  %3544 = vmatpush1.xpose.msra.mxu0 0.0
  %3545 = vmatprep.subr.mxu0 0.0
  %3546 = vmatpush1.xpose.msra.mxu0 0.0
  %3547 = vmatprep.subr.mxu0 0.0
  %3548 = vmatpush1.xpose.msra.mxu0 0.0
  %3549 = vmatprep.subr.mxu0 0.0
  %3550 = vmatpush1.xpose.msra.mxu0 0.0
  %3551 = vmatprep.subr.mxu0 0.0
  %3552 = vmatpush1.xpose.msra.mxu0 0.0
  %3553 = vmatprep.subr.mxu0 0.0
  %3554 = vmatpush1.xpose.msra.mxu0 0.0
  %3555 = vmatprep.subr.mxu0 0.0
  %3556 = vmatpush1.xpose.msra.mxu0 0.0
  %3557 = vmatprep.subr.mxu0 0.0
  %3558 = vmatpush1.xpose.msra.mxu0 0.0
  %3559 = vmatprep.subr.mxu0 0.0
  %3560 = vmatpush1.xpose.msra.mxu0 0.0
  %3561 = vmatprep.subr.mxu0 0.0
  %3562 = vmatpush1.xpose.msra.mxu0 0.0
  %3563 = vmatprep.subr.mxu0 0.0
  %3564 = vmatpush1.xpose.msra.mxu0 0.0
  %3565 = vmatprep.subr.mxu0 0.0
  %3566 = vmatpush1.xpose.msra.mxu0 0.0
  %3567 = vmatprep.mubr.f32.mxu0 0.0
  %3568 = vmatmul.mubr.f32.gmra.mrb[0].mxu0 %v3499
  %v3569 = vpop.f32.mrb[0].mxu0
  %v3570 = vadd.f32 %v183, %v3569
  %v3571 = vpop.f32.mrb[0].mxu0
  %3572 = vdwg.mxu0
  %3573 = vrot.lane.b32.xlu0 %v2247, 104
  %v3574 = vpop.permute.xlu0 %3573
  %3575 = vrot.lane.b32.xlu0 %v2247, 72
  %v3576 = vpop.permute.xlu0 %3575
  %v3577 = vsel %vm193, %v3574, 0
  %v3579 = vsel %vm193, %v3576, 0
  %3581 = vmatprep.subr.mxu0 0.0
  %3582 = vmatpush1.xpose.msra.mxu0 %v3579
  %3583 = vmatprep.subr.mxu0 0.0
  %3584 = vmatpush1.xpose.msra.mxu0 0.0
  %3585 = vmatprep.subr.mxu0 0.0
  %3586 = vmatpush1.xpose.msra.mxu0 0.0
  %3587 = vmatprep.subr.mxu0 0.0
  %3588 = vmatpush1.xpose.msra.mxu0 0.0
  %3589 = vmatprep.subr.mxu0 0.0
  %3590 = vmatpush1.xpose.msra.mxu0 0.0
  %3591 = vmatprep.subr.mxu0 0.0
  %3592 = vmatpush1.xpose.msra.mxu0 0.0
  %3593 = vmatprep.subr.mxu0 0.0
  %3594 = vmatpush1.xpose.msra.mxu0 0.0
  %3595 = vmatprep.subr.mxu0 0.0
  %3596 = vmatpush1.xpose.msra.mxu0 0.0
  %3597 = vmatprep.subr.mxu0 0.0
  %3598 = vmatpush1.xpose.msra.mxu0 0.0
  %3599 = vmatprep.subr.mxu0 0.0
  %3600 = vmatpush1.xpose.msra.mxu0 0.0
  %3601 = vmatprep.subr.mxu0 0.0
  %3602 = vmatpush1.xpose.msra.mxu0 0.0
  %3603 = vmatprep.subr.mxu0 0.0
  %3604 = vmatpush1.xpose.msra.mxu0 0.0
  %3605 = vmatprep.subr.mxu0 0.0
  %3606 = vmatpush1.xpose.msra.mxu0 0.0
  %3607 = vmatprep.subr.mxu0 0.0
  %3608 = vmatpush1.xpose.msra.mxu0 0.0
  %3609 = vmatprep.subr.mxu0 0.0
  %3610 = vmatpush1.xpose.msra.mxu0 0.0
  %3611 = vmatprep.subr.mxu0 0.0
  %3612 = vmatpush1.xpose.msra.mxu0 0.0
  %3613 = vmatprep.subr.mxu0 0.0
  %3614 = vmatpush1.xpose.msra.mxu0 0.0
  %3615 = vmatprep.subr.mxu0 0.0
  %3616 = vmatpush1.xpose.msra.mxu0 0.0
  %3617 = vmatprep.subr.mxu0 0.0
  %3618 = vmatpush1.xpose.msra.mxu0 0.0
  %3619 = vmatprep.subr.mxu0 0.0
  %3620 = vmatpush1.xpose.msra.mxu0 0.0
  %3621 = vmatprep.subr.mxu0 0.0
  %3622 = vmatpush1.xpose.msra.mxu0 0.0
  %3623 = vmatprep.subr.mxu0 0.0
  %3624 = vmatpush1.xpose.msra.mxu0 0.0
  %3625 = vmatprep.subr.mxu0 0.0
  %3626 = vmatpush1.xpose.msra.mxu0 0.0
  %3627 = vmatprep.subr.mxu0 0.0
  %3628 = vmatpush1.xpose.msra.mxu0 0.0
  %3629 = vmatprep.subr.mxu0 0.0
  %3630 = vmatpush1.xpose.msra.mxu0 0.0
  %3631 = vmatprep.subr.mxu0 0.0
  %3632 = vmatpush1.xpose.msra.mxu0 0.0
  %3633 = vmatprep.subr.mxu0 0.0
  %3634 = vmatpush1.xpose.msra.mxu0 0.0
  %3635 = vmatprep.subr.mxu0 0.0
  %3636 = vmatpush1.xpose.msra.mxu0 0.0
  %3637 = vmatprep.subr.mxu0 0.0
  %3638 = vmatpush1.xpose.msra.mxu0 0.0
  %3639 = vmatprep.subr.mxu0 0.0
  %3640 = vmatpush1.xpose.msra.mxu0 0.0
  %3641 = vmatprep.subr.mxu0 0.0
  %3642 = vmatpush1.xpose.msra.mxu0 0.0
  %3643 = vmatprep.subr.mxu0 0.0
  %3644 = vmatpush1.xpose.msra.mxu0 0.0
  %3645 = vmatprep.mubr.f32.mxu0 0.0
  %3646 = vmatmul.mubr.f32.gmra.mrb[0].mxu0 %v3577
  %v3647 = vpop.f32.mrb[0].mxu0
  %v3648 = vadd.f32 %v187, %v3647
  %v3649 = vpop.f32.mrb[0].mxu0
  %3650 = vdwg.mxu0
  %v3651 = vsel %vm193, %v3570, -inf
  %3652 = vmax.xlane.f32.xlu0 %v3651
  %v3653 = vpop.xlane.xlu0 %3652
  %v3654 = vsel %vm193, %v3648, -inf
  %3655 = vmax.xlane.f32.xlu0 %v3654
  %v3656 = vpop.xlane.xlu0 %3655
  %v3657 = vsub.f32 %v3570, %v3653
  %v3658 = vsub.f32 %v3648, %v3656
  %v3659 = vmul.f32 %v3657, 1.442695
  %v3660 = vpow.pop %v3659
  %v3661 = vmul.f32 %v3658, 1.442695
  %v3662 = vpow.pop %v3661
  %v3663 = vsel %vm193, %v3660, 0.0
  %3664 = vadd.xlane.f32.xlu0 %v3663
  %v3665 = vpop.xlane.xlu0 %3664
  %v3666 = vsel %vm193, %v3662, 0.0
  %3667 = vadd.xlane.f32.xlu0 %v3666
  %v3668 = vpop.xlane.xlu0 %3667
  %v3669 = vrcp.pop %v3665
  %v3670 = vmul.f32 %v3660, %v3669
  %v3671 = vrcp.pop %v3668
  %v3672 = vmul.f32 %v3662, %v3671
  %3673 = vrot.lane.b32.xlu0 %v2242, 40
  %v3674 = vpop.permute.xlu0 %3673
  %v3677 = vsel %vm193, %v3670, 0
  %3679 = vmatprep.subr.mxu0 0.0
  %3680 = vmatpush1.msra.mxu0 %v3674
  %3681 = vmatprep.subr.mxu0 0.0
  %3682 = vmatpush1.msra.mxu0 0.0
  %3683 = vmatprep.subr.mxu0 0.0
  %3684 = vmatpush1.msra.mxu0 0.0
  %3685 = vmatprep.subr.mxu0 0.0
  %3686 = vmatpush1.msra.mxu0 0.0
  %3687 = vmatprep.subr.mxu0 0.0
  %3688 = vmatpush1.msra.mxu0 0.0
  %3689 = vmatprep.subr.mxu0 0.0
  %3690 = vmatpush1.msra.mxu0 0.0
  %3691 = vmatprep.subr.mxu0 0.0
  %3692 = vmatpush1.msra.mxu0 0.0
  %3693 = vmatprep.subr.mxu0 0.0
  %3694 = vmatpush1.msra.mxu0 0.0
  %3695 = vmatprep.subr.mxu0 0.0
  %3696 = vmatpush1.msra.mxu0 0.0
  %3697 = vmatprep.subr.mxu0 0.0
  %3698 = vmatpush1.msra.mxu0 0.0
  %3699 = vmatprep.subr.mxu0 0.0
  %3700 = vmatpush1.msra.mxu0 0.0
  %3701 = vmatprep.subr.mxu0 0.0
  %3702 = vmatpush1.msra.mxu0 0.0
  %3703 = vmatprep.subr.mxu0 0.0
  %3704 = vmatpush1.msra.mxu0 0.0
  %3705 = vmatprep.subr.mxu0 0.0
  %3706 = vmatpush1.msra.mxu0 0.0
  %3707 = vmatprep.subr.mxu0 0.0
  %3708 = vmatpush1.msra.mxu0 0.0
  %3709 = vmatprep.subr.mxu0 0.0
  %3710 = vmatpush1.msra.mxu0 0.0
  %3711 = vmatprep.subr.mxu0 0.0
  %3712 = vmatpush1.msra.mxu0 0.0
  %3713 = vmatprep.subr.mxu0 0.0
  %3714 = vmatpush1.msra.mxu0 0.0
  %3715 = vmatprep.subr.mxu0 0.0
  %3716 = vmatpush1.msra.mxu0 0.0
  %3717 = vmatprep.subr.mxu0 0.0
  %3718 = vmatpush1.msra.mxu0 0.0
  %3719 = vmatprep.subr.mxu0 0.0
  %3720 = vmatpush1.msra.mxu0 0.0
  %3721 = vmatprep.subr.mxu0 0.0
  %3722 = vmatpush1.msra.mxu0 0.0
  %3723 = vmatprep.subr.mxu0 0.0
  %3724 = vmatpush1.msra.mxu0 0.0
  %3725 = vmatprep.subr.mxu0 0.0
  %3726 = vmatpush1.msra.mxu0 0.0
  %3727 = vmatprep.subr.mxu0 0.0
  %3728 = vmatpush1.msra.mxu0 0.0
  %3729 = vmatprep.subr.mxu0 0.0
  %3730 = vmatpush1.msra.mxu0 0.0
  %3731 = vmatprep.subr.mxu0 0.0
  %3732 = vmatpush1.msra.mxu0 0.0
  %3733 = vmatprep.subr.mxu0 0.0
  %3734 = vmatpush1.msra.mxu0 0.0
  %3735 = vmatprep.subr.mxu0 0.0
  %3736 = vmatpush1.msra.mxu0 0.0
  %3737 = vmatprep.subr.mxu0 0.0
  %3738 = vmatpush1.msra.mxu0 0.0
  %3739 = vmatprep.subr.mxu0 0.0
  %3740 = vmatpush1.msra.mxu0 0.0
  %3741 = vmatprep.subr.mxu0 0.0
  %3742 = vmatpush1.msra.mxu0 0.0
  %3743 = vmatprep.mubr.f32.mxu0 0.0
  %3744 = vmatmul.mubr.f32.gmra.mrb[0].mxu0 %v3677
  %v3745 = vpop.f32.mrb[0].mxu0
  %v3746 = vadd.f32 0.0, %v3745
  %v3747 = vpop.f32.mrb[0].mxu0
  %3748 = vdwg.mxu0
  %3749 = vrot.lane.b32.xlu0 %v2247, 40
  %v3750 = vpop.permute.xlu0 %3749
  %v3753 = vsel %vm193, %v3672, 0
  %3755 = vmatprep.subr.mxu0 0.0
  %3756 = vmatpush1.msra.mxu0 %v3750
  %3757 = vmatprep.subr.mxu0 0.0
  %3758 = vmatpush1.msra.mxu0 0.0
  %3759 = vmatprep.subr.mxu0 0.0
  %3760 = vmatpush1.msra.mxu0 0.0
  %3761 = vmatprep.subr.mxu0 0.0
  %3762 = vmatpush1.msra.mxu0 0.0
  %3763 = vmatprep.subr.mxu0 0.0
  %3764 = vmatpush1.msra.mxu0 0.0
  %3765 = vmatprep.subr.mxu0 0.0
  %3766 = vmatpush1.msra.mxu0 0.0
  %3767 = vmatprep.subr.mxu0 0.0
  %3768 = vmatpush1.msra.mxu0 0.0
  %3769 = vmatprep.subr.mxu0 0.0
  %3770 = vmatpush1.msra.mxu0 0.0
  %3771 = vmatprep.subr.mxu0 0.0
  %3772 = vmatpush1.msra.mxu0 0.0
  %3773 = vmatprep.subr.mxu0 0.0
  %3774 = vmatpush1.msra.mxu0 0.0
  %3775 = vmatprep.subr.mxu0 0.0
  %3776 = vmatpush1.msra.mxu0 0.0
  %3777 = vmatprep.subr.mxu0 0.0
  %3778 = vmatpush1.msra.mxu0 0.0
  %3779 = vmatprep.subr.mxu0 0.0
  %3780 = vmatpush1.msra.mxu0 0.0
  %3781 = vmatprep.subr.mxu0 0.0
  %3782 = vmatpush1.msra.mxu0 0.0
  %3783 = vmatprep.subr.mxu0 0.0
  %3784 = vmatpush1.msra.mxu0 0.0
  %3785 = vmatprep.subr.mxu0 0.0
  %3786 = vmatpush1.msra.mxu0 0.0
  %3787 = vmatprep.subr.mxu0 0.0
  %3788 = vmatpush1.msra.mxu0 0.0
  %3789 = vmatprep.subr.mxu0 0.0
  %3790 = vmatpush1.msra.mxu0 0.0
  %3791 = vmatprep.subr.mxu0 0.0
  %3792 = vmatpush1.msra.mxu0 0.0
  %3793 = vmatprep.subr.mxu0 0.0
  %3794 = vmatpush1.msra.mxu0 0.0
  %3795 = vmatprep.subr.mxu0 0.0
  %3796 = vmatpush1.msra.mxu0 0.0
  %3797 = vmatprep.subr.mxu0 0.0
  %3798 = vmatpush1.msra.mxu0 0.0
  %3799 = vmatprep.subr.mxu0 0.0
  %3800 = vmatpush1.msra.mxu0 0.0
  %3801 = vmatprep.subr.mxu0 0.0
  %3802 = vmatpush1.msra.mxu0 0.0
  %3803 = vmatprep.subr.mxu0 0.0
  %3804 = vmatpush1.msra.mxu0 0.0
  %3805 = vmatprep.subr.mxu0 0.0
  %3806 = vmatpush1.msra.mxu0 0.0
  %3807 = vmatprep.subr.mxu0 0.0
  %3808 = vmatpush1.msra.mxu0 0.0
  %3809 = vmatprep.subr.mxu0 0.0
  %3810 = vmatpush1.msra.mxu0 0.0
  %3811 = vmatprep.subr.mxu0 0.0
  %3812 = vmatpush1.msra.mxu0 0.0
  %3813 = vmatprep.subr.mxu0 0.0
  %3814 = vmatpush1.msra.mxu0 0.0
  %3815 = vmatprep.subr.mxu0 0.0
  %3816 = vmatpush1.msra.mxu0 0.0
  %3817 = vmatprep.subr.mxu0 0.0
  %3818 = vmatpush1.msra.mxu0 0.0
  %3819 = vmatprep.mubr.f32.mxu0 0.0
  %3820 = vmatmul.mubr.f32.gmra.mrb[0].mxu0 %v3753
  %v3821 = vpop.f32.mrb[0].mxu0
  %v3822 = vadd.f32 0.0, %v3821
  %v3823 = vpop.f32.mrb[0].mxu0
  %3824 = vdwg.mxu0
  %3826 = vrot.lane.b32.xlu0 %v2112, 32
  %v3827 = vpop.permute.xlu0 %3826
  %v3830 = vsel %vm193, %v3746, 0
  %v3833 = vsel %vm193, %v3822, 0
  %3835 = vmatprep.subr.mxu0 0.0
  %3836 = vmatpush1.msra.mxu0 %v3827
  %3837 = vmatprep.subr.mxu0 0.0
  %3838 = vmatpush1.msra.mxu0 0.0
  %3839 = vmatprep.subr.mxu0 0.0
  %3840 = vmatpush1.msra.mxu0 0.0
  %3841 = vmatprep.subr.mxu0 0.0
  %3842 = vmatpush1.msra.mxu0 0.0
  %3843 = vmatprep.subr.mxu0 0.0
  %3844 = vmatpush1.msra.mxu0 0.0
  %3845 = vmatprep.subr.mxu0 0.0
  %3846 = vmatpush1.msra.mxu0 0.0
  %3847 = vmatprep.subr.mxu0 0.0
  %3848 = vmatpush1.msra.mxu0 0.0
  %3849 = vmatprep.subr.mxu0 0.0
  %3850 = vmatpush1.msra.mxu0 0.0
  %3851 = vmatprep.subr.mxu0 0.0
  %3852 = vmatpush1.msra.mxu0 0.0
  %3853 = vmatprep.subr.mxu0 0.0
  %3854 = vmatpush1.msra.mxu0 0.0
  %3855 = vmatprep.subr.mxu0 0.0
  %3856 = vmatpush1.msra.mxu0 0.0
  %3857 = vmatprep.subr.mxu0 0.0
  %3858 = vmatpush1.msra.mxu0 0.0
  %3859 = vmatprep.subr.mxu0 0.0
  %3860 = vmatpush1.msra.mxu0 0.0
  %3861 = vmatprep.subr.mxu0 0.0
  %3862 = vmatpush1.msra.mxu0 0.0
  %3863 = vmatprep.subr.mxu0 0.0
  %3864 = vmatpush1.msra.mxu0 0.0
  %3865 = vmatprep.subr.mxu0 0.0
  %3866 = vmatpush1.msra.mxu0 0.0
  %3867 = vmatprep.subr.mxu0 0.0
  %3868 = vmatpush1.msra.mxu0 0.0
  %3869 = vmatprep.subr.mxu0 0.0
  %3870 = vmatpush1.msra.mxu0 0.0
  %3871 = vmatprep.subr.mxu0 0.0
  %3872 = vmatpush1.msra.mxu0 0.0
  %3873 = vmatprep.subr.mxu0 0.0
  %3874 = vmatpush1.msra.mxu0 0.0
  %3875 = vmatprep.subr.mxu0 0.0
  %3876 = vmatpush1.msra.mxu0 0.0
  %3877 = vmatprep.subr.mxu0 0.0
  %3878 = vmatpush1.msra.mxu0 0.0
  %3879 = vmatprep.subr.mxu0 0.0
  %3880 = vmatpush1.msra.mxu0 0.0
  %3881 = vmatprep.subr.mxu0 0.0
  %3882 = vmatpush1.msra.mxu0 0.0
  %3883 = vmatprep.subr.mxu0 0.0
  %3884 = vmatpush1.msra.mxu0 0.0
  %3885 = vmatprep.subr.mxu0 0.0
  %3886 = vmatpush1.msra.mxu0 0.0
  %3887 = vmatprep.subr.mxu0 0.0
  %3888 = vmatpush1.msra.mxu0 0.0
  %3889 = vmatprep.subr.mxu0 0.0
  %3890 = vmatpush1.msra.mxu0 0.0
  %3891 = vmatprep.subr.mxu0 0.0
  %3892 = vmatpush1.msra.mxu0 0.0
  %3893 = vmatprep.subr.mxu0 0.0
  %3894 = vmatpush1.msra.mxu0 0.0
  %3895 = vmatprep.subr.mxu0 0.0
  %3896 = vmatpush1.msra.mxu0 0.0
  %3897 = vmatprep.subr.mxu0 0.0
  %3898 = vmatpush1.msra.mxu0 0.0
  %3899 = vmatprep.mubr.f32.mxu0 0.0
  %3900 = vmatmul.mubr.f32.gmra.mrb[0].mxu0 %v3830
  %v3901 = vpop.f32.mrb[0].mxu0
  %v3902 = vadd.f32 0.0, %v3901
  %v3903 = vpop.f32.mrb[0].mxu0
  %3904 = vmatprep.mubr.f32.mxu0 0.0
  %3905 = vmatmul.mubr.f32.gmra.mrb[0].mxu0 %v3833
  %v3906 = vpop.f32.mrb[0].mxu0
  %v3907 = vadd.f32 0.0, %v3906
  %v3908 = vpop.f32.mrb[0].mxu0
  %3909 = vdwg.mxu0
  %v3910 = vadd.f32 %v3493, %v3902
  %v3911 = vadd.f32 %v3494, %v3907
  %v3912 = vadd.f32 %v2098, %v3910
  %v3913 = vadd.f32 %v2099, %v3911
  %v3914 = vlaneseq
  %v3915 = vshrl.u32 %v3914, 7
  %v3916 = vsub.s32 0, %v3915
  %v3917 = vrot.slane %v2103, %v3916
  %v3918 = vadd.f32 %v3912, %v3917
  %v3919 = vadd.f32 %v3913, %v3917
  %v3920 = vsel %vm39, %v3918, 0.0
  %3921 = vadd.xlane.f32.xlu0 %v3920
  %v3922 = vpop.xlane.xlu0 %3921
  %v3923 = vsel %vm39, %v3919, 0.0
  %3924 = vadd.xlane.f32.xlu0 %v3923
  %v3925 = vpop.xlane.xlu0 %3924
  %v3926 = vmul.f32 %v3922, %v46
  %v3927 = vmul.f32 %v3925, %v46
  %v3928 = vsub.f32 %v3918, %v3926
  %v3929 = vsub.f32 %v3919, %v3927
  %v3930 = vmul.f32 %v3928, %v3928
  %v3931 = vmul.f32 %v3929, %v3929
  %v3932 = vsel %vm39, %v3930, 0.0
  %3933 = vadd.xlane.f32.xlu0 %v3932
  %v3934 = vpop.xlane.xlu0 %3933
  %v3935 = vsel %vm39, %v3931, 0.0
  %3936 = vadd.xlane.f32.xlu0 %v3935
  %v3937 = vpop.xlane.xlu0 %3936
  %v3938 = vmul.f32 %v3934, 0.032258064
  %v3939 = vmul.f32 %v3937, 0.032258064
  %v3940 = vrsqrt.pop %v3938
  %v3941 = vmul.f32 %v3938, %v3940
  %vm3942 = vcmp.eq.f32.partialorder %v3938, inf
  %v3943 = vsel %vm3942, %v3938, %v3941
  %vm3944 = vcmp.eq.f32.partialorder %v3938, 0.0
  %v3945 = vand.u32 %v3938, 2147483648
  %v3946 = vsel %vm3944, %v3945, %v3943
  %v3947 = vrsqrt.pop %v3939
  %v3948 = vmul.f32 %v3939, %v3947
  %vm3949 = vcmp.eq.f32.partialorder %v3939, inf
  %v3950 = vsel %vm3949, %v3939, %v3948
  %vm3951 = vcmp.eq.f32.partialorder %v3939, 0.0
  %v3952 = vand.u32 %v3939, 2147483648
  %v3953 = vsel %vm3951, %v3952, %v3950
  %v3954 = vadd.f32 %v3946, 1e-06
  %v3955 = vadd.f32 %v3953, 1e-06
  %v3956 = vrcp.pop %v3954
  %v3957 = vrcp.pop %v3955
  %v3958 = vmul.f32 %v3928, %v3956
  %v3959 = vmul.f32 %v3929, %v3957
  %v3960 = vlaneseq
  %v3961 = vshrl.u32 %v3960, 7
  %v3962 = vsub.s32 0, %v3961
  %v3963 = vrot.slane %v2104, %v3962
  %v3964 = vmul.f32 %v3963, %v3958
  %v3965 = vmul.f32 %v3963, %v3959
  %v3966 = vlaneseq
  %v3967 = vshrl.u32 %v3966, 7
  %v3968 = vsub.s32 0, %v3967
  %v3969 = vrot.slane %v2105, %v3968
  %v3970 = vadd.f32 %v3964, %v3969
  %v3971 = vadd.f32 %v3965, %v3969
  %s3972 = scalar_lea.vmem %s3, 32
  %v3973 = vld [vmem:[%s3972] sm:$0xff]
  %v3974 = vld [vmem:[%s3972 + $0x8] sm:$0xff]
  %v3975 = vld [vmem:[%s3972 + $0x10] sm:$0xff]
  %v3976 = vld [vmem:[%s3972 + $0x18] sm:$0xff]
  %v3977 = vlaneseq
  %v3978 = vshrl.u32 %v3977, 7
  %v3979 = vsub.s32 0, %v3978
  %v3980 = vrot.slane %v2106, %v3979
  %v3982 = vsel %vm39, %v3970, 0
  %v3985 = vsel %vm39, %v3971, 0
  %3987 = vmatprep.subr.mxu0 0.0
  %3988 = vmatpush1.msra.mxu0 %v3973
  %3989 = vmatprep.subr.mxu0 0.0
  %3990 = vmatpush1.msra.mxu0 %v3974
  %3991 = vmatprep.subr.mxu0 0.0
  %3992 = vmatpush1.msra.mxu0 %v3975
  %3993 = vmatprep.subr.mxu0 0.0
  %3994 = vmatpush1.msra.mxu0 %v3976
  %3995 = vmatprep.subr.mxu0 0.0
  %3996 = vmatpush1.msra.mxu0 0.0
  %3997 = vmatprep.subr.mxu0 0.0
  %3998 = vmatpush1.msra.mxu0 0.0
  %3999 = vmatprep.subr.mxu0 0.0
  %4000 = vmatpush1.msra.mxu0 0.0
  %4001 = vmatprep.subr.mxu0 0.0
  %4002 = vmatpush1.msra.mxu0 0.0
  %4003 = vmatprep.subr.mxu0 0.0
  %4004 = vmatpush1.msra.mxu0 0.0
  %4005 = vmatprep.subr.mxu0 0.0
  %4006 = vmatpush1.msra.mxu0 0.0
  %4007 = vmatprep.subr.mxu0 0.0
  %4008 = vmatpush1.msra.mxu0 0.0
  %4009 = vmatprep.subr.mxu0 0.0
  %4010 = vmatpush1.msra.mxu0 0.0
  %4011 = vmatprep.subr.mxu0 0.0
  %4012 = vmatpush1.msra.mxu0 0.0
  %4013 = vmatprep.subr.mxu0 0.0
  %4014 = vmatpush1.msra.mxu0 0.0
  %4015 = vmatprep.subr.mxu0 0.0
  %4016 = vmatpush1.msra.mxu0 0.0
  %4017 = vmatprep.subr.mxu0 0.0
  %4018 = vmatpush1.msra.mxu0 0.0
  %4019 = vmatprep.subr.mxu0 0.0
  %4020 = vmatpush1.msra.mxu0 0.0
  %4021 = vmatprep.subr.mxu0 0.0
  %4022 = vmatpush1.msra.mxu0 0.0
  %4023 = vmatprep.subr.mxu0 0.0
  %4024 = vmatpush1.msra.mxu0 0.0
  %4025 = vmatprep.subr.mxu0 0.0
  %4026 = vmatpush1.msra.mxu0 0.0
  %4027 = vmatprep.subr.mxu0 0.0
  %4028 = vmatpush1.msra.mxu0 0.0
  %4029 = vmatprep.subr.mxu0 0.0
  %4030 = vmatpush1.msra.mxu0 0.0
  %4031 = vmatprep.subr.mxu0 0.0
  %4032 = vmatpush1.msra.mxu0 0.0
  %4033 = vmatprep.subr.mxu0 0.0
  %4034 = vmatpush1.msra.mxu0 0.0
  %4035 = vmatprep.subr.mxu0 0.0
  %4036 = vmatpush1.msra.mxu0 0.0
  %4037 = vmatprep.subr.mxu0 0.0
  %4038 = vmatpush1.msra.mxu0 0.0
  %4039 = vmatprep.subr.mxu0 0.0
  %4040 = vmatpush1.msra.mxu0 0.0
  %4041 = vmatprep.subr.mxu0 0.0
  %4042 = vmatpush1.msra.mxu0 0.0
  %4043 = vmatprep.subr.mxu0 0.0
  %4044 = vmatpush1.msra.mxu0 0.0
  %4045 = vmatprep.subr.mxu0 0.0
  %4046 = vmatpush1.msra.mxu0 0.0
  %4047 = vmatprep.subr.mxu0 0.0
  %4048 = vmatpush1.msra.mxu0 0.0
  %4049 = vmatprep.subr.mxu0 0.0
  %4050 = vmatpush1.msra.mxu0 0.0
  %4051 = vmatprep.mubr.f32.mxu0 0.0
  %4052 = vmatmul.mubr.f32.gmra.mrb[0].mxu0 %v3982
  %v4053 = vpop.f32.mrb[0].mxu0
  %v4054 = vadd.f32 %v3980, %v4053
  %v4055 = vpop.f32.mrb[0].mxu0
  %4056 = vmatprep.mubr.f32.mxu0 0.0
  %4057 = vmatmul.mubr.f32.gmra.mrb[0].mxu0 %v3985
  %v4058 = vpop.f32.mrb[0].mxu0
  %v4059 = vadd.f32 %v3980, %v4058
  %v4060 = vpop.f32.mrb[0].mxu0
  %4061 = vdwg.mxu0
  %v4062 = vmax.f32 %v4054, 0.0
  %v4063 = vmax.f32 %v4059, 0.0
  %s4064 = scalar_lea.vmem %s4, 64
  %v4065 = vld [vmem:[%s4064] sm:$0xff]
  %v4066 = vld [vmem:[%s4064 + $0x8] sm:$0xff]
  %v4067 = vld [vmem:[%s4064 + $0x10] sm:$0xff]
  %v4068 = vld [vmem:[%s4064 + $0x18] sm:$0xff]
  %v4069 = vld [vmem:[%s4064 + $0x20] sm:$0xff]
  %v4070 = vld [vmem:[%s4064 + $0x28] sm:$0xff]
  %v4071 = vld [vmem:[%s4064 + $0x30] sm:$0xff]
  %v4072 = vld [vmem:[%s4064 + $0x38] sm:$0xff]
  %v4073 = vlaneseq
  %v4074 = vshrl.u32 %v4073, 7
  %v4075 = vsub.s32 0, %v4074
  %v4076 = vrot.slane %v2107, %v4075
  %v4078 = vsel %vm2016, %v4062, 0
  %v4081 = vsel %vm2016, %v4063, 0
  %4083 = vmatprep.subr.mxu0 0.0
  %4084 = vmatpush1.msra.mxu0 %v4065
  %4085 = vmatprep.subr.mxu0 0.0
  %4086 = vmatpush1.msra.mxu0 %v4066
  %4087 = vmatprep.subr.mxu0 0.0
  %4088 = vmatpush1.msra.mxu0 %v4067
  %4089 = vmatprep.subr.mxu0 0.0
  %4090 = vmatpush1.msra.mxu0 %v4068
  %4091 = vmatprep.subr.mxu0 0.0
  %4092 = vmatpush1.msra.mxu0 %v4069
  %4093 = vmatprep.subr.mxu0 0.0
  %4094 = vmatpush1.msra.mxu0 %v4070
  %4095 = vmatprep.subr.mxu0 0.0
  %4096 = vmatpush1.msra.mxu0 %v4071
  %4097 = vmatprep.subr.mxu0 0.0
  %4098 = vmatpush1.msra.mxu0 %v4072
  %4099 = vmatprep.subr.mxu0 0.0
  %4100 = vmatpush1.msra.mxu0 0.0
  %4101 = vmatprep.subr.mxu0 0.0
  %4102 = vmatpush1.msra.mxu0 0.0
  %4103 = vmatprep.subr.mxu0 0.0
  %4104 = vmatpush1.msra.mxu0 0.0
  %4105 = vmatprep.subr.mxu0 0.0
  %4106 = vmatpush1.msra.mxu0 0.0
  %4107 = vmatprep.subr.mxu0 0.0
  %4108 = vmatpush1.msra.mxu0 0.0
  %4109 = vmatprep.subr.mxu0 0.0
  %4110 = vmatpush1.msra.mxu0 0.0
  %4111 = vmatprep.subr.mxu0 0.0
  %4112 = vmatpush1.msra.mxu0 0.0
  %4113 = vmatprep.subr.mxu0 0.0
  %4114 = vmatpush1.msra.mxu0 0.0
  %4115 = vmatprep.subr.mxu0 0.0
  %4116 = vmatpush1.msra.mxu0 0.0
  %4117 = vmatprep.subr.mxu0 0.0
  %4118 = vmatpush1.msra.mxu0 0.0
  %4119 = vmatprep.subr.mxu0 0.0
  %4120 = vmatpush1.msra.mxu0 0.0
  %4121 = vmatprep.subr.mxu0 0.0
  %4122 = vmatpush1.msra.mxu0 0.0
  %4123 = vmatprep.subr.mxu0 0.0
  %4124 = vmatpush1.msra.mxu0 0.0
  %4125 = vmatprep.subr.mxu0 0.0
  %4126 = vmatpush1.msra.mxu0 0.0
  %4127 = vmatprep.subr.mxu0 0.0
  %4128 = vmatpush1.msra.mxu0 0.0
  %4129 = vmatprep.subr.mxu0 0.0
  %4130 = vmatpush1.msra.mxu0 0.0
  %4131 = vmatprep.subr.mxu0 0.0
  %4132 = vmatpush1.msra.mxu0 0.0
  %4133 = vmatprep.subr.mxu0 0.0
  %4134 = vmatpush1.msra.mxu0 0.0
  %4135 = vmatprep.subr.mxu0 0.0
  %4136 = vmatpush1.msra.mxu0 0.0
  %4137 = vmatprep.subr.mxu0 0.0
  %4138 = vmatpush1.msra.mxu0 0.0
  %4139 = vmatprep.subr.mxu0 0.0
  %4140 = vmatpush1.msra.mxu0 0.0
  %4141 = vmatprep.subr.mxu0 0.0
  %4142 = vmatpush1.msra.mxu0 0.0
  %4143 = vmatprep.subr.mxu0 0.0
  %4144 = vmatpush1.msra.mxu0 0.0
  %4145 = vmatprep.subr.mxu0 0.0
  %4146 = vmatpush1.msra.mxu0 0.0
  %4147 = vmatprep.mubr.f32.mxu0 0.0
  %4148 = vmatmul.mubr.f32.gmra.mrb[0].mxu0 %v4078
  %v4149 = vpop.f32.mrb[0].mxu0
  %v4150 = vadd.f32 %v4076, %v4149
  %v4151 = vpop.f32.mrb[0].mxu0
  %4152 = vmatprep.mubr.f32.mxu0 0.0
  %4153 = vmatmul.mubr.f32.gmra.mrb[0].mxu0 %v4081
  %v4154 = vpop.f32.mrb[0].mxu0
  %v4155 = vadd.f32 %v4076, %v4154
  %v4156 = vpop.f32.mrb[0].mxu0
  %4157 = vdwg.mxu0
  %v4158 = vadd.f32 %v3918, %v4150
  %v4159 = vadd.f32 %v3919, %v4155
  %v4160 = vld [vmem:[%s5] sm:$0x1]
  %v4161 = vld [vmem:[%s5 + $0x1] sm:$0x1]
  %v4162 = vsel %vm39, %v4158, 0.0
  %4163 = vadd.xlane.f32.xlu0 %v4162
  %v4164 = vpop.xlane.xlu0 %4163
  %v4165 = vsel %vm39, %v4159, 0.0
  %4166 = vadd.xlane.f32.xlu0 %v4165
  %v4167 = vpop.xlane.xlu0 %4166
  %v4168 = vmul.f32 %v4164, %v46
  %v4169 = vmul.f32 %v4167, %v46
  %v4170 = vsub.f32 %v4158, %v4168
  %v4171 = vsub.f32 %v4159, %v4169
  %v4172 = vmul.f32 %v4170, %v4170
  %v4173 = vmul.f32 %v4171, %v4171
  %v4174 = vsel %vm39, %v4172, 0.0
  %4175 = vadd.xlane.f32.xlu0 %v4174
  %v4176 = vpop.xlane.xlu0 %4175
  %v4177 = vsel %vm39, %v4173, 0.0
  %4178 = vadd.xlane.f32.xlu0 %v4177
  %v4179 = vpop.xlane.xlu0 %4178
  %v4180 = vmul.f32 %v4176, 0.032258064
  %v4181 = vmul.f32 %v4179, 0.032258064
  %v4182 = vrsqrt.pop %v4180
  %v4183 = vmul.f32 %v4180, %v4182
  %vm4184 = vcmp.eq.f32.partialorder %v4180, inf
  %v4185 = vsel %vm4184, %v4180, %v4183
  %vm4186 = vcmp.eq.f32.partialorder %v4180, 0.0
  %v4187 = vand.u32 %v4180, 2147483648
  %v4188 = vsel %vm4186, %v4187, %v4185
  %v4189 = vrsqrt.pop %v4181
  %v4190 = vmul.f32 %v4181, %v4189
  %vm4191 = vcmp.eq.f32.partialorder %v4181, inf
  %v4192 = vsel %vm4191, %v4181, %v4190
  %vm4193 = vcmp.eq.f32.partialorder %v4181, 0.0
  %v4194 = vand.u32 %v4181, 2147483648
  %v4195 = vsel %vm4193, %v4194, %v4192
  %v4196 = vadd.f32 %v4188, 1e-06
  %v4197 = vadd.f32 %v4195, 1e-06
  %v4198 = vrcp.pop %v4196
  %v4199 = vrcp.pop %v4197
  %v4200 = vmul.f32 %v4170, %v4198
  %v4201 = vmul.f32 %v4171, %v4199
  %v4202 = vlaneseq
  %v4203 = vshrl.u32 %v4202, 7
  %v4204 = vsub.s32 0, %v4203
  %v4205 = vrot.slane %v4160, %v4204
  %v4206 = vmul.f32 %v4205, %v4200
  %v4207 = vmul.f32 %v4205, %v4201
  %v4208 = vlaneseq
  %v4209 = vshrl.u32 %v4208, 7
  %v4210 = vsub.s32 0, %v4209
  %v4211 = vrot.slane %v4161, %v4210
  %v4212 = vadd.f32 %v4206, %v4211
  %v4213 = vadd.f32 %v4207, %v4211
  %4214 = vst.msk [vmem:[%s6] sm:$0xff] %vm39, %v4212
  %4215 = vst.msk [vmem:[%s6 + $0x8] sm:$0xff] %vm39, %v4213
  // Predicated region
  $region26: #{encoder_pallas.1} parent=0 // pred_check
    _
  $region27: #{encoder_pallas.1} parent=0 // pred_check_branch
    %4217 = sbr.rel (0) target = $region29
  $region28: #{encoder_pallas.1} parent=0 // pred_region
    _
  $region29: #{encoder_pallas.1} parent=0 // pred_fallthru
    _
  // Predicated region
  $region30: #{encoder_pallas.1} parent=0 // pred_check
    _
  $region31: #{encoder_pallas.1} parent=0 // pred_check_branch
    %4219 = sbr.rel (0) target = $region33
  $region32: #{encoder_pallas.1} parent=0 // pred_region
    _
  $region33: #{encoder_pallas.1} parent=0 // pred_fallthru
    _

</llo_original>
